<compile_context>
chip_gen: v6e
topology: v6e:2x2x1
jax: 0.10.0
libtpu: 0.0.40
codegen_flags: <defaults>
</compile_context>

<pallas_src>
import functools

import numpy as np
import jax
import jax.numpy as jnp
from jax.experimental import pallas as pl
from jax.experimental.pallas import tpu as pltpu

LRELU_SLOPE = 0.2
_DISC_CHANNELS = (16, 32, 64, 128)          # fixed by the module definition


# --------------------------------------------------------------------------------- kernel
def _discriminator_kernel(x_ref, w_ref, b_ref, o_ref, *, layer_dims):
    """Five chained GEMMs: 4 x (conv-as-matrix + LeakyReLU) + final Linear.

    x_ref : (NB, P0*C0)        bf16  NHWC-flattened input batch tile
    w_ref : (K_max, sum(N_l))  bf16  all 5 weight matrices packed along the lane dim
    b_ref : (8, N_max)         f32   per-layer position-tiled biases (zero padded)
    o_ref : (NB, N_fc)         f32   latent output, padded to 128 lanes
    layer_dims : tuple of (K_l, N_l); last entry is the FC layer (no LeakyReLU)
    """
    y = x_ref[...]
    col = 0
    last = len(layer_dims) - 1
    for l, (k, n) in enumerate(layer_dims):
        z = jnp.dot(y, w_ref[:k, col:col + n], preferred_element_type=jnp.float32)
        z = z + b_ref[l:l + 1, :n]
        if l < last:
            z = jnp.where(z > 0.0, z, LRELU_SLOPE * z)
            y = z.astype(jnp.bfloat16)
            col += n
        else:
            o_ref[...] = z.astype(o_ref.dtype)


# ------------------------------------------------------------------ host-side constant glue
@functools.lru_cache(maxsize=None)
def _tap_tensor(h_in):
    """0/1 tensor T[t, p_out, p_in]: input position p_in read by tap t (= ky*3+kx) of a
    3x3 / stride-2 / pad-1 conv for output position p_out.  Batch-independent, cached."""
    h_out = (h_in - 1) // 2 + 1
    t = np.zeros((9, h_out * h_out, h_in * h_in), np.float32)
    io, jo = np.meshgrid(np.arange(h_out), np.arange(h_out), indexing="ij")
    p_out = (io * h_out + jo).ravel()
    for tap in range(9):
        dy, dx = tap // 3 - 1, tap % 3 - 1
        yy, xx = (2 * io + dy).ravel(), (2 * jo + dx).ravel()
        ok = (yy >= 0) & (yy < h_in) & (xx >= 0) & (xx < h_in)
        t[tap, p_out[ok], (yy * h_in + xx)[ok]] = 1.0
    return t


def _conv_as_matrix(w, h_in):
    """Fold Conv2d(k=3, s=2, p=1) with PyTorch (Cout, Cin, 3, 3) weights into a dense
    (h_in^2*Cin, h_out^2*Cout) matrix on position-major / channel-minor rows."""
    c_out, c_in = int(w.shape[0]), int(w.shape[1])
    h_out = (h_in - 1) // 2 + 1
    taps = jnp.asarray(_tap_tensor(h_in))                          # (9, P_out, P_in)
    wt = jnp.transpose(w, (2, 3, 1, 0)).reshape(9, c_in, c_out)    # (t, ci, co)
    b = jnp.einsum("tqp,tio->piqo", taps, wt)                      # (P_in, Cin, P_out, Cout)
    return b.reshape(h_in * h_in * c_in, h_out * h_out * c_out)


# ------------------------------------------------------------------------------- wrapper
def discriminator_forward(params, x, label, args, *, max_batch_tile=256):
    N = x.shape[0]
    H = W = args.img_size
    assert x.shape[2] == H and x.shape[3] == W
    ds = args.img_size // 2 ** 4

    if args.conditional:
        emb = params["emb"][label].reshape(N, 1, H, W)       # nn.Embedding lookup (glue)
        x = jnp.concatenate([emb, x], axis=1)                # cat((label, x), dim=1)
    cin = x.shape[1]

    # position-major / channel-minor flatten of the raw input: NCHW -> NHWC -> (N, H*W*C)
    x_flat = jnp.transpose(x, (0, 2, 3, 1)).reshape(N, H * W * cin).astype(jnp.bfloat16)

    # ---- fold every layer into a single GEMM operand -------------------------------
    hs = [H]
    for _ in range(4):
        hs.append((hs[-1] - 1) // 2 + 1)
    assert hs[-1] == ds, "img_size must be a multiple of 16 (matches the PyTorch module)"

    mats, biases = [], []
    for l in range(4):
        mats.append(_conv_as_matrix(params[f"w{l + 1}"], hs[l]))
        biases.append(jnp.tile(params[f"b{l + 1}"], hs[l + 1] ** 2))

    latent = args.latent_dim
    fc_n = max(128, ((latent + 127) // 128) * 128)           # lane-dense output width
    # reorder the FC weight from PyTorch's (C, H, W) flatten to our (H, W, C) flatten
    wfc = params["fc_w"].reshape(latent, 128, ds, ds).transpose(2, 3, 1, 0)
    wfc = wfc.reshape(ds * ds * 128, latent)
    mats.append(jnp.pad(wfc, ((0, 0), (0, fc_n - latent))))
    biases.append(jnp.pad(params["fc_b"], (0, fc_n - latent)))

    layer_dims = tuple((int(m.shape[0]), int(m.shape[1])) for m in mats)
    k_max = max(k for k, _ in layer_dims)
    n_max = max(n for _, n in layer_dims)

    w_pack = jnp.concatenate(
        [jnp.pad(m, ((0, k_max - m.shape[0]), (0, 0))) for m in mats],
        axis=1).astype(jnp.bfloat16)                                  # (K_max, sum N_l)
    b_rows = [jnp.pad(b.astype(jnp.float32), (0, n_max - b.shape[0])) for b in biases]
    b_pack = jnp.pad(jnp.stack(b_rows), ((0, 8 - len(b_rows)), (0, 0)))   # (8, N_max)

    # ---- batch tiling: grid over batch; 'parallel' lets v7x's 2 TCs split the steps --
    if N <= max_batch_tile:
        nb, n_pad = N, 0
    else:
        nb = max_batch_tile                                   # multiple of 8 / fills MXU M
        n_pad = (-N) % nb
        x_flat = jnp.pad(x_flat, ((0, n_pad), (0, 0)))
    n_steps = (N + n_pad) // nb
    k0 = x_flat.shape[1]

    kernel = functools.partial(_discriminator_kernel, layer_dims=layer_dims)
    out = pl.pallas_call(
        kernel,
        out_shape=jax.ShapeDtypeStruct((N + n_pad, fc_n), jnp.float32),
        grid=(n_steps,),
        in_specs=[pl.BlockSpec((nb, k0), lambda i: (i, 0)),
                  pl.BlockSpec(w_pack.shape, lambda i: (0, 0)),
                  pl.BlockSpec(b_pack.shape, lambda i: (0, 0))],
        out_specs=pl.BlockSpec((nb, fc_n), lambda i: (i, 0)),
        compiler_params=pltpu.CompilerParams(
            dimension_semantics=("parallel",),
            # resident footprint ~10 MiB at nb=256 / img_size=16; 48 MiB leaves
            # double-buffer headroom and stays inside v7x's 64 MiB physical VMEM.
            vmem_limit_bytes=48 * 1024 * 1024),
    )(x_flat, w_pack, b_pack)
    return out[:N, :latent]


# ------------------------------------------------------------------------ pure-JAX reference
def _reference_forward(params, x, label, args):
    if args.conditional:
        N, _, H, W = x.shape
        emb = params["emb"][label].reshape(N, 1, H, W)
        x = jnp.concatenate([emb, x], axis=1)
    h = x
    for l in range(4):
        h = jax.lax.conv_general_dilated(
            h, params[f"w{l + 1}"], window_strides=(2, 2),
            padding=((1, 1), (1, 1)),
            dimension_numbers=("NCHW", "OIHW", "NCHW"))
        h = h + params[f"b{l + 1}"][None, :, None, None]
        h = jnp.where(h > 0, h, LRELU_SLOPE * h)
    h = h.reshape(h.shape[0], -1)
    return h @ params["fc_w"].T + params["fc_b"]


def init_params(key, args):
    ks = jax.random.split(key, 12)
    c_in = args.channel + (1 if args.conditional else 0)
    chans = [c_in] + list(_DISC_CHANNELS)
    p = {"emb": jax.random.normal(ks[0], (args.n_classes, args.img_size ** 2), jnp.float32)}
    for l in range(4):
        p[f"w{l + 1}"] = 0.1 * jax.random.normal(
            ks[1 + 2 * l], (chans[l + 1], chans[l], 3, 3), jnp.float32)
        p[f"b{l + 1}"] = 0.05 * jax.random.normal(ks[2 + 2 * l], (chans[l + 1],), jnp.float32)
    ds = args.img_size // 2 ** 4
    p["fc_w"] = 0.05 * jax.random.normal(ks[9], (args.latent_dim, 128 * ds * ds), jnp.float32)
    p["fc_b"] = 0.05 * jax.random.normal(ks[10], (args.latent_dim,), jnp.float32)
    return p


# ------------------------------------------------------------------------------------ main
if __name__ == "__main__":
    class Args:
        conditional = True
        disable_sn = True          # spectral norm disabled (see TODO at top)
        channel = 3
        img_size = 16              # ds_size = img_size // 16 = 1
        n_classes = 4
        latent_dim = 16

    args = Args()
    key = jax.random.PRNGKey(0)
    kp, kx, kl = jax.random.split(key, 3)

    params = init_params(kp, args)
    N = 2
    x = jax.random.normal(kx, (N, args.channel, args.img_size, args.img_size), jnp.float32)
    label = jax.random.randint(kl, (N,), 0, args.n_classes)

    fwd = jax.jit(lambda p, xx, ll: discriminator_forward(p, xx, ll, args))
    out = jax.block_until_ready(fwd(params, x, label))

    ref = _reference_forward(params, x, label, args)
    rel_err = float(jnp.max(jnp.abs(out - ref)) / (jnp.max(jnp.abs(ref)) + 1e-8))

    assert out.shape == (N, args.latent_dim), out.shape
    assert bool(jnp.all(jnp.isfinite(out)))
    assert rel_err < 0.05, rel_err            # bf16 GEMM operands, f32 accumulation
    print("KERNEL_OK")
</pallas_src>

<mosaic_0001>
module attributes {stable_mosaic.version = 11 : i64} {
  func.func @_discriminator_kernel(%arg0: i32, %arg1: memref<2x1024xbf16, #tpu.memory_space<vmem>>, %arg2: memref<1024x2048xbf16, #tpu.memory_space<vmem>>, %arg3: memref<8x1024xf32, #tpu.memory_space<vmem>>, %arg4: memref<2x128xf32, #tpu.memory_space<vmem>>) attributes {dimension_semantics = [#tpu.dimension_semantics<parallel>], iteration_bounds = array<i64: 1>, scalar_prefetch = 0 : i64, scratch_operands = 0 : i64, tpu.core_type = #tpu.core_type<tc>, window_params = [{transform_indices = @transform_0, window_bounds = array<i64: 2, 1024>}, {pipeline_mode = #tpu.pipeline_mode<synchronous>, transform_indices = @transform_1, window_bounds = array<i64: 1024, 2048>}, {pipeline_mode = #tpu.pipeline_mode<synchronous>, transform_indices = @transform_2, window_bounds = array<i64: 8, 1024>}, {transform_indices = @transform_3, window_bounds = array<i64: 2, 128>}]} {
    %c0 = arith.constant 0 : index
    %c0_0 = arith.constant 0 : index
    %0 = vector.load %arg1[%c0, %c0_0] : memref<2x1024xbf16, #tpu.memory_space<vmem>>, vector<2x1024xbf16>
    %c0_1 = arith.constant 0 : index
    %c0_2 = arith.constant 0 : index
    %1 = vector.load %arg2[%c0_1, %c0_2] : memref<1024x2048xbf16, #tpu.memory_space<vmem>>, vector<1024x1024xbf16>
    %cst = arith.constant dense<0.000000e+00> : vector<2x1024xf32>
    %2 = tpu.matmul %0, %1, %cst {dimension_numbers = #tpu.dot_dimension_numbers<[1], [0], [0], [1], [0, 0, 1, 1], [], []>} : vector<2x1024xbf16>, vector<1024x1024xbf16>, vector<2x1024xf32> -> vector<2x1024xf32>
    %c0_3 = arith.constant 0 : index
    %c0_4 = arith.constant 0 : index
    %3 = vector.load %arg3[%c0_3, %c0_4] : memref<8x1024xf32, #tpu.memory_space<vmem>>, vector<1x1024xf32>
    %4 = vector.broadcast %3 : vector<1x1024xf32> to vector<2x1024xf32>
    %5 = arith.addf %2, %4 : vector<2x1024xf32>
    %cst_5 = arith.constant 0.000000e+00 : f32
    %6 = vector.broadcast %cst_5 : f32 to vector<2x1024xf32>
    %7 = arith.cmpf ogt, %5, %6 : vector<2x1024xf32>
    %cst_6 = arith.constant 2.000000e-01 : f32
    %8 = vector.broadcast %cst_6 : f32 to vector<2x1024xf32>
    %9 = arith.mulf %8, %5 : vector<2x1024xf32>
    %10 = arith.select %7, %5, %9 : vector<2x1024xi1>, vector<2x1024xf32>
    %11 = arith.truncf %10 : vector<2x1024xf32> to vector<2x1024xbf16>
    %c0_7 = arith.constant 0 : index
    %c1024 = arith.constant 1024 : index
    %12 = vector.load %arg2[%c0_7, %c1024] : memref<1024x2048xbf16, #tpu.memory_space<vmem>>, vector<1024x512xbf16>
    %cst_8 = arith.constant dense<0.000000e+00> : vector<2x512xf32>
    %13 = tpu.matmul %11, %12, %cst_8 {dimension_numbers = #tpu.dot_dimension_numbers<[1], [0], [0], [1], [0, 0, 1, 1], [], []>} : vector<2x1024xbf16>, vector<1024x512xbf16>, vector<2x512xf32> -> vector<2x512xf32>
    %c1 = arith.constant 1 : index
    %c0_9 = arith.constant 0 : index
    %14 = vector.load %arg3[%c1, %c0_9] : memref<8x1024xf32, #tpu.memory_space<vmem>>, vector<1x512xf32>
    %15 = vector.broadcast %14 : vector<1x512xf32> to vector<2x512xf32>
    %16 = arith.addf %13, %15 : vector<2x512xf32>
    %cst_10 = arith.constant 0.000000e+00 : f32
    %17 = vector.broadcast %cst_10 : f32 to vector<2x512xf32>
    %18 = arith.cmpf ogt, %16, %17 : vector<2x512xf32>
    %cst_11 = arith.constant 2.000000e-01 : f32
    %19 = vector.broadcast %cst_11 : f32 to vector<2x512xf32>
    %20 = arith.mulf %19, %16 : vector<2x512xf32>
    %21 = arith.select %18, %16, %20 : vector<2x512xi1>, vector<2x512xf32>
    %22 = arith.truncf %21 : vector<2x512xf32> to vector<2x512xbf16>
    %c0_12 = arith.constant 0 : index
    %c1536 = arith.constant 1536 : index
    %23 = vector.load %arg2[%c0_12, %c1536] : memref<1024x2048xbf16, #tpu.memory_space<vmem>>, vector<512x256xbf16>
    %cst_13 = arith.constant dense<0.000000e+00> : vector<2x256xf32>
    %24 = tpu.matmul %22, %23, %cst_13 {dimension_numbers = #tpu.dot_dimension_numbers<[1], [0], [0], [1], [0, 0, 1, 1], [], []>} : vector<2x512xbf16>, vector<512x256xbf16>, vector<2x256xf32> -> vector<2x256xf32>
    %c2 = arith.constant 2 : index
    %c0_14 = arith.constant 0 : index
    %25 = vector.load %arg3[%c2, %c0_14] : memref<8x1024xf32, #tpu.memory_space<vmem>>, vector<1x256xf32>
    %26 = vector.broadcast %25 : vector<1x256xf32> to vector<2x256xf32>
    %27 = arith.addf %24, %26 : vector<2x256xf32>
    %cst_15 = arith.constant 0.000000e+00 : f32
    %28 = vector.broadcast %cst_15 : f32 to vector<2x256xf32>
    %29 = arith.cmpf ogt, %27, %28 : vector<2x256xf32>
    %cst_16 = arith.constant 2.000000e-01 : f32
    %30 = vector.broadcast %cst_16 : f32 to vector<2x256xf32>
    %31 = arith.mulf %30, %27 : vector<2x256xf32>
    %32 = arith.select %29, %27, %31 : vector<2x256xi1>, vector<2x256xf32>
    %33 = arith.truncf %32 : vector<2x256xf32> to vector<2x256xbf16>
    %c0_17 = arith.constant 0 : index
    %c1792 = arith.constant 1792 : index
    %34 = vector.load %arg2[%c0_17, %c1792] : memref<1024x2048xbf16, #tpu.memory_space<vmem>>, vector<256x128xbf16>
    %cst_18 = arith.constant dense<0.000000e+00> : vector<2x128xf32>
    %35 = tpu.matmul %33, %34, %cst_18 {dimension_numbers = #tpu.dot_dimension_numbers<[1], [0], [0], [1], [0, 0, 1, 1], [], []>} : vector<2x256xbf16>, vector<256x128xbf16>, vector<2x128xf32> -> vector<2x128xf32>
    %c3 = arith.constant 3 : index
    %c0_19 = arith.constant 0 : index
    %36 = vector.load %arg3[%c3, %c0_19] : memref<8x1024xf32, #tpu.memory_space<vmem>>, vector<1x128xf32>
    %37 = vector.broadcast %36 : vector<1x128xf32> to vector<2x128xf32>
    %38 = arith.addf %35, %37 : vector<2x128xf32>
    %cst_20 = arith.constant 0.000000e+00 : f32
    %39 = vector.broadcast %cst_20 : f32 to vector<2x128xf32>
    %40 = arith.cmpf ogt, %38, %39 : vector<2x128xf32>
    %cst_21 = arith.constant 2.000000e-01 : f32
    %41 = vector.broadcast %cst_21 : f32 to vector<2x128xf32>
    %42 = arith.mulf %41, %38 : vector<2x128xf32>
    %43 = arith.select %40, %38, %42 : vector<2x128xi1>, vector<2x128xf32>
    %44 = arith.truncf %43 : vector<2x128xf32> to vector<2x128xbf16>
    %c0_22 = arith.constant 0 : index
    %c1920 = arith.constant 1920 : index
    %45 = vector.load %arg2[%c0_22, %c1920] : memref<1024x2048xbf16, #tpu.memory_space<vmem>>, vector<128x128xbf16>
    %cst_23 = arith.constant dense<0.000000e+00> : vector<2x128xf32>
    %46 = tpu.matmul %44, %45, %cst_23 {dimension_numbers = #tpu.dot_dimension_numbers<[1], [0], [0], [1], [0, 0, 1, 1], [], []>} : vector<2x128xbf16>, vector<128x128xbf16>, vector<2x128xf32> -> vector<2x128xf32>
    %c4 = arith.constant 4 : index
    %c0_24 = arith.constant 0 : index
    %47 = vector.load %arg3[%c4, %c0_24] : memref<8x1024xf32, #tpu.memory_space<vmem>>, vector<1x128xf32>
    %48 = vector.broadcast %47 : vector<1x128xf32> to vector<2x128xf32>
    %49 = arith.addf %46, %48 : vector<2x128xf32>
    %c0_25 = arith.constant 0 : index
    %c0_26 = arith.constant 0 : index
    %50 = vector.load %arg4[%c0_25, %c0_26] : memref<2x128xf32, #tpu.memory_space<vmem>>, vector<2x128xf32>
    tpu.vector_store %arg4[%c0_25, %c0_26], %49 {strides = array<i32>} : memref<2x128xf32, #tpu.memory_space<vmem>>, vector<2x128xf32>,
    return
  }
  func.func @transform_0(%arg0: i32) -> (i32, i32) {
    %c0_i32 = arith.constant 0 : i32
    %c0_i32_0 = arith.constant 0 : i32
    return %arg0, %c0_i32 : i32, i32
  }
  func.func @transform_1(%arg0: i32) -> (i32, i32) {
    %c0_i32 = arith.constant 0 : i32
    %c0_i32_0 = arith.constant 0 : i32
    %c0_i32_1 = arith.constant 0 : i32
    return %c0_i32, %c0_i32_0 : i32, i32
  }
  func.func @transform_2(%arg0: i32) -> (i32, i32) {
    %c0_i32 = arith.constant 0 : i32
    %c0_i32_0 = arith.constant 0 : i32
    %c0_i32_1 = arith.constant 0 : i32
    return %c0_i32, %c0_i32_0 : i32, i32
  }
  func.func @transform_3(%arg0: i32) -> (i32, i32) {
    %c0_i32 = arith.constant 0 : i32
    %c0_i32_0 = arith.constant 0 : i32
    return %arg0, %c0_i32 : i32, i32
  }
}

</mosaic_0001>

<llo_original>
// kernel: tile.18
$region0: #{tile.18}
  #allocation0 [shape = 's32[1]{0}', space=sflag, size = 0x4, scoped, tag = 'scoped memory for tile.18']
  %s0 = inlined_call_operand.vmem [shape: f32[16], index: 0, kind: input, shape index: {}]
  %s1 = inlined_call_operand.vmem [shape: f32[64,16], index: 1, kind: output, shape index: {}]
  // Predicated region
  $region2: #{tile.18} parent=0 // pred_check
    _
  $region3: #{tile.18} parent=0 // pred_check_branch
    %3 = sbr.rel (0) target = $region5
  $region4: #{tile.18} parent=0 // pred_region
    _
  $region5: #{tile.18} parent=0 // pred_fallthru
    _
  %v4 = vld [vmem:[%s0] ss:$0 sm:$0xff]
  %5 = vst [vmem:[%s1] sm:$0xff] %v4
  %s6 = scalar_lea.vmem %s1, 8
  %7 = vst [vmem:[%s6] sm:$0xff] %v4
  %s8 = scalar_lea.vmem %s1, 16
  %9 = vst [vmem:[%s8] sm:$0xff] %v4
  %s10 = scalar_lea.vmem %s1, 24
  %11 = vst [vmem:[%s10] sm:$0xff] %v4
  %s12 = scalar_lea.vmem %s1, 32
  %13 = vst [vmem:[%s12] sm:$0xff] %v4
  %s14 = scalar_lea.vmem %s1, 40
  %15 = vst [vmem:[%s14] sm:$0xff] %v4
  %s16 = scalar_lea.vmem %s1, 48
  %17 = vst [vmem:[%s16] sm:$0xff] %v4
  %s18 = scalar_lea.vmem %s1, 56
  %19 = vst [vmem:[%s18] sm:$0xff] %v4

// kernel: tile.23
$region0: #{tile.23}
  #allocation0 [shape = 's32[1]{0}', space=sflag, size = 0x4, scoped, tag = 'scoped memory for tile.23']
  %s0 = inlined_call_operand.vmem [shape: f32[32], index: 0, kind: input, shape index: {}]
  %s1 = inlined_call_operand.vmem [shape: f32[16,32], index: 1, kind: output, shape index: {}]
  // Predicated region
  $region2: #{tile.23} parent=0 // pred_check
    _
  $region3: #{tile.23} parent=0 // pred_check_branch
    %3 = sbr.rel (0) target = $region5
  $region4: #{tile.23} parent=0 // pred_region
    _
  $region5: #{tile.23} parent=0 // pred_fallthru
    _
  %v4 = vld [vmem:[%s0] ss:$0 sm:$0xff]
  %5 = vst [vmem:[%s1] sm:$0xff] %v4
  %s6 = scalar_lea.vmem %s1, 8
  %7 = vst [vmem:[%s6] sm:$0xff] %v4

// kernel: tile.24
$region0: #{tile.24}
  %s0 = inlined_call_operand.vmem [shape: f32[16,32], index: 0, kind: input, shape index: {}]
  %s1 = inlined_call_operand.vmem [shape: f32[512], index: 1, kind: output, shape index: {}]
  $region1: #{tile.24} parent=0
    #allocation0 [shape = 'u8[4096]{0}', space=vmem, size = 0x1000, scoped, tag = 'scoped mem for output reshape']
    %v2 = vld [vmem:[%s0] ss:$4 sm:$0xf]
    %vm3 = vcmask 261120
    %4 = vst.msk [vmem:[#allocation0] sm:$0xf] %vm3, %v2
    %s5 = scalar_lea.vmem %s0, 3
    %v6 = vld [vmem:[%s5] ss:$4 sm:$0xf]
    %7 = vrot.lane.b32.xlu0 %v6, 96
    %v8 = vpop.permute.xlu0 %7
    %vm9 = vcmask 1048320
    %10 = vst.msk [vmem:[#allocation0] sm:$0xf] %vm9, %v8
    %s11 = scalar_lea.vmem %s0, 2
    %v12 = vld [vmem:[%s11] ss:$4 sm:$0xf]
    %13 = vrot.lane.b32.xlu0 %v12, 64
    %v14 = vpop.permute.xlu0 %13
    %vm15 = vcmask 785920
    %16 = vst.msk [vmem:[#allocation0] sm:$0xf] %vm15, %v14
    %s17 = scalar_lea.vmem %s0, 1
    %v18 = vld [vmem:[%s17] ss:$4 sm:$0xf]
    %19 = vrot.lane.b32.xlu0 %v18, 32
    %v20 = vpop.permute.xlu0 %19
    %vm21 = vcmask 523520
    %22 = vst.msk [vmem:[#allocation0] sm:$0xf] %vm21, %v20
    %s24 = sshll.u32 1, 4
    %s25 = ssub.s32 %s24, 1
    %v27 = vld [vmem:[#allocation0] sm:%s25]
    %s28 = sshll.u32 1, 4
    %s29 = ssub.s32 %s28, 1
    %30 = vst [vmem:[%s1] sm:%s29] %v27

// kernel: tile.28
$region0: #{tile.28}
  #allocation0 [shape = 's32[1]{0}', space=sflag, size = 0x4, scoped, tag = 'scoped memory for tile.28']
  %s0 = inlined_call_operand.vmem [shape: f32[64], index: 0, kind: input, shape index: {}]
  %s1 = inlined_call_operand.vmem [shape: f32[4,64], index: 1, kind: output, shape index: {}]
  // Predicated region
  $region2: #{tile.28} parent=0 // pred_check
    _
  $region3: #{tile.28} parent=0 // pred_check_branch
    %3 = sbr.rel (0) target = $region5
  $region4: #{tile.28} parent=0 // pred_region
    _
  $region5: #{tile.28} parent=0 // pred_fallthru
    _
  %v4 = vld [vmem:[%s0] ss:$0 sm:$0xff]
  %5 = vst [vmem:[%s1] sm:$0xf] %v4

// kernel: tile.29
$region0: #{tile.29}
  %s0 = inlined_call_operand.vmem [shape: f32[4,64], index: 0, kind: input, shape index: {}]
  %s1 = inlined_call_operand.vmem [shape: f32[256], index: 1, kind: output, shape index: {}]
  $region1: #{tile.29} parent=0
    #allocation0 [shape = 'u8[4096]{0}', space=vmem, size = 0x1000, scoped, tag = 'scoped mem for output reshape']
    #allocation1 [shape = 'u8[4096]{0}', space=vmem, size = 0x1000, scoped, tag = 'scoped mem for input reshape']
    %s3 = sshll.u32 1, 4
    %s4 = ssub.s32 %s3, 1
    %v5 = vld [vmem:[%s0] sm:%s4]
    %6 = vst [vmem:[#allocation1] sm:%s4] %v5
    %s7 = smov 3
    %v8 = vld [vmem:[#allocation1] ss:$2 sm:%s7]
    %vm9 = vcmask 523264
    %10 = vst.msk [vmem:[#allocation0] sm:$0x3] %vm9, %v8
    %s11 = scalar_lea.vmem [#allocation1], 1
    %s12 = smov 3
    %v13 = vld [vmem:[%s11] ss:$2 sm:%s12]
    %14 = vrot.lane.b32.xlu0 %v13, 64
    %v15 = vpop.permute.xlu0 %14
    %vm16 = vcmask 1048064
    %17 = vst.msk [vmem:[#allocation0] sm:$0x3] %vm16, %v15
    %s19 = sshll.u32 1, 2
    %s20 = ssub.s32 %s19, 1
    %v22 = vld [vmem:[#allocation0] sm:%s20]
    %s23 = sshll.u32 1, 2
    %s24 = ssub.s32 %s23, 1
    %25 = vst [vmem:[%s1] sm:%s24] %v22

// kernel: _lambda_.1
$region0: #{_lambda_.1}
  #allocation0 [shape = 'u32[]', space=smem, size = 0x4, offset = 0x4, fixed_abs, tag = 'smem constant byte address 0x4 - core index']
  #allocation1 [shape = 'u32[144,128]{1,0:T(1,128)}', space=vmem, size = 0x12000, scoped, tag = 'internal scratch']
  %s0 = inlined_call_operand.vmem [shape: bf16[2,1024], index: 0, kind: input, shape index: {}]
  %s1 = inlined_call_operand.vmem [shape: bf16[1024,2048], index: 1, kind: input, shape index: {}]
  %s2 = inlined_call_operand.vmem [shape: f32[8,1024], index: 2, kind: input, shape index: {}]
  %s3 = inlined_call_operand.hbm [shape: f32[2,128], index: 3, kind: output, shape index: {}]
  %s4 = sld [smem:[#allocation0]]
  $region22: #{_lambda_.1} parent=0
    _
  %s6 = ssub.s32 1, %s4
  %s7 = scalar_select 0, %s6, %s4
  $region1: #{_lambda_.1} parent=0
    #allocation2 [shape = 'u8[1024]{0}', space=vmem, size = 0x400, scoped, tag = 'output window, operand 0, single buffered']
    #allocation3 [shape = 's32[1]{0}', space=sflag, size = 0x4, scoped, tag = 'scoped memory for _lambda_.1']
    %8 = vsyncpa [#allocation3], 0
    // Predicated region
    $region2: #{_lambda_.1} parent=1 // pred_check
      _
    $region3: #{_lambda_.1} parent=1 // pred_check_branch
      %10 = sbr.rel (0) target = $region5
    $region4: #{_lambda_.1} parent=1 // pred_region
      _
    $region5: #{_lambda_.1} parent=1 // pred_fallthru
      _
    // Predicated region
    $region6: #{_lambda_.1} parent=1 // pred_check
      _
    $region7: #{_lambda_.1} parent=1 // pred_check_branch
      %12 = sbr.rel (0) target = $region9
    $region8: #{_lambda_.1} parent=1 // pred_region
      _
    $region9: #{_lambda_.1} parent=1 // pred_fallthru
      _
    // Predicated region
    $region10: #{_lambda_.1} parent=1 // pred_check
      _
    $region11: #{_lambda_.1} parent=1 // pred_check_branch
      %14 = sbr.rel (0) target = $region13
    $region12: #{_lambda_.1} parent=1 // pred_region
      _
    $region13: #{_lambda_.1} parent=1 // pred_fallthru
      _
    %v16 = vld [vmem:[%s0] sm:$0xff]
    %v17 = vld [vmem:[%s1] sm:$0xff]
    %v18 = vld [vmem:[%s1 + $0x8] sm:$0xff]
    %v19 = vld [vmem:[%s1 + $0x10] sm:$0xff]
    %v20 = vld [vmem:[%s1 + $0x18] sm:$0xff]
    %v21 = vld [vmem:[%s1 + $0x40] sm:$0xff]
    %v22 = vld [vmem:[%s1 + $0x48] sm:$0xff]
    %v23 = vld [vmem:[%s1 + $0x50] sm:$0xff]
    %v24 = vld [vmem:[%s1 + $0x58] sm:$0xff]
    %v25 = vld [vmem:[%s1 + $0x80] sm:$0xff]
    %v26 = vld [vmem:[%s1 + $0x88] sm:$0xff]
    %v27 = vld [vmem:[%s1 + $0x90] sm:$0xff]
    %v28 = vld [vmem:[%s1 + $0x98] sm:$0xff]
    %v29 = vld [vmem:[%s1 + $0xc0] sm:$0xff]
    %v30 = vld [vmem:[%s1 + $0xc8] sm:$0xff]
    %v31 = vld [vmem:[%s1 + $0xd0] sm:$0xff]
    %v32 = vld [vmem:[%s1 + $0xd8] sm:$0xff]
    %v33 = vld [vmem:[%s1 + $0x100] sm:$0xff]
    %v34 = vld [vmem:[%s1 + $0x108] sm:$0xff]
    %v35 = vld [vmem:[%s1 + $0x110] sm:$0xff]
    %v36 = vld [vmem:[%s1 + $0x118] sm:$0xff]
    %v37 = vld [vmem:[%s1 + $0x140] sm:$0xff]
    %v38 = vld [vmem:[%s1 + $0x148] sm:$0xff]
    %v39 = vld [vmem:[%s1 + $0x150] sm:$0xff]
    %v40 = vld [vmem:[%s1 + $0x158] sm:$0xff]
    %v41 = vld [vmem:[%s1 + $0x180] sm:$0xff]
    %v42 = vld [vmem:[%s1 + $0x188] sm:$0xff]
    %v43 = vld [vmem:[%s1 + $0x190] sm:$0xff]
    %v44 = vld [vmem:[%s1 + $0x198] sm:$0xff]
    %v45 = vld [vmem:[%s1 + $0x1c0] sm:$0xff]
    %v46 = vld [vmem:[%s1 + $0x1c8] sm:$0xff]
    %v47 = vld [vmem:[%s1 + $0x1d0] sm:$0xff]
    %v48 = vld [vmem:[%s1 + $0x1d8] sm:$0xff]
    %v49 = vld [vmem:[%s1 + $0x200] sm:$0xff]
    %v50 = vld [vmem:[%s1 + $0x208] sm:$0xff]
    %v51 = vld [vmem:[%s1 + $0x210] sm:$0xff]
    %v52 = vld [vmem:[%s1 + $0x218] sm:$0xff]
    %v53 = vld [vmem:[%s1 + $0x240] sm:$0xff]
    %v54 = vld [vmem:[%s1 + $0x248] sm:$0xff]
    %v55 = vld [vmem:[%s1 + $0x250] sm:$0xff]
    %v56 = vld [vmem:[%s1 + $0x258] sm:$0xff]
    %v57 = vld [vmem:[%s1 + $0x280] sm:$0xff]
    %v58 = vld [vmem:[%s1 + $0x288] sm:$0xff]
    %v59 = vld [vmem:[%s1 + $0x290] sm:$0xff]
    %v60 = vld [vmem:[%s1 + $0x298] sm:$0xff]
    %v61 = vld [vmem:[%s1 + $0x2c0] sm:$0xff]
    %v62 = vld [vmem:[%s1 + $0x2c8] sm:$0xff]
    %v63 = vld [vmem:[%s1 + $0x2d0] sm:$0xff]
    %v64 = vld [vmem:[%s1 + $0x2d8] sm:$0xff]
    %v65 = vld [vmem:[%s1 + $0x300] sm:$0xff]
    %v66 = vld [vmem:[%s1 + $0x308] sm:$0xff]
    %v67 = vld [vmem:[%s1 + $0x310] sm:$0xff]
    %v68 = vld [vmem:[%s1 + $0x318] sm:$0xff]
    %v69 = vld [vmem:[%s1 + $0x340] sm:$0xff]
    %v70 = vld [vmem:[%s1 + $0x348] sm:$0xff]
    %v71 = vld [vmem:[%s1 + $0x350] sm:$0xff]
    %v72 = vld [vmem:[%s1 + $0x358] sm:$0xff]
    %v73 = vld [vmem:[%s1 + $0x380] sm:$0xff]
    %v74 = vld [vmem:[%s1 + $0x388] sm:$0xff]
    %v75 = vld [vmem:[%s1 + $0x390] sm:$0xff]
    %v76 = vld [vmem:[%s1 + $0x398] sm:$0xff]
    %v77 = vld [vmem:[%s1 + $0x3c0] sm:$0xff]
    %v78 = vld [vmem:[%s1 + $0x3c8] sm:$0xff]
    %v79 = vld [vmem:[%s1 + $0x3d0] sm:$0xff]
    %v80 = vld [vmem:[%s1 + $0x3d8] sm:$0xff]
    %v81 = vld [vmem:[%s1 + $0x400] sm:$0xff]
    %v82 = vld [vmem:[%s1 + $0x408] sm:$0xff]
    %v83 = vld [vmem:[%s1 + $0x410] sm:$0xff]
    %v84 = vld [vmem:[%s1 + $0x418] sm:$0xff]
    %v85 = vld [vmem:[%s1 + $0x440] sm:$0xff]
    %v86 = vld [vmem:[%s1 + $0x448] sm:$0xff]
    %v87 = vld [vmem:[%s1 + $0x450] sm:$0xff]
    %v88 = vld [vmem:[%s1 + $0x458] sm:$0xff]
    %v89 = vld [vmem:[%s1 + $0x480] sm:$0xff]
    %v90 = vld [vmem:[%s1 + $0x488] sm:$0xff]
    %v91 = vld [vmem:[%s1 + $0x490] sm:$0xff]
    %v92 = vld [vmem:[%s1 + $0x498] sm:$0xff]
    %v93 = vld [vmem:[%s1 + $0x4c0] sm:$0xff]
    %v94 = vld [vmem:[%s1 + $0x4c8] sm:$0xff]
    %v95 = vld [vmem:[%s1 + $0x4d0] sm:$0xff]
    %v96 = vld [vmem:[%s1 + $0x4d8] sm:$0xff]
    %v97 = vld [vmem:[%s1 + $0x500] sm:$0xff]
    %v98 = vld [vmem:[%s1 + $0x508] sm:$0xff]
    %v99 = vld [vmem:[%s1 + $0x510] sm:$0xff]
    %v100 = vld [vmem:[%s1 + $0x518] sm:$0xff]
    %v101 = vld [vmem:[%s1 + $0x540] sm:$0xff]
    %v102 = vld [vmem:[%s1 + $0x548] sm:$0xff]
    %v103 = vld [vmem:[%s1 + $0x550] sm:$0xff]
    %v104 = vld [vmem:[%s1 + $0x558] sm:$0xff]
    %v105 = vld [vmem:[%s1 + $0x580] sm:$0xff]
    %v106 = vld [vmem:[%s1 + $0x588] sm:$0xff]
    %v107 = vld [vmem:[%s1 + $0x590] sm:$0xff]
    %v108 = vld [vmem:[%s1 + $0x598] sm:$0xff]
    %v109 = vld [vmem:[%s1 + $0x5c0] sm:$0xff]
    %v110 = vld [vmem:[%s1 + $0x5c8] sm:$0xff]
    %v111 = vld [vmem:[%s1 + $0x5d0] sm:$0xff]
    %v112 = vld [vmem:[%s1 + $0x5d8] sm:$0xff]
    %v113 = vld [vmem:[%s1 + $0x600] sm:$0xff]
    %v114 = vld [vmem:[%s1 + $0x608] sm:$0xff]
    %v115 = vld [vmem:[%s1 + $0x610] sm:$0xff]
    %v116 = vld [vmem:[%s1 + $0x618] sm:$0xff]
    %v117 = vld [vmem:[%s1 + $0x640] sm:$0xff]
    %v118 = vld [vmem:[%s1 + $0x648] sm:$0xff]
    %v119 = vld [vmem:[%s1 + $0x650] sm:$0xff]
    %v120 = vld [vmem:[%s1 + $0x658] sm:$0xff]
    %v121 = vld [vmem:[%s1 + $0x680] sm:$0xff]
    %v122 = vld [vmem:[%s1 + $0x688] sm:$0xff]
    %v123 = vld [vmem:[%s1 + $0x690] sm:$0xff]
    %v124 = vld [vmem:[%s1 + $0x698] sm:$0xff]
    %v125 = vld [vmem:[%s1 + $0x6c0] sm:$0xff]
    %v126 = vld [vmem:[%s1 + $0x6c8] sm:$0xff]
    %v127 = vld [vmem:[%s1 + $0x6d0] sm:$0xff]
    %v128 = vld [vmem:[%s1 + $0x6d8] sm:$0xff]
    %v129 = vld [vmem:[%s1 + $0x700] sm:$0xff]
    %v130 = vld [vmem:[%s1 + $0x708] sm:$0xff]
    %v131 = vld [vmem:[%s1 + $0x710] sm:$0xff]
    %v132 = vld [vmem:[%s1 + $0x718] sm:$0xff]
    %v133 = vld [vmem:[%s1 + $0x740] sm:$0xff]
    %v134 = vld [vmem:[%s1 + $0x748] sm:$0xff]
    %v135 = vld [vmem:[%s1 + $0x750] sm:$0xff]
    %v136 = vld [vmem:[%s1 + $0x758] sm:$0xff]
    %v137 = vld [vmem:[%s1 + $0x780] sm:$0xff]
    %v138 = vld [vmem:[%s1 + $0x788] sm:$0xff]
    %v139 = vld [vmem:[%s1 + $0x790] sm:$0xff]
    %v140 = vld [vmem:[%s1 + $0x798] sm:$0xff]
    %v141 = vld [vmem:[%s1 + $0x7c0] sm:$0xff]
    %v142 = vld [vmem:[%s1 + $0x7c8] sm:$0xff]
    %v143 = vld [vmem:[%s1 + $0x7d0] sm:$0xff]
    %v144 = vld [vmem:[%s1 + $0x7d8] sm:$0xff]
    %v145 = vld [vmem:[%s1 + $0x800] sm:$0xff]
    %v146 = vld [vmem:[%s1 + $0x808] sm:$0xff]
    %v147 = vld [vmem:[%s1 + $0x810] sm:$0xff]
    %v148 = vld [vmem:[%s1 + $0x818] sm:$0xff]
    %v149 = vld [vmem:[%s1 + $0x840] sm:$0xff]
    %v150 = vld [vmem:[%s1 + $0x848] sm:$0xff]
    %v151 = vld [vmem:[%s1 + $0x850] sm:$0xff]
    %v152 = vld [vmem:[%s1 + $0x858] sm:$0xff]
    %v153 = vld [vmem:[%s1 + $0x880] sm:$0xff]
    %v154 = vld [vmem:[%s1 + $0x888] sm:$0xff]
    %v155 = vld [vmem:[%s1 + $0x890] sm:$0xff]
    %v156 = vld [vmem:[%s1 + $0x898] sm:$0xff]
    %v157 = vld [vmem:[%s1 + $0x8c0] sm:$0xff]
    %v158 = vld [vmem:[%s1 + $0x8c8] sm:$0xff]
    %v159 = vld [vmem:[%s1 + $0x8d0] sm:$0xff]
    %v160 = vld [vmem:[%s1 + $0x8d8] sm:$0xff]
    %v161 = vld [vmem:[%s1 + $0x900] sm:$0xff]
    %v162 = vld [vmem:[%s1 + $0x908] sm:$0xff]
    %v163 = vld [vmem:[%s1 + $0x910] sm:$0xff]
    %v164 = vld [vmem:[%s1 + $0x918] sm:$0xff]
    %v165 = vld [vmem:[%s1 + $0x940] sm:$0xff]
    %v166 = vld [vmem:[%s1 + $0x948] sm:$0xff]
    %v167 = vld [vmem:[%s1 + $0x950] sm:$0xff]
    %v168 = vld [vmem:[%s1 + $0x958] sm:$0xff]
    %v169 = vld [vmem:[%s1 + $0x980] sm:$0xff]
    %v170 = vld [vmem:[%s1 + $0x988] sm:$0xff]
    %v171 = vld [vmem:[%s1 + $0x990] sm:$0xff]
    %v172 = vld [vmem:[%s1 + $0x998] sm:$0xff]
    %v173 = vld [vmem:[%s1 + $0x9c0] sm:$0xff]
    %v174 = vld [vmem:[%s1 + $0x9c8] sm:$0xff]
    %v175 = vld [vmem:[%s1 + $0x9d0] sm:$0xff]
    %v176 = vld [vmem:[%s1 + $0x9d8] sm:$0xff]
    %v177 = vld [vmem:[%s1 + $0xa00] sm:$0xff]
    %v178 = vld [vmem:[%s1 + $0xa08] sm:$0xff]
    %v179 = vld [vmem:[%s1 + $0xa10] sm:$0xff]
    %v180 = vld [vmem:[%s1 + $0xa18] sm:$0xff]
    %v181 = vld [vmem:[%s1 + $0xa40] sm:$0xff]
    %v182 = vld [vmem:[%s1 + $0xa48] sm:$0xff]
    %v183 = vld [vmem:[%s1 + $0xa50] sm:$0xff]
    %v184 = vld [vmem:[%s1 + $0xa58] sm:$0xff]
    %v185 = vld [vmem:[%s1 + $0xa80] sm:$0xff]
    %v186 = vld [vmem:[%s1 + $0xa88] sm:$0xff]
    %v187 = vld [vmem:[%s1 + $0xa90] sm:$0xff]
    %v188 = vld [vmem:[%s1 + $0xa98] sm:$0xff]
    %v189 = vld [vmem:[%s1 + $0xac0] sm:$0xff]
    %v190 = vld [vmem:[%s1 + $0xac8] sm:$0xff]
    %v191 = vld [vmem:[%s1 + $0xad0] sm:$0xff]
    %v192 = vld [vmem:[%s1 + $0xad8] sm:$0xff]
    %v193 = vld [vmem:[%s1 + $0xb00] sm:$0xff]
    %v194 = vld [vmem:[%s1 + $0xb08] sm:$0xff]
    %v195 = vld [vmem:[%s1 + $0xb10] sm:$0xff]
    %v196 = vld [vmem:[%s1 + $0xb18] sm:$0xff]
    %v197 = vld [vmem:[%s1 + $0xb40] sm:$0xff]
    %v198 = vld [vmem:[%s1 + $0xb48] sm:$0xff]
    %v199 = vld [vmem:[%s1 + $0xb50] sm:$0xff]
    %v200 = vld [vmem:[%s1 + $0xb58] sm:$0xff]
    %v201 = vld [vmem:[%s1 + $0xb80] sm:$0xff]
    %v202 = vld [vmem:[%s1 + $0xb88] sm:$0xff]
    %v203 = vld [vmem:[%s1 + $0xb90] sm:$0xff]
    %v204 = vld [vmem:[%s1 + $0xb98] sm:$0xff]
    %v205 = vld [vmem:[%s1 + $0xbc0] sm:$0xff]
    %v206 = vld [vmem:[%s1 + $0xbc8] sm:$0xff]
    %v207 = vld [vmem:[%s1 + $0xbd0] sm:$0xff]
    %v208 = vld [vmem:[%s1 + $0xbd8] sm:$0xff]
    %v209 = vld [vmem:[%s1 + $0xc00] sm:$0xff]
    %v210 = vld [vmem:[%s1 + $0xc08] sm:$0xff]
    %v211 = vld [vmem:[%s1 + $0xc10] sm:$0xff]
    %v212 = vld [vmem:[%s1 + $0xc18] sm:$0xff]
    %v213 = vld [vmem:[%s1 + $0xc40] sm:$0xff]
    %v214 = vld [vmem:[%s1 + $0xc48] sm:$0xff]
    %v215 = vld [vmem:[%s1 + $0xc50] sm:$0xff]
    %v216 = vld [vmem:[%s1 + $0xc58] sm:$0xff]
    %v217 = vld [vmem:[%s1 + $0xc80] sm:$0xff]
    %v218 = vld [vmem:[%s1 + $0xc88] sm:$0xff]
    %v219 = vld [vmem:[%s1 + $0xc90] sm:$0xff]
    %v220 = vld [vmem:[%s1 + $0xc98] sm:$0xff]
    %v221 = vld [vmem:[%s1 + $0xcc0] sm:$0xff]
    %v222 = vld [vmem:[%s1 + $0xcc8] sm:$0xff]
    %v223 = vld [vmem:[%s1 + $0xcd0] sm:$0xff]
    %v224 = vld [vmem:[%s1 + $0xcd8] sm:$0xff]
    %v225 = vld [vmem:[%s1 + $0xd00] sm:$0xff]
    %v226 = vld [vmem:[%s1 + $0xd08] sm:$0xff]
    %v227 = vld [vmem:[%s1 + $0xd10] sm:$0xff]
    %v228 = vld [vmem:[%s1 + $0xd18] sm:$0xff]
    %v229 = vld [vmem:[%s1 + $0xd40] sm:$0xff]
    %v230 = vld [vmem:[%s1 + $0xd48] sm:$0xff]
    %v231 = vld [vmem:[%s1 + $0xd50] sm:$0xff]
    %v232 = vld [vmem:[%s1 + $0xd58] sm:$0xff]
    %v233 = vld [vmem:[%s1 + $0xd80] sm:$0xff]
    %v234 = vld [vmem:[%s1 + $0xd88] sm:$0xff]
    %v235 = vld [vmem:[%s1 + $0xd90] sm:$0xff]
    %v236 = vld [vmem:[%s1 + $0xd98] sm:$0xff]
    %v237 = vld [vmem:[%s1 + $0xdc0] sm:$0xff]
    %v238 = vld [vmem:[%s1 + $0xdc8] sm:$0xff]
    %v239 = vld [vmem:[%s1 + $0xdd0] sm:$0xff]
    %v240 = vld [vmem:[%s1 + $0xdd8] sm:$0xff]
    %v241 = vld [vmem:[%s1 + $0xe00] sm:$0xff]
    %v242 = vld [vmem:[%s1 + $0xe08] sm:$0xff]
    %v243 = vld [vmem:[%s1 + $0xe10] sm:$0xff]
    %v244 = vld [vmem:[%s1 + $0xe18] sm:$0xff]
    %v245 = vld [vmem:[%s1 + $0xe40] sm:$0xff]
    %v246 = vld [vmem:[%s1 + $0xe48] sm:$0xff]
    %v247 = vld [vmem:[%s1 + $0xe50] sm:$0xff]
    %v248 = vld [vmem:[%s1 + $0xe58] sm:$0xff]
    %v249 = vld [vmem:[%s1 + $0xe80] sm:$0xff]
    %v250 = vld [vmem:[%s1 + $0xe88] sm:$0xff]
    %v251 = vld [vmem:[%s1 + $0xe90] sm:$0xff]
    %v252 = vld [vmem:[%s1 + $0xe98] sm:$0xff]
    %v253 = vld [vmem:[%s1 + $0xec0] sm:$0xff]
    %v254 = vld [vmem:[%s1 + $0xec8] sm:$0xff]
    %v255 = vld [vmem:[%s1 + $0xed0] sm:$0xff]
    %v256 = vld [vmem:[%s1 + $0xed8] sm:$0xff]
    %v257 = vld [vmem:[%s1 + $0xf00] sm:$0xff]
    %v258 = vld [vmem:[%s1 + $0xf08] sm:$0xff]
    %v259 = vld [vmem:[%s1 + $0xf10] sm:$0xff]
    %v260 = vld [vmem:[%s1 + $0xf18] sm:$0xff]
    %v261 = vld [vmem:[%s1 + $0xf40] sm:$0xff]
    %v262 = vld [vmem:[%s1 + $0xf48] sm:$0xff]
    %v263 = vld [vmem:[%s1 + $0xf50] sm:$0xff]
    %v264 = vld [vmem:[%s1 + $0xf58] sm:$0xff]
    %v265 = vld [vmem:[%s1 + $0xf80] sm:$0xff]
    %v266 = vld [vmem:[%s1 + $0xf88] sm:$0xff]
    %v267 = vld [vmem:[%s1 + $0xf90] sm:$0xff]
    %v268 = vld [vmem:[%s1 + $0xf98] sm:$0xff]
    %v269 = vld [vmem:[%s1 + $0xfc0] sm:$0xff]
    %v270 = vld [vmem:[%s1 + $0xfc8] sm:$0xff]
    %v271 = vld [vmem:[%s1 + $0xfd0] sm:$0xff]
    %v272 = vld [vmem:[%s1 + $0xfd8] sm:$0xff]
    %v273 = vld [vmem:[%s1 + $0x1000] sm:$0xff]
    %v274 = vld [vmem:[%s1 + $0x1008] sm:$0xff]
    %v275 = vld [vmem:[%s1 + $0x1010] sm:$0xff]
    %v276 = vld [vmem:[%s1 + $0x1018] sm:$0xff]
    %v277 = vld [vmem:[%s1 + $0x1040] sm:$0xff]
    %v278 = vld [vmem:[%s1 + $0x1048] sm:$0xff]
    %v279 = vld [vmem:[%s1 + $0x1050] sm:$0xff]
    %v280 = vld [vmem:[%s1 + $0x1058] sm:$0xff]
    %v281 = vld [vmem:[%s1 + $0x1080] sm:$0xff]
    %v282 = vld [vmem:[%s1 + $0x1088] sm:$0xff]
    %v283 = vld [vmem:[%s1 + $0x1090] sm:$0xff]
    %v284 = vld [vmem:[%s1 + $0x1098] sm:$0xff]
    %v285 = vld [vmem:[%s1 + $0x10c0] sm:$0xff]
    %v286 = vld [vmem:[%s1 + $0x10c8] sm:$0xff]
    %v287 = vld [vmem:[%s1 + $0x10d0] sm:$0xff]
    %v288 = vld [vmem:[%s1 + $0x10d8] sm:$0xff]
    %v289 = vld [vmem:[%s1 + $0x1100] sm:$0xff]
    %v290 = vld [vmem:[%s1 + $0x1108] sm:$0xff]
    %v291 = vld [vmem:[%s1 + $0x1110] sm:$0xff]
    %v292 = vld [vmem:[%s1 + $0x1118] sm:$0xff]
    %v293 = vld [vmem:[%s1 + $0x1140] sm:$0xff]
    %v294 = vld [vmem:[%s1 + $0x1148] sm:$0xff]
    %v295 = vld [vmem:[%s1 + $0x1150] sm:$0xff]
    %v296 = vld [vmem:[%s1 + $0x1158] sm:$0xff]
    %v297 = vld [vmem:[%s1 + $0x1180] sm:$0xff]
    %v298 = vld [vmem:[%s1 + $0x1188] sm:$0xff]
    %v299 = vld [vmem:[%s1 + $0x1190] sm:$0xff]
    %v300 = vld [vmem:[%s1 + $0x1198] sm:$0xff]
    %v301 = vld [vmem:[%s1 + $0x11c0] sm:$0xff]
    %v302 = vld [vmem:[%s1 + $0x11c8] sm:$0xff]
    %v303 = vld [vmem:[%s1 + $0x11d0] sm:$0xff]
    %v304 = vld [vmem:[%s1 + $0x11d8] sm:$0xff]
    %v305 = vld [vmem:[%s1 + $0x1200] sm:$0xff]
    %v306 = vld [vmem:[%s1 + $0x1208] sm:$0xff]
    %v307 = vld [vmem:[%s1 + $0x1210] sm:$0xff]
    %v308 = vld [vmem:[%s1 + $0x1218] sm:$0xff]
    %v309 = vld [vmem:[%s1 + $0x1240] sm:$0xff]
    %v310 = vld [vmem:[%s1 + $0x1248] sm:$0xff]
    %v311 = vld [vmem:[%s1 + $0x1250] sm:$0xff]
    %v312 = vld [vmem:[%s1 + $0x1258] sm:$0xff]
    %v313 = vld [vmem:[%s1 + $0x1280] sm:$0xff]
    %v314 = vld [vmem:[%s1 + $0x1288] sm:$0xff]
    %v315 = vld [vmem:[%s1 + $0x1290] sm:$0xff]
    %v316 = vld [vmem:[%s1 + $0x1298] sm:$0xff]
    %v317 = vld [vmem:[%s1 + $0x12c0] sm:$0xff]
    %v318 = vld [vmem:[%s1 + $0x12c8] sm:$0xff]
    %v319 = vld [vmem:[%s1 + $0x12d0] sm:$0xff]
    %v320 = vld [vmem:[%s1 + $0x12d8] sm:$0xff]
    %v321 = vld [vmem:[%s1 + $0x1300] sm:$0xff]
    %v322 = vld [vmem:[%s1 + $0x1308] sm:$0xff]
    %v323 = vld [vmem:[%s1 + $0x1310] sm:$0xff]
    %v324 = vld [vmem:[%s1 + $0x1318] sm:$0xff]
    %v325 = vld [vmem:[%s1 + $0x1340] sm:$0xff]
    %v326 = vld [vmem:[%s1 + $0x1348] sm:$0xff]
    %v327 = vld [vmem:[%s1 + $0x1350] sm:$0xff]
    %v328 = vld [vmem:[%s1 + $0x1358] sm:$0xff]
    %v329 = vld [vmem:[%s1 + $0x1380] sm:$0xff]
    %v330 = vld [vmem:[%s1 + $0x1388] sm:$0xff]
    %v331 = vld [vmem:[%s1 + $0x1390] sm:$0xff]
    %v332 = vld [vmem:[%s1 + $0x1398] sm:$0xff]
    %v333 = vld [vmem:[%s1 + $0x13c0] sm:$0xff]
    %v334 = vld [vmem:[%s1 + $0x13c8] sm:$0xff]
    %v335 = vld [vmem:[%s1 + $0x13d0] sm:$0xff]
    %v336 = vld [vmem:[%s1 + $0x13d8] sm:$0xff]
    %v337 = vld [vmem:[%s1 + $0x1400] sm:$0xff]
    %v338 = vld [vmem:[%s1 + $0x1408] sm:$0xff]
    %v339 = vld [vmem:[%s1 + $0x1410] sm:$0xff]
    %v340 = vld [vmem:[%s1 + $0x1418] sm:$0xff]
    %v341 = vld [vmem:[%s1 + $0x1440] sm:$0xff]
    %v342 = vld [vmem:[%s1 + $0x1448] sm:$0xff]
    %v343 = vld [vmem:[%s1 + $0x1450] sm:$0xff]
    %v344 = vld [vmem:[%s1 + $0x1458] sm:$0xff]
    %v345 = vld [vmem:[%s1 + $0x1480] sm:$0xff]
    %v346 = vld [vmem:[%s1 + $0x1488] sm:$0xff]
    %v347 = vld [vmem:[%s1 + $0x1490] sm:$0xff]
    %v348 = vld [vmem:[%s1 + $0x1498] sm:$0xff]
    %v349 = vld [vmem:[%s1 + $0x14c0] sm:$0xff]
    %v350 = vld [vmem:[%s1 + $0x14c8] sm:$0xff]
    %v351 = vld [vmem:[%s1 + $0x14d0] sm:$0xff]
    %v352 = vld [vmem:[%s1 + $0x14d8] sm:$0xff]
    %v353 = vld [vmem:[%s1 + $0x1500] sm:$0xff]
    %v354 = vld [vmem:[%s1 + $0x1508] sm:$0xff]
    %v355 = vld [vmem:[%s1 + $0x1510] sm:$0xff]
    %v356 = vld [vmem:[%s1 + $0x1518] sm:$0xff]
    %v357 = vld [vmem:[%s1 + $0x1540] sm:$0xff]
    %v358 = vld [vmem:[%s1 + $0x1548] sm:$0xff]
    %v359 = vld [vmem:[%s1 + $0x1550] sm:$0xff]
    %v360 = vld [vmem:[%s1 + $0x1558] sm:$0xff]
    %v361 = vld [vmem:[%s1 + $0x1580] sm:$0xff]
    %v362 = vld [vmem:[%s1 + $0x1588] sm:$0xff]
    %v363 = vld [vmem:[%s1 + $0x1590] sm:$0xff]
    %v364 = vld [vmem:[%s1 + $0x1598] sm:$0xff]
    %v365 = vld [vmem:[%s1 + $0x15c0] sm:$0xff]
    %v366 = vld [vmem:[%s1 + $0x15c8] sm:$0xff]
    %v367 = vld [vmem:[%s1 + $0x15d0] sm:$0xff]
    %v368 = vld [vmem:[%s1 + $0x15d8] sm:$0xff]
    %v369 = vld [vmem:[%s1 + $0x1600] sm:$0xff]
    %v370 = vld [vmem:[%s1 + $0x1608] sm:$0xff]
    %v371 = vld [vmem:[%s1 + $0x1610] sm:$0xff]
    %v372 = vld [vmem:[%s1 + $0x1618] sm:$0xff]
    %v373 = vld [vmem:[%s1 + $0x1640] sm:$0xff]
    %v374 = vld [vmem:[%s1 + $0x1648] sm:$0xff]
    %v375 = vld [vmem:[%s1 + $0x1650] sm:$0xff]
    %v376 = vld [vmem:[%s1 + $0x1658] sm:$0xff]
    %v377 = vld [vmem:[%s1 + $0x1680] sm:$0xff]
    %v378 = vld [vmem:[%s1 + $0x1688] sm:$0xff]
    %v379 = vld [vmem:[%s1 + $0x1690] sm:$0xff]
    %v380 = vld [vmem:[%s1 + $0x1698] sm:$0xff]
    %v381 = vld [vmem:[%s1 + $0x16c0] sm:$0xff]
    %v382 = vld [vmem:[%s1 + $0x16c8] sm:$0xff]
    %v383 = vld [vmem:[%s1 + $0x16d0] sm:$0xff]
    %v384 = vld [vmem:[%s1 + $0x16d8] sm:$0xff]
    %v385 = vld [vmem:[%s1 + $0x1700] sm:$0xff]
    %v386 = vld [vmem:[%s1 + $0x1708] sm:$0xff]
    %v387 = vld [vmem:[%s1 + $0x1710] sm:$0xff]
    %v388 = vld [vmem:[%s1 + $0x1718] sm:$0xff]
    %v389 = vld [vmem:[%s1 + $0x1740] sm:$0xff]
    %v390 = vld [vmem:[%s1 + $0x1748] sm:$0xff]
    %v391 = vld [vmem:[%s1 + $0x1750] sm:$0xff]
    %v392 = vld [vmem:[%s1 + $0x1758] sm:$0xff]
    %v393 = vld [vmem:[%s1 + $0x1780] sm:$0xff]
    %v394 = vld [vmem:[%s1 + $0x1788] sm:$0xff]
    %v395 = vld [vmem:[%s1 + $0x1790] sm:$0xff]
    %v396 = vld [vmem:[%s1 + $0x1798] sm:$0xff]
    %v397 = vld [vmem:[%s1 + $0x17c0] sm:$0xff]
    %v398 = vld [vmem:[%s1 + $0x17c8] sm:$0xff]
    %v399 = vld [vmem:[%s1 + $0x17d0] sm:$0xff]
    %v400 = vld [vmem:[%s1 + $0x17d8] sm:$0xff]
    %v401 = vld [vmem:[%s1 + $0x1800] sm:$0xff]
    %v402 = vld [vmem:[%s1 + $0x1808] sm:$0xff]
    %v403 = vld [vmem:[%s1 + $0x1810] sm:$0xff]
    %v404 = vld [vmem:[%s1 + $0x1818] sm:$0xff]
    %v405 = vld [vmem:[%s1 + $0x1840] sm:$0xff]
    %v406 = vld [vmem:[%s1 + $0x1848] sm:$0xff]
    %v407 = vld [vmem:[%s1 + $0x1850] sm:$0xff]
    %v408 = vld [vmem:[%s1 + $0x1858] sm:$0xff]
    %v409 = vld [vmem:[%s1 + $0x1880] sm:$0xff]
    %v410 = vld [vmem:[%s1 + $0x1888] sm:$0xff]
    %v411 = vld [vmem:[%s1 + $0x1890] sm:$0xff]
    %v412 = vld [vmem:[%s1 + $0x1898] sm:$0xff]
    %v413 = vld [vmem:[%s1 + $0x18c0] sm:$0xff]
    %v414 = vld [vmem:[%s1 + $0x18c8] sm:$0xff]
    %v415 = vld [vmem:[%s1 + $0x18d0] sm:$0xff]
    %v416 = vld [vmem:[%s1 + $0x18d8] sm:$0xff]
    %v417 = vld [vmem:[%s1 + $0x1900] sm:$0xff]
    %v418 = vld [vmem:[%s1 + $0x1908] sm:$0xff]
    %v419 = vld [vmem:[%s1 + $0x1910] sm:$0xff]
    %v420 = vld [vmem:[%s1 + $0x1918] sm:$0xff]
    %v421 = vld [vmem:[%s1 + $0x1940] sm:$0xff]
    %v422 = vld [vmem:[%s1 + $0x1948] sm:$0xff]
    %v423 = vld [vmem:[%s1 + $0x1950] sm:$0xff]
    %v424 = vld [vmem:[%s1 + $0x1958] sm:$0xff]
    %v425 = vld [vmem:[%s1 + $0x1980] sm:$0xff]
    %v426 = vld [vmem:[%s1 + $0x1988] sm:$0xff]
    %v427 = vld [vmem:[%s1 + $0x1990] sm:$0xff]
    %v428 = vld [vmem:[%s1 + $0x1998] sm:$0xff]
    %v429 = vld [vmem:[%s1 + $0x19c0] sm:$0xff]
    %v430 = vld [vmem:[%s1 + $0x19c8] sm:$0xff]
    %v431 = vld [vmem:[%s1 + $0x19d0] sm:$0xff]
    %v432 = vld [vmem:[%s1 + $0x19d8] sm:$0xff]
    %v433 = vld [vmem:[%s1 + $0x1a00] sm:$0xff]
    %v434 = vld [vmem:[%s1 + $0x1a08] sm:$0xff]
    %v435 = vld [vmem:[%s1 + $0x1a10] sm:$0xff]
    %v436 = vld [vmem:[%s1 + $0x1a18] sm:$0xff]
    %v437 = vld [vmem:[%s1 + $0x1a40] sm:$0xff]
    %v438 = vld [vmem:[%s1 + $0x1a48] sm:$0xff]
    %v439 = vld [vmem:[%s1 + $0x1a50] sm:$0xff]
    %v440 = vld [vmem:[%s1 + $0x1a58] sm:$0xff]
    %v441 = vld [vmem:[%s1 + $0x1a80] sm:$0xff]
    %v442 = vld [vmem:[%s1 + $0x1a88] sm:$0xff]
    %v443 = vld [vmem:[%s1 + $0x1a90] sm:$0xff]
    %v444 = vld [vmem:[%s1 + $0x1a98] sm:$0xff]
    %v445 = vld [vmem:[%s1 + $0x1ac0] sm:$0xff]
    %v446 = vld [vmem:[%s1 + $0x1ac8] sm:$0xff]
    %v447 = vld [vmem:[%s1 + $0x1ad0] sm:$0xff]
    %v448 = vld [vmem:[%s1 + $0x1ad8] sm:$0xff]
    %v449 = vld [vmem:[%s1 + $0x1b00] sm:$0xff]
    %v450 = vld [vmem:[%s1 + $0x1b08] sm:$0xff]
    %v451 = vld [vmem:[%s1 + $0x1b10] sm:$0xff]
    %v452 = vld [vmem:[%s1 + $0x1b18] sm:$0xff]
    %v453 = vld [vmem:[%s1 + $0x1b40] sm:$0xff]
    %v454 = vld [vmem:[%s1 + $0x1b48] sm:$0xff]
    %v455 = vld [vmem:[%s1 + $0x1b50] sm:$0xff]
    %v456 = vld [vmem:[%s1 + $0x1b58] sm:$0xff]
    %v457 = vld [vmem:[%s1 + $0x1b80] sm:$0xff]
    %v458 = vld [vmem:[%s1 + $0x1b88] sm:$0xff]
    %v459 = vld [vmem:[%s1 + $0x1b90] sm:$0xff]
    %v460 = vld [vmem:[%s1 + $0x1b98] sm:$0xff]
    %v461 = vld [vmem:[%s1 + $0x1bc0] sm:$0xff]
    %v462 = vld [vmem:[%s1 + $0x1bc8] sm:$0xff]
    %v463 = vld [vmem:[%s1 + $0x1bd0] sm:$0xff]
    %v464 = vld [vmem:[%s1 + $0x1bd8] sm:$0xff]
    %v465 = vld [vmem:[%s1 + $0x1c00] sm:$0xff]
    %v466 = vld [vmem:[%s1 + $0x1c08] sm:$0xff]
    %v467 = vld [vmem:[%s1 + $0x1c10] sm:$0xff]
    %v468 = vld [vmem:[%s1 + $0x1c18] sm:$0xff]
    %v469 = vld [vmem:[%s1 + $0x1c40] sm:$0xff]
    %v470 = vld [vmem:[%s1 + $0x1c48] sm:$0xff]
    %v471 = vld [vmem:[%s1 + $0x1c50] sm:$0xff]
    %v472 = vld [vmem:[%s1 + $0x1c58] sm:$0xff]
    %v473 = vld [vmem:[%s1 + $0x1c80] sm:$0xff]
    %v474 = vld [vmem:[%s1 + $0x1c88] sm:$0xff]
    %v475 = vld [vmem:[%s1 + $0x1c90] sm:$0xff]
    %v476 = vld [vmem:[%s1 + $0x1c98] sm:$0xff]
    %v477 = vld [vmem:[%s1 + $0x1cc0] sm:$0xff]
    %v478 = vld [vmem:[%s1 + $0x1cc8] sm:$0xff]
    %v479 = vld [vmem:[%s1 + $0x1cd0] sm:$0xff]
    %v480 = vld [vmem:[%s1 + $0x1cd8] sm:$0xff]
    %v481 = vld [vmem:[%s1 + $0x1d00] sm:$0xff]
    %v482 = vld [vmem:[%s1 + $0x1d08] sm:$0xff]
    %v483 = vld [vmem:[%s1 + $0x1d10] sm:$0xff]
    %v484 = vld [vmem:[%s1 + $0x1d18] sm:$0xff]
    %v485 = vld [vmem:[%s1 + $0x1d40] sm:$0xff]
    %v486 = vld [vmem:[%s1 + $0x1d48] sm:$0xff]
    %v487 = vld [vmem:[%s1 + $0x1d50] sm:$0xff]
    %v488 = vld [vmem:[%s1 + $0x1d58] sm:$0xff]
    %v489 = vld [vmem:[%s1 + $0x1d80] sm:$0xff]
    %v490 = vld [vmem:[%s1 + $0x1d88] sm:$0xff]
    %v491 = vld [vmem:[%s1 + $0x1d90] sm:$0xff]
    %v492 = vld [vmem:[%s1 + $0x1d98] sm:$0xff]
    %v493 = vld [vmem:[%s1 + $0x1dc0] sm:$0xff]
    %v494 = vld [vmem:[%s1 + $0x1dc8] sm:$0xff]
    %v495 = vld [vmem:[%s1 + $0x1dd0] sm:$0xff]
    %v496 = vld [vmem:[%s1 + $0x1dd8] sm:$0xff]
    %v497 = vld [vmem:[%s1 + $0x1e00] sm:$0xff]
    %v498 = vld [vmem:[%s1 + $0x1e08] sm:$0xff]
    %v499 = vld [vmem:[%s1 + $0x1e10] sm:$0xff]
    %v500 = vld [vmem:[%s1 + $0x1e18] sm:$0xff]
    %v501 = vld [vmem:[%s1 + $0x1e40] sm:$0xff]
    %v502 = vld [vmem:[%s1 + $0x1e48] sm:$0xff]
    %v503 = vld [vmem:[%s1 + $0x1e50] sm:$0xff]
    %v504 = vld [vmem:[%s1 + $0x1e58] sm:$0xff]
    %v505 = vld [vmem:[%s1 + $0x1e80] sm:$0xff]
    %v506 = vld [vmem:[%s1 + $0x1e88] sm:$0xff]
    %v507 = vld [vmem:[%s1 + $0x1e90] sm:$0xff]
    %v508 = vld [vmem:[%s1 + $0x1e98] sm:$0xff]
    %v509 = vld [vmem:[%s1 + $0x1ec0] sm:$0xff]
    %v510 = vld [vmem:[%s1 + $0x1ec8] sm:$0xff]
    %v511 = vld [vmem:[%s1 + $0x1ed0] sm:$0xff]
    %v512 = vld [vmem:[%s1 + $0x1ed8] sm:$0xff]
    %v513 = vld [vmem:[%s1 + $0x1f00] sm:$0xff]
    %v514 = vld [vmem:[%s1 + $0x1f08] sm:$0xff]
    %v515 = vld [vmem:[%s1 + $0x1f10] sm:$0xff]
    %v516 = vld [vmem:[%s1 + $0x1f18] sm:$0xff]
    %v517 = vld [vmem:[%s1 + $0x1f40] sm:$0xff]
    %v518 = vld [vmem:[%s1 + $0x1f48] sm:$0xff]
    %v519 = vld [vmem:[%s1 + $0x1f50] sm:$0xff]
    %v520 = vld [vmem:[%s1 + $0x1f58] sm:$0xff]
    %v521 = vld [vmem:[%s1 + $0x1f80] sm:$0xff]
    %v522 = vld [vmem:[%s1 + $0x1f88] sm:$0xff]
    %v523 = vld [vmem:[%s1 + $0x1f90] sm:$0xff]
    %v524 = vld [vmem:[%s1 + $0x1f98] sm:$0xff]
    %v525 = vld [vmem:[%s1 + $0x1fc0] sm:$0xff]
    %v526 = vld [vmem:[%s1 + $0x1fc8] sm:$0xff]
    %v527 = vld [vmem:[%s1 + $0x1fd0] sm:$0xff]
    %v528 = vld [vmem:[%s1 + $0x1fd8] sm:$0xff]
    %v529 = vld [vmem:[%s2] ss:$8 sm:$0xf]
    %v530 = vld [vmem:[%s2] ss:$8 sm:$0xf0]
    %v531 = vor.u32 %v529, %v530
    %v533 = vlaneseq
    %v534 = vshrl.u32 %v533, 7
    %v535 = vsub.s32 0, %v534
    %v536 = vrot.slane %v531, %v535
    %v537 = vlaneseq
    %v538 = vshrl.u32 %v537, 7
    %v539 = vsub.s32 1, %v538
    %v540 = vrot.slane %v531, %v539
    %v541 = vlaneseq
    %v542 = vshrl.u32 %v541, 7
    %v543 = vsub.s32 2, %v542
    %v544 = vrot.slane %v531, %v543
    %v545 = vlaneseq
    %v546 = vshrl.u32 %v545, 7
    %v547 = vsub.s32 3, %v546
    %v548 = vrot.slane %v531, %v547
    %v549 = vlaneseq
    %v550 = vshrl.u32 %v549, 7
    %v551 = vsub.s32 4, %v550
    %v552 = vrot.slane %v531, %v551
    %v553 = vlaneseq
    %v554 = vshrl.u32 %v553, 7
    %v555 = vsub.s32 5, %v554
    %v556 = vrot.slane %v531, %v555
    %v557 = vlaneseq
    %v558 = vshrl.u32 %v557, 7
    %v559 = vsub.s32 6, %v558
    %v560 = vrot.slane %v531, %v559
    %v561 = vlaneseq
    %v562 = vshrl.u32 %v561, 7
    %v563 = vsub.s32 7, %v562
    %v564 = vrot.slane %v531, %v563
    %v574 = vcombine.high %v16, %v16
    %v576 = vunpack.c.l.s4 1966171168
    %v577 = vunpack.c.0.s8 %v576
    %v578 = vlaneseq
    %v579 = vshrl.u32 %v578, 7
    %v580 = vsub.s32 %v577, %v579
    %v581 = vrot.slane %v16, %v580
    %v583 = vunpack.c.l.s4 1966171168
    %v584 = vunpack.c.0.s8 %v583
    %v585 = vlaneseq
    %v586 = vshrl.u32 %v585, 7
    %v587 = vsub.s32 %v584, %v586
    %v588 = vrot.slane %v574, %v587
    %v589 = vcombine.high %v581, %v581
    %v590 = vcombine.high %v588, %v588
    %v592 = vunpack.c.l.s4 1966171168
    %v593 = vunpack.c.0.s8 %v592
    %v594 = vlaneseq
    %v595 = vshrl.u32 %v594, 7
    %v596 = vsub.s32 %v593, %v595
    %v597 = vrot.slane %v581, %v596
    %v599 = vunpack.c.l.s4 1966171168
    %v600 = vunpack.c.0.s8 %v599
    %v601 = vlaneseq
    %v602 = vshrl.u32 %v601, 7
    %v603 = vsub.s32 %v600, %v602
    %v604 = vrot.slane %v588, %v603
    %v606 = vunpack.c.l.s4 1966171168
    %v607 = vunpack.c.0.s8 %v606
    %v608 = vlaneseq
    %v609 = vshrl.u32 %v608, 7
    %v610 = vsub.s32 %v607, %v609
    %v611 = vrot.slane %v589, %v610
    %v613 = vunpack.c.l.s4 1966171168
    %v614 = vunpack.c.0.s8 %v613
    %v615 = vlaneseq
    %v616 = vshrl.u32 %v615, 7
    %v617 = vsub.s32 %v614, %v616
    %v618 = vrot.slane %v590, %v617
    %v619 = vcombine.high %v597, %v597
    %v620 = vcombine.high %v604, %v604
    %v621 = vcombine.high %v611, %v611
    %v622 = vcombine.high %v618, %v618
    %v1143 = vunpack.c.l.b16 %v17
    %v1144 = vunpack.c.h.b16 %v17
    %v1145 = vunpack.c.l.b16 %v18
    %v1146 = vunpack.c.h.b16 %v18
    %v1147 = vunpack.c.l.b16 %v19
    %v1148 = vunpack.c.h.b16 %v19
    %v1149 = vunpack.c.l.b16 %v20
    %v1150 = vunpack.c.h.b16 %v20
    %v1151 = vunpack.c.l.b16 %v21
    %v1152 = vunpack.c.h.b16 %v21
    %v1153 = vunpack.c.l.b16 %v22
    %v1154 = vunpack.c.h.b16 %v22
    %v1155 = vunpack.c.l.b16 %v23
    %v1156 = vunpack.c.h.b16 %v23
    %v1157 = vunpack.c.l.b16 %v24
    %v1158 = vunpack.c.h.b16 %v24
    %v1159 = vunpack.c.l.b16 %v25
    %v1160 = vunpack.c.h.b16 %v25
    %v1161 = vunpack.c.l.b16 %v26
    %v1162 = vunpack.c.h.b16 %v26
    %v1163 = vunpack.c.l.b16 %v27
    %v1164 = vunpack.c.h.b16 %v27
    %v1165 = vunpack.c.l.b16 %v28
    %v1166 = vunpack.c.h.b16 %v28
    %v1167 = vunpack.c.l.b16 %v29
    %v1168 = vunpack.c.h.b16 %v29
    %v1169 = vunpack.c.l.b16 %v30
    %v1170 = vunpack.c.h.b16 %v30
    %v1171 = vunpack.c.l.b16 %v31
    %v1172 = vunpack.c.h.b16 %v31
    %v1173 = vunpack.c.l.b16 %v32
    %v1174 = vunpack.c.h.b16 %v32
    %v1175 = vunpack.c.l.b16 %v33
    %v1176 = vunpack.c.h.b16 %v33
    %v1177 = vunpack.c.l.b16 %v34
    %v1178 = vunpack.c.h.b16 %v34
    %v1179 = vunpack.c.l.b16 %v35
    %v1180 = vunpack.c.h.b16 %v35
    %v1181 = vunpack.c.l.b16 %v36
    %v1182 = vunpack.c.h.b16 %v36
    %v1183 = vunpack.c.l.b16 %v37
    %v1184 = vunpack.c.h.b16 %v37
    %v1185 = vunpack.c.l.b16 %v38
    %v1186 = vunpack.c.h.b16 %v38
    %v1187 = vunpack.c.l.b16 %v39
    %v1188 = vunpack.c.h.b16 %v39
    %v1189 = vunpack.c.l.b16 %v40
    %v1190 = vunpack.c.h.b16 %v40
    %v1191 = vunpack.c.l.b16 %v41
    %v1192 = vunpack.c.h.b16 %v41
    %v1193 = vunpack.c.l.b16 %v42
    %v1194 = vunpack.c.h.b16 %v42
    %v1195 = vunpack.c.l.b16 %v43
    %v1196 = vunpack.c.h.b16 %v43
    %v1197 = vunpack.c.l.b16 %v44
    %v1198 = vunpack.c.h.b16 %v44
    %v1199 = vunpack.c.l.b16 %v45
    %v1200 = vunpack.c.h.b16 %v45
    %v1201 = vunpack.c.l.b16 %v46
    %v1202 = vunpack.c.h.b16 %v46
    %v1203 = vunpack.c.l.b16 %v47
    %v1204 = vunpack.c.h.b16 %v47
    %v1205 = vunpack.c.l.b16 %v48
    %v1206 = vunpack.c.h.b16 %v48
    %v1207 = vunpack.c.l.b16 %v49
    %v1208 = vunpack.c.h.b16 %v49
    %v1209 = vunpack.c.l.b16 %v50
    %v1210 = vunpack.c.h.b16 %v50
    %v1211 = vunpack.c.l.b16 %v51
    %v1212 = vunpack.c.h.b16 %v51
    %v1213 = vunpack.c.l.b16 %v52
    %v1214 = vunpack.c.h.b16 %v52
    %v1215 = vunpack.c.l.b16 %v53
    %v1216 = vunpack.c.h.b16 %v53
    %v1217 = vunpack.c.l.b16 %v54
    %v1218 = vunpack.c.h.b16 %v54
    %v1219 = vunpack.c.l.b16 %v55
    %v1220 = vunpack.c.h.b16 %v55
    %v1221 = vunpack.c.l.b16 %v56
    %v1222 = vunpack.c.h.b16 %v56
    %v1223 = vunpack.c.l.b16 %v57
    %v1224 = vunpack.c.h.b16 %v57
    %v1225 = vunpack.c.l.b16 %v58
    %v1226 = vunpack.c.h.b16 %v58
    %v1227 = vunpack.c.l.b16 %v59
    %v1228 = vunpack.c.h.b16 %v59
    %v1229 = vunpack.c.l.b16 %v60
    %v1230 = vunpack.c.h.b16 %v60
    %v1231 = vunpack.c.l.b16 %v61
    %v1232 = vunpack.c.h.b16 %v61
    %v1233 = vunpack.c.l.b16 %v62
    %v1234 = vunpack.c.h.b16 %v62
    %v1235 = vunpack.c.l.b16 %v63
    %v1236 = vunpack.c.h.b16 %v63
    %v1237 = vunpack.c.l.b16 %v64
    %v1238 = vunpack.c.h.b16 %v64
    %v1239 = vunpack.c.l.b16 %v65
    %v1240 = vunpack.c.h.b16 %v65
    %v1241 = vunpack.c.l.b16 %v66
    %v1242 = vunpack.c.h.b16 %v66
    %v1243 = vunpack.c.l.b16 %v67
    %v1244 = vunpack.c.h.b16 %v67
    %v1245 = vunpack.c.l.b16 %v68
    %v1246 = vunpack.c.h.b16 %v68
    %v1247 = vunpack.c.l.b16 %v69
    %v1248 = vunpack.c.h.b16 %v69
    %v1249 = vunpack.c.l.b16 %v70
    %v1250 = vunpack.c.h.b16 %v70
    %v1251 = vunpack.c.l.b16 %v71
    %v1252 = vunpack.c.h.b16 %v71
    %v1253 = vunpack.c.l.b16 %v72
    %v1254 = vunpack.c.h.b16 %v72
    %v1255 = vunpack.c.l.b16 %v73
    %v1256 = vunpack.c.h.b16 %v73
    %v1257 = vunpack.c.l.b16 %v74
    %v1258 = vunpack.c.h.b16 %v74
    %v1259 = vunpack.c.l.b16 %v75
    %v1260 = vunpack.c.h.b16 %v75
    %v1261 = vunpack.c.l.b16 %v76
    %v1262 = vunpack.c.h.b16 %v76
    %v1263 = vunpack.c.l.b16 %v77
    %v1264 = vunpack.c.h.b16 %v77
    %v1265 = vunpack.c.l.b16 %v78
    %v1266 = vunpack.c.h.b16 %v78
    %v1267 = vunpack.c.l.b16 %v79
    %v1268 = vunpack.c.h.b16 %v79
    %v1269 = vunpack.c.l.b16 %v80
    %v1270 = vunpack.c.h.b16 %v80
    %v1271 = vunpack.c.l.b16 %v81
    %v1272 = vunpack.c.h.b16 %v81
    %v1273 = vunpack.c.l.b16 %v82
    %v1274 = vunpack.c.h.b16 %v82
    %v1275 = vunpack.c.l.b16 %v83
    %v1276 = vunpack.c.h.b16 %v83
    %v1277 = vunpack.c.l.b16 %v84
    %v1278 = vunpack.c.h.b16 %v84
    %v1279 = vunpack.c.l.b16 %v85
    %v1280 = vunpack.c.h.b16 %v85
    %v1281 = vunpack.c.l.b16 %v86
    %v1282 = vunpack.c.h.b16 %v86
    %v1283 = vunpack.c.l.b16 %v87
    %v1284 = vunpack.c.h.b16 %v87
    %v1285 = vunpack.c.l.b16 %v88
    %v1286 = vunpack.c.h.b16 %v88
    %v1287 = vunpack.c.l.b16 %v89
    %v1288 = vunpack.c.h.b16 %v89
    %v1289 = vunpack.c.l.b16 %v90
    %v1290 = vunpack.c.h.b16 %v90
    %v1291 = vunpack.c.l.b16 %v91
    %v1292 = vunpack.c.h.b16 %v91
    %v1293 = vunpack.c.l.b16 %v92
    %v1294 = vunpack.c.h.b16 %v92
    %v1295 = vunpack.c.l.b16 %v93
    %v1296 = vunpack.c.h.b16 %v93
    %v1297 = vunpack.c.l.b16 %v94
    %v1298 = vunpack.c.h.b16 %v94
    %v1299 = vunpack.c.l.b16 %v95
    %v1300 = vunpack.c.h.b16 %v95
    %v1301 = vunpack.c.l.b16 %v96
    %v1302 = vunpack.c.h.b16 %v96
    %v1303 = vunpack.c.l.b16 %v97
    %v1304 = vunpack.c.h.b16 %v97
    %v1305 = vunpack.c.l.b16 %v98
    %v1306 = vunpack.c.h.b16 %v98
    %v1307 = vunpack.c.l.b16 %v99
    %v1308 = vunpack.c.h.b16 %v99
    %v1309 = vunpack.c.l.b16 %v100
    %v1310 = vunpack.c.h.b16 %v100
    %v1311 = vunpack.c.l.b16 %v101
    %v1312 = vunpack.c.h.b16 %v101
    %v1313 = vunpack.c.l.b16 %v102
    %v1314 = vunpack.c.h.b16 %v102
    %v1315 = vunpack.c.l.b16 %v103
    %v1316 = vunpack.c.h.b16 %v103
    %v1317 = vunpack.c.l.b16 %v104
    %v1318 = vunpack.c.h.b16 %v104
    %v1319 = vunpack.c.l.b16 %v105
    %v1320 = vunpack.c.h.b16 %v105
    %v1321 = vunpack.c.l.b16 %v106
    %v1322 = vunpack.c.h.b16 %v106
    %v1323 = vunpack.c.l.b16 %v107
    %v1324 = vunpack.c.h.b16 %v107
    %v1325 = vunpack.c.l.b16 %v108
    %v1326 = vunpack.c.h.b16 %v108
    %v1327 = vunpack.c.l.b16 %v109
    %v1328 = vunpack.c.h.b16 %v109
    %v1329 = vunpack.c.l.b16 %v110
    %v1330 = vunpack.c.h.b16 %v110
    %v1331 = vunpack.c.l.b16 %v111
    %v1332 = vunpack.c.h.b16 %v111
    %v1333 = vunpack.c.l.b16 %v112
    %v1334 = vunpack.c.h.b16 %v112
    %v1335 = vunpack.c.l.b16 %v113
    %v1336 = vunpack.c.h.b16 %v113
    %v1337 = vunpack.c.l.b16 %v114
    %v1338 = vunpack.c.h.b16 %v114
    %v1339 = vunpack.c.l.b16 %v115
    %v1340 = vunpack.c.h.b16 %v115
    %v1341 = vunpack.c.l.b16 %v116
    %v1342 = vunpack.c.h.b16 %v116
    %v1343 = vunpack.c.l.b16 %v117
    %v1344 = vunpack.c.h.b16 %v117
    %v1345 = vunpack.c.l.b16 %v118
    %v1346 = vunpack.c.h.b16 %v118
    %v1347 = vunpack.c.l.b16 %v119
    %v1348 = vunpack.c.h.b16 %v119
    %v1349 = vunpack.c.l.b16 %v120
    %v1350 = vunpack.c.h.b16 %v120
    %v1351 = vunpack.c.l.b16 %v121
    %v1352 = vunpack.c.h.b16 %v121
    %v1353 = vunpack.c.l.b16 %v122
    %v1354 = vunpack.c.h.b16 %v122
    %v1355 = vunpack.c.l.b16 %v123
    %v1356 = vunpack.c.h.b16 %v123
    %v1357 = vunpack.c.l.b16 %v124
    %v1358 = vunpack.c.h.b16 %v124
    %v1359 = vunpack.c.l.b16 %v125
    %v1360 = vunpack.c.h.b16 %v125
    %v1361 = vunpack.c.l.b16 %v126
    %v1362 = vunpack.c.h.b16 %v126
    %v1363 = vunpack.c.l.b16 %v127
    %v1364 = vunpack.c.h.b16 %v127
    %v1365 = vunpack.c.l.b16 %v128
    %v1366 = vunpack.c.h.b16 %v128
    %v1367 = vunpack.c.l.b16 %v129
    %v1368 = vunpack.c.h.b16 %v129
    %v1369 = vunpack.c.l.b16 %v130
    %v1370 = vunpack.c.h.b16 %v130
    %v1371 = vunpack.c.l.b16 %v131
    %v1372 = vunpack.c.h.b16 %v131
    %v1373 = vunpack.c.l.b16 %v132
    %v1374 = vunpack.c.h.b16 %v132
    %v1375 = vunpack.c.l.b16 %v133
    %v1376 = vunpack.c.h.b16 %v133
    %v1377 = vunpack.c.l.b16 %v134
    %v1378 = vunpack.c.h.b16 %v134
    %v1379 = vunpack.c.l.b16 %v135
    %v1380 = vunpack.c.h.b16 %v135
    %v1381 = vunpack.c.l.b16 %v136
    %v1382 = vunpack.c.h.b16 %v136
    %v1383 = vunpack.c.l.b16 %v137
    %v1384 = vunpack.c.h.b16 %v137
    %v1385 = vunpack.c.l.b16 %v138
    %v1386 = vunpack.c.h.b16 %v138
    %v1387 = vunpack.c.l.b16 %v139
    %v1388 = vunpack.c.h.b16 %v139
    %v1389 = vunpack.c.l.b16 %v140
    %v1390 = vunpack.c.h.b16 %v140
    %v1391 = vunpack.c.l.b16 %v141
    %v1392 = vunpack.c.h.b16 %v141
    %v1393 = vunpack.c.l.b16 %v142
    %v1394 = vunpack.c.h.b16 %v142
    %v1395 = vunpack.c.l.b16 %v143
    %v1396 = vunpack.c.h.b16 %v143
    %v1397 = vunpack.c.l.b16 %v144
    %v1398 = vunpack.c.h.b16 %v144
    %v1399 = vunpack.c.l.b16 %v145
    %v1400 = vunpack.c.h.b16 %v145
    %v1401 = vunpack.c.l.b16 %v146
    %v1402 = vunpack.c.h.b16 %v146
    %v1403 = vunpack.c.l.b16 %v147
    %v1404 = vunpack.c.h.b16 %v147
    %v1405 = vunpack.c.l.b16 %v148
    %v1406 = vunpack.c.h.b16 %v148
    %v1407 = vunpack.c.l.b16 %v149
    %v1408 = vunpack.c.h.b16 %v149
    %v1409 = vunpack.c.l.b16 %v150
    %v1410 = vunpack.c.h.b16 %v150
    %v1411 = vunpack.c.l.b16 %v151
    %v1412 = vunpack.c.h.b16 %v151
    %v1413 = vunpack.c.l.b16 %v152
    %v1414 = vunpack.c.h.b16 %v152
    %v1415 = vunpack.c.l.b16 %v153
    %v1416 = vunpack.c.h.b16 %v153
    %v1417 = vunpack.c.l.b16 %v154
    %v1418 = vunpack.c.h.b16 %v154
    %v1419 = vunpack.c.l.b16 %v155
    %v1420 = vunpack.c.h.b16 %v155
    %v1421 = vunpack.c.l.b16 %v156
    %v1422 = vunpack.c.h.b16 %v156
    %v1423 = vunpack.c.l.b16 %v157
    %v1424 = vunpack.c.h.b16 %v157
    %v1425 = vunpack.c.l.b16 %v158
    %v1426 = vunpack.c.h.b16 %v158
    %v1427 = vunpack.c.l.b16 %v159
    %v1428 = vunpack.c.h.b16 %v159
    %v1429 = vunpack.c.l.b16 %v160
    %v1430 = vunpack.c.h.b16 %v160
    %v1431 = vunpack.c.l.b16 %v161
    %v1432 = vunpack.c.h.b16 %v161
    %v1433 = vunpack.c.l.b16 %v162
    %v1434 = vunpack.c.h.b16 %v162
    %v1435 = vunpack.c.l.b16 %v163
    %v1436 = vunpack.c.h.b16 %v163
    %v1437 = vunpack.c.l.b16 %v164
    %v1438 = vunpack.c.h.b16 %v164
    %v1439 = vunpack.c.l.b16 %v165
    %v1440 = vunpack.c.h.b16 %v165
    %v1441 = vunpack.c.l.b16 %v166
    %v1442 = vunpack.c.h.b16 %v166
    %v1443 = vunpack.c.l.b16 %v167
    %v1444 = vunpack.c.h.b16 %v167
    %v1445 = vunpack.c.l.b16 %v168
    %v1446 = vunpack.c.h.b16 %v168
    %v1447 = vunpack.c.l.b16 %v169
    %v1448 = vunpack.c.h.b16 %v169
    %v1449 = vunpack.c.l.b16 %v170
    %v1450 = vunpack.c.h.b16 %v170
    %v1451 = vunpack.c.l.b16 %v171
    %v1452 = vunpack.c.h.b16 %v171
    %v1453 = vunpack.c.l.b16 %v172
    %v1454 = vunpack.c.h.b16 %v172
    %v1455 = vunpack.c.l.b16 %v173
    %v1456 = vunpack.c.h.b16 %v173
    %v1457 = vunpack.c.l.b16 %v174
    %v1458 = vunpack.c.h.b16 %v174
    %v1459 = vunpack.c.l.b16 %v175
    %v1460 = vunpack.c.h.b16 %v175
    %v1461 = vunpack.c.l.b16 %v176
    %v1462 = vunpack.c.h.b16 %v176
    %v1463 = vunpack.c.l.b16 %v177
    %v1464 = vunpack.c.h.b16 %v177
    %v1465 = vunpack.c.l.b16 %v178
    %v1466 = vunpack.c.h.b16 %v178
    %v1467 = vunpack.c.l.b16 %v179
    %v1468 = vunpack.c.h.b16 %v179
    %v1469 = vunpack.c.l.b16 %v180
    %v1470 = vunpack.c.h.b16 %v180
    %v1471 = vunpack.c.l.b16 %v181
    %v1472 = vunpack.c.h.b16 %v181
    %v1473 = vunpack.c.l.b16 %v182
    %v1474 = vunpack.c.h.b16 %v182
    %v1475 = vunpack.c.l.b16 %v183
    %v1476 = vunpack.c.h.b16 %v183
    %v1477 = vunpack.c.l.b16 %v184
    %v1478 = vunpack.c.h.b16 %v184
    %v1479 = vunpack.c.l.b16 %v185
    %v1480 = vunpack.c.h.b16 %v185
    %v1481 = vunpack.c.l.b16 %v186
    %v1482 = vunpack.c.h.b16 %v186
    %v1483 = vunpack.c.l.b16 %v187
    %v1484 = vunpack.c.h.b16 %v187
    %v1485 = vunpack.c.l.b16 %v188
    %v1486 = vunpack.c.h.b16 %v188
    %v1487 = vunpack.c.l.b16 %v189
    %v1488 = vunpack.c.h.b16 %v189
    %v1489 = vunpack.c.l.b16 %v190
    %v1490 = vunpack.c.h.b16 %v190
    %v1491 = vunpack.c.l.b16 %v191
    %v1492 = vunpack.c.h.b16 %v191
    %v1493 = vunpack.c.l.b16 %v192
    %v1494 = vunpack.c.h.b16 %v192
    %v1495 = vunpack.c.l.b16 %v193
    %v1496 = vunpack.c.h.b16 %v193
    %v1497 = vunpack.c.l.b16 %v194
    %v1498 = vunpack.c.h.b16 %v194
    %v1499 = vunpack.c.l.b16 %v195
    %v1500 = vunpack.c.h.b16 %v195
    %v1501 = vunpack.c.l.b16 %v196
    %v1502 = vunpack.c.h.b16 %v196
    %v1503 = vunpack.c.l.b16 %v197
    %v1504 = vunpack.c.h.b16 %v197
    %v1505 = vunpack.c.l.b16 %v198
    %v1506 = vunpack.c.h.b16 %v198
    %v1507 = vunpack.c.l.b16 %v199
    %v1508 = vunpack.c.h.b16 %v199
    %v1509 = vunpack.c.l.b16 %v200
    %v1510 = vunpack.c.h.b16 %v200
    %v1511 = vunpack.c.l.b16 %v201
    %v1512 = vunpack.c.h.b16 %v201
    %v1513 = vunpack.c.l.b16 %v202
    %v1514 = vunpack.c.h.b16 %v202
    %v1515 = vunpack.c.l.b16 %v203
    %v1516 = vunpack.c.h.b16 %v203
    %v1517 = vunpack.c.l.b16 %v204
    %v1518 = vunpack.c.h.b16 %v204
    %v1519 = vunpack.c.l.b16 %v205
    %v1520 = vunpack.c.h.b16 %v205
    %v1521 = vunpack.c.l.b16 %v206
    %v1522 = vunpack.c.h.b16 %v206
    %v1523 = vunpack.c.l.b16 %v207
    %v1524 = vunpack.c.h.b16 %v207
    %v1525 = vunpack.c.l.b16 %v208
    %v1526 = vunpack.c.h.b16 %v208
    %v1527 = vunpack.c.l.b16 %v209
    %v1528 = vunpack.c.h.b16 %v209
    %v1529 = vunpack.c.l.b16 %v210
    %v1530 = vunpack.c.h.b16 %v210
    %v1531 = vunpack.c.l.b16 %v211
    %v1532 = vunpack.c.h.b16 %v211
    %v1533 = vunpack.c.l.b16 %v212
    %v1534 = vunpack.c.h.b16 %v212
    %v1535 = vunpack.c.l.b16 %v213
    %v1536 = vunpack.c.h.b16 %v213
    %v1537 = vunpack.c.l.b16 %v214
    %v1538 = vunpack.c.h.b16 %v214
    %v1539 = vunpack.c.l.b16 %v215
    %v1540 = vunpack.c.h.b16 %v215
    %v1541 = vunpack.c.l.b16 %v216
    %v1542 = vunpack.c.h.b16 %v216
    %v1543 = vunpack.c.l.b16 %v217
    %v1544 = vunpack.c.h.b16 %v217
    %v1545 = vunpack.c.l.b16 %v218
    %v1546 = vunpack.c.h.b16 %v218
    %v1547 = vunpack.c.l.b16 %v219
    %v1548 = vunpack.c.h.b16 %v219
    %v1549 = vunpack.c.l.b16 %v220
    %v1550 = vunpack.c.h.b16 %v220
    %v1551 = vunpack.c.l.b16 %v221
    %v1552 = vunpack.c.h.b16 %v221
    %v1553 = vunpack.c.l.b16 %v222
    %v1554 = vunpack.c.h.b16 %v222
    %v1555 = vunpack.c.l.b16 %v223
    %v1556 = vunpack.c.h.b16 %v223
    %v1557 = vunpack.c.l.b16 %v224
    %v1558 = vunpack.c.h.b16 %v224
    %v1559 = vunpack.c.l.b16 %v225
    %v1560 = vunpack.c.h.b16 %v225
    %v1561 = vunpack.c.l.b16 %v226
    %v1562 = vunpack.c.h.b16 %v226
    %v1563 = vunpack.c.l.b16 %v227
    %v1564 = vunpack.c.h.b16 %v227
    %v1565 = vunpack.c.l.b16 %v228
    %v1566 = vunpack.c.h.b16 %v228
    %v1567 = vunpack.c.l.b16 %v229
    %v1568 = vunpack.c.h.b16 %v229
    %v1569 = vunpack.c.l.b16 %v230
    %v1570 = vunpack.c.h.b16 %v230
    %v1571 = vunpack.c.l.b16 %v231
    %v1572 = vunpack.c.h.b16 %v231
    %v1573 = vunpack.c.l.b16 %v232
    %v1574 = vunpack.c.h.b16 %v232
    %v1575 = vunpack.c.l.b16 %v233
    %v1576 = vunpack.c.h.b16 %v233
    %v1577 = vunpack.c.l.b16 %v234
    %v1578 = vunpack.c.h.b16 %v234
    %v1579 = vunpack.c.l.b16 %v235
    %v1580 = vunpack.c.h.b16 %v235
    %v1581 = vunpack.c.l.b16 %v236
    %v1582 = vunpack.c.h.b16 %v236
    %v1583 = vunpack.c.l.b16 %v237
    %v1584 = vunpack.c.h.b16 %v237
    %v1585 = vunpack.c.l.b16 %v238
    %v1586 = vunpack.c.h.b16 %v238
    %v1587 = vunpack.c.l.b16 %v239
    %v1588 = vunpack.c.h.b16 %v239
    %v1589 = vunpack.c.l.b16 %v240
    %v1590 = vunpack.c.h.b16 %v240
    %v1591 = vunpack.c.l.b16 %v241
    %v1592 = vunpack.c.h.b16 %v241
    %v1593 = vunpack.c.l.b16 %v242
    %v1594 = vunpack.c.h.b16 %v242
    %v1595 = vunpack.c.l.b16 %v243
    %v1596 = vunpack.c.h.b16 %v243
    %v1597 = vunpack.c.l.b16 %v244
    %v1598 = vunpack.c.h.b16 %v244
    %v1599 = vunpack.c.l.b16 %v245
    %v1600 = vunpack.c.h.b16 %v245
    %v1601 = vunpack.c.l.b16 %v246
    %v1602 = vunpack.c.h.b16 %v246
    %v1603 = vunpack.c.l.b16 %v247
    %v1604 = vunpack.c.h.b16 %v247
    %v1605 = vunpack.c.l.b16 %v248
    %v1606 = vunpack.c.h.b16 %v248
    %v1607 = vunpack.c.l.b16 %v249
    %v1608 = vunpack.c.h.b16 %v249
    %v1609 = vunpack.c.l.b16 %v250
    %v1610 = vunpack.c.h.b16 %v250
    %v1611 = vunpack.c.l.b16 %v251
    %v1612 = vunpack.c.h.b16 %v251
    %v1613 = vunpack.c.l.b16 %v252
    %v1614 = vunpack.c.h.b16 %v252
    %v1615 = vunpack.c.l.b16 %v253
    %v1616 = vunpack.c.h.b16 %v253
    %v1617 = vunpack.c.l.b16 %v254
    %v1618 = vunpack.c.h.b16 %v254
    %v1619 = vunpack.c.l.b16 %v255
    %v1620 = vunpack.c.h.b16 %v255
    %v1621 = vunpack.c.l.b16 %v256
    %v1622 = vunpack.c.h.b16 %v256
    %v1623 = vunpack.c.l.b16 %v257
    %v1624 = vunpack.c.h.b16 %v257
    %v1625 = vunpack.c.l.b16 %v258
    %v1626 = vunpack.c.h.b16 %v258
    %v1627 = vunpack.c.l.b16 %v259
    %v1628 = vunpack.c.h.b16 %v259
    %v1629 = vunpack.c.l.b16 %v260
    %v1630 = vunpack.c.h.b16 %v260
    %v1631 = vunpack.c.l.b16 %v261
    %v1632 = vunpack.c.h.b16 %v261
    %v1633 = vunpack.c.l.b16 %v262
    %v1634 = vunpack.c.h.b16 %v262
    %v1635 = vunpack.c.l.b16 %v263
    %v1636 = vunpack.c.h.b16 %v263
    %v1637 = vunpack.c.l.b16 %v264
    %v1638 = vunpack.c.h.b16 %v264
    %v1639 = vunpack.c.l.b16 %v265
    %v1640 = vunpack.c.h.b16 %v265
    %v1641 = vunpack.c.l.b16 %v266
    %v1642 = vunpack.c.h.b16 %v266
    %v1643 = vunpack.c.l.b16 %v267
    %v1644 = vunpack.c.h.b16 %v267
    %v1645 = vunpack.c.l.b16 %v268
    %v1646 = vunpack.c.h.b16 %v268
    %v1647 = vunpack.c.l.b16 %v269
    %v1648 = vunpack.c.h.b16 %v269
    %v1649 = vunpack.c.l.b16 %v270
    %v1650 = vunpack.c.h.b16 %v270
    %v1651 = vunpack.c.l.b16 %v271
    %v1652 = vunpack.c.h.b16 %v271
    %v1653 = vunpack.c.l.b16 %v272
    %v1654 = vunpack.c.h.b16 %v272
    %v1655 = vunpack.c.l.b16 %v273
    %v1656 = vunpack.c.h.b16 %v273
    %v1657 = vunpack.c.l.b16 %v274
    %v1658 = vunpack.c.h.b16 %v274
    %v1659 = vunpack.c.l.b16 %v275
    %v1660 = vunpack.c.h.b16 %v275
    %v1661 = vunpack.c.l.b16 %v276
    %v1662 = vunpack.c.h.b16 %v276
    %v1663 = vunpack.c.l.b16 %v277
    %v1664 = vunpack.c.h.b16 %v277
    %v1665 = vunpack.c.l.b16 %v278
    %v1666 = vunpack.c.h.b16 %v278
    %v1667 = vunpack.c.l.b16 %v279
    %v1668 = vunpack.c.h.b16 %v279
    %v1669 = vunpack.c.l.b16 %v280
    %v1670 = vunpack.c.h.b16 %v280
    %v1671 = vunpack.c.l.b16 %v281
    %v1672 = vunpack.c.h.b16 %v281
    %v1673 = vunpack.c.l.b16 %v282
    %v1674 = vunpack.c.h.b16 %v282
    %v1675 = vunpack.c.l.b16 %v283
    %v1676 = vunpack.c.h.b16 %v283
    %v1677 = vunpack.c.l.b16 %v284
    %v1678 = vunpack.c.h.b16 %v284
    %v1679 = vunpack.c.l.b16 %v285
    %v1680 = vunpack.c.h.b16 %v285
    %v1681 = vunpack.c.l.b16 %v286
    %v1682 = vunpack.c.h.b16 %v286
    %v1683 = vunpack.c.l.b16 %v287
    %v1684 = vunpack.c.h.b16 %v287
    %v1685 = vunpack.c.l.b16 %v288
    %v1686 = vunpack.c.h.b16 %v288
    %v1687 = vunpack.c.l.b16 %v289
    %v1688 = vunpack.c.h.b16 %v289
    %v1689 = vunpack.c.l.b16 %v290
    %v1690 = vunpack.c.h.b16 %v290
    %v1691 = vunpack.c.l.b16 %v291
    %v1692 = vunpack.c.h.b16 %v291
    %v1693 = vunpack.c.l.b16 %v292
    %v1694 = vunpack.c.h.b16 %v292
    %v1695 = vunpack.c.l.b16 %v293
    %v1696 = vunpack.c.h.b16 %v293
    %v1697 = vunpack.c.l.b16 %v294
    %v1698 = vunpack.c.h.b16 %v294
    %v1699 = vunpack.c.l.b16 %v295
    %v1700 = vunpack.c.h.b16 %v295
    %v1701 = vunpack.c.l.b16 %v296
    %v1702 = vunpack.c.h.b16 %v296
    %v1703 = vunpack.c.l.b16 %v297
    %v1704 = vunpack.c.h.b16 %v297
    %v1705 = vunpack.c.l.b16 %v298
    %v1706 = vunpack.c.h.b16 %v298
    %v1707 = vunpack.c.l.b16 %v299
    %v1708 = vunpack.c.h.b16 %v299
    %v1709 = vunpack.c.l.b16 %v300
    %v1710 = vunpack.c.h.b16 %v300
    %v1711 = vunpack.c.l.b16 %v301
    %v1712 = vunpack.c.h.b16 %v301
    %v1713 = vunpack.c.l.b16 %v302
    %v1714 = vunpack.c.h.b16 %v302
    %v1715 = vunpack.c.l.b16 %v303
    %v1716 = vunpack.c.h.b16 %v303
    %v1717 = vunpack.c.l.b16 %v304
    %v1718 = vunpack.c.h.b16 %v304
    %v1719 = vunpack.c.l.b16 %v305
    %v1720 = vunpack.c.h.b16 %v305
    %v1721 = vunpack.c.l.b16 %v306
    %v1722 = vunpack.c.h.b16 %v306
    %v1723 = vunpack.c.l.b16 %v307
    %v1724 = vunpack.c.h.b16 %v307
    %v1725 = vunpack.c.l.b16 %v308
    %v1726 = vunpack.c.h.b16 %v308
    %v1727 = vunpack.c.l.b16 %v309
    %v1728 = vunpack.c.h.b16 %v309
    %v1729 = vunpack.c.l.b16 %v310
    %v1730 = vunpack.c.h.b16 %v310
    %v1731 = vunpack.c.l.b16 %v311
    %v1732 = vunpack.c.h.b16 %v311
    %v1733 = vunpack.c.l.b16 %v312
    %v1734 = vunpack.c.h.b16 %v312
    %v1735 = vunpack.c.l.b16 %v313
    %v1736 = vunpack.c.h.b16 %v313
    %v1737 = vunpack.c.l.b16 %v314
    %v1738 = vunpack.c.h.b16 %v314
    %v1739 = vunpack.c.l.b16 %v315
    %v1740 = vunpack.c.h.b16 %v315
    %v1741 = vunpack.c.l.b16 %v316
    %v1742 = vunpack.c.h.b16 %v316
    %v1743 = vunpack.c.l.b16 %v317
    %v1744 = vunpack.c.h.b16 %v317
    %v1745 = vunpack.c.l.b16 %v318
    %v1746 = vunpack.c.h.b16 %v318
    %v1747 = vunpack.c.l.b16 %v319
    %v1748 = vunpack.c.h.b16 %v319
    %v1749 = vunpack.c.l.b16 %v320
    %v1750 = vunpack.c.h.b16 %v320
    %v1751 = vunpack.c.l.b16 %v321
    %v1752 = vunpack.c.h.b16 %v321
    %v1753 = vunpack.c.l.b16 %v322
    %v1754 = vunpack.c.h.b16 %v322
    %v1755 = vunpack.c.l.b16 %v323
    %v1756 = vunpack.c.h.b16 %v323
    %v1757 = vunpack.c.l.b16 %v324
    %v1758 = vunpack.c.h.b16 %v324
    %v1759 = vunpack.c.l.b16 %v325
    %v1760 = vunpack.c.h.b16 %v325
    %v1761 = vunpack.c.l.b16 %v326
    %v1762 = vunpack.c.h.b16 %v326
    %v1763 = vunpack.c.l.b16 %v327
    %v1764 = vunpack.c.h.b16 %v327
    %v1765 = vunpack.c.l.b16 %v328
    %v1766 = vunpack.c.h.b16 %v328
    %v1767 = vunpack.c.l.b16 %v329
    %v1768 = vunpack.c.h.b16 %v329
    %v1769 = vunpack.c.l.b16 %v330
    %v1770 = vunpack.c.h.b16 %v330
    %v1771 = vunpack.c.l.b16 %v331
    %v1772 = vunpack.c.h.b16 %v331
    %v1773 = vunpack.c.l.b16 %v332
    %v1774 = vunpack.c.h.b16 %v332
    %v1775 = vunpack.c.l.b16 %v333
    %v1776 = vunpack.c.h.b16 %v333
    %v1777 = vunpack.c.l.b16 %v334
    %v1778 = vunpack.c.h.b16 %v334
    %v1779 = vunpack.c.l.b16 %v335
    %v1780 = vunpack.c.h.b16 %v335
    %v1781 = vunpack.c.l.b16 %v336
    %v1782 = vunpack.c.h.b16 %v336
    %v1783 = vunpack.c.l.b16 %v337
    %v1784 = vunpack.c.h.b16 %v337
    %v1785 = vunpack.c.l.b16 %v338
    %v1786 = vunpack.c.h.b16 %v338
    %v1787 = vunpack.c.l.b16 %v339
    %v1788 = vunpack.c.h.b16 %v339
    %v1789 = vunpack.c.l.b16 %v340
    %v1790 = vunpack.c.h.b16 %v340
    %v1791 = vunpack.c.l.b16 %v341
    %v1792 = vunpack.c.h.b16 %v341
    %v1793 = vunpack.c.l.b16 %v342
    %v1794 = vunpack.c.h.b16 %v342
    %v1795 = vunpack.c.l.b16 %v343
    %v1796 = vunpack.c.h.b16 %v343
    %v1797 = vunpack.c.l.b16 %v344
    %v1798 = vunpack.c.h.b16 %v344
    %v1799 = vunpack.c.l.b16 %v345
    %v1800 = vunpack.c.h.b16 %v345
    %v1801 = vunpack.c.l.b16 %v346
    %v1802 = vunpack.c.h.b16 %v346
    %v1803 = vunpack.c.l.b16 %v347
    %v1804 = vunpack.c.h.b16 %v347
    %v1805 = vunpack.c.l.b16 %v348
    %v1806 = vunpack.c.h.b16 %v348
    %v1807 = vunpack.c.l.b16 %v349
    %v1808 = vunpack.c.h.b16 %v349
    %v1809 = vunpack.c.l.b16 %v350
    %v1810 = vunpack.c.h.b16 %v350
    %v1811 = vunpack.c.l.b16 %v351
    %v1812 = vunpack.c.h.b16 %v351
    %v1813 = vunpack.c.l.b16 %v352
    %v1814 = vunpack.c.h.b16 %v352
    %v1815 = vunpack.c.l.b16 %v353
    %v1816 = vunpack.c.h.b16 %v353
    %v1817 = vunpack.c.l.b16 %v354
    %v1818 = vunpack.c.h.b16 %v354
    %v1819 = vunpack.c.l.b16 %v355
    %v1820 = vunpack.c.h.b16 %v355
    %v1821 = vunpack.c.l.b16 %v356
    %v1822 = vunpack.c.h.b16 %v356
    %v1823 = vunpack.c.l.b16 %v357
    %v1824 = vunpack.c.h.b16 %v357
    %v1825 = vunpack.c.l.b16 %v358
    %v1826 = vunpack.c.h.b16 %v358
    %v1827 = vunpack.c.l.b16 %v359
    %v1828 = vunpack.c.h.b16 %v359
    %v1829 = vunpack.c.l.b16 %v360
    %v1830 = vunpack.c.h.b16 %v360
    %v1831 = vunpack.c.l.b16 %v361
    %v1832 = vunpack.c.h.b16 %v361
    %v1833 = vunpack.c.l.b16 %v362
    %v1834 = vunpack.c.h.b16 %v362
    %v1835 = vunpack.c.l.b16 %v363
    %v1836 = vunpack.c.h.b16 %v363
    %v1837 = vunpack.c.l.b16 %v364
    %v1838 = vunpack.c.h.b16 %v364
    %v1839 = vunpack.c.l.b16 %v365
    %v1840 = vunpack.c.h.b16 %v365
    %v1841 = vunpack.c.l.b16 %v366
    %v1842 = vunpack.c.h.b16 %v366
    %v1843 = vunpack.c.l.b16 %v367
    %v1844 = vunpack.c.h.b16 %v367
    %v1845 = vunpack.c.l.b16 %v368
    %v1846 = vunpack.c.h.b16 %v368
    %v1847 = vunpack.c.l.b16 %v369
    %v1848 = vunpack.c.h.b16 %v369
    %v1849 = vunpack.c.l.b16 %v370
    %v1850 = vunpack.c.h.b16 %v370
    %v1851 = vunpack.c.l.b16 %v371
    %v1852 = vunpack.c.h.b16 %v371
    %v1853 = vunpack.c.l.b16 %v372
    %v1854 = vunpack.c.h.b16 %v372
    %v1855 = vunpack.c.l.b16 %v373
    %v1856 = vunpack.c.h.b16 %v373
    %v1857 = vunpack.c.l.b16 %v374
    %v1858 = vunpack.c.h.b16 %v374
    %v1859 = vunpack.c.l.b16 %v375
    %v1860 = vunpack.c.h.b16 %v375
    %v1861 = vunpack.c.l.b16 %v376
    %v1862 = vunpack.c.h.b16 %v376
    %v1863 = vunpack.c.l.b16 %v377
    %v1864 = vunpack.c.h.b16 %v377
    %v1865 = vunpack.c.l.b16 %v378
    %v1866 = vunpack.c.h.b16 %v378
    %v1867 = vunpack.c.l.b16 %v379
    %v1868 = vunpack.c.h.b16 %v379
    %v1869 = vunpack.c.l.b16 %v380
    %v1870 = vunpack.c.h.b16 %v380
    %v1871 = vunpack.c.l.b16 %v381
    %v1872 = vunpack.c.h.b16 %v381
    %v1873 = vunpack.c.l.b16 %v382
    %v1874 = vunpack.c.h.b16 %v382
    %v1875 = vunpack.c.l.b16 %v383
    %v1876 = vunpack.c.h.b16 %v383
    %v1877 = vunpack.c.l.b16 %v384
    %v1878 = vunpack.c.h.b16 %v384
    %v1879 = vunpack.c.l.b16 %v385
    %v1880 = vunpack.c.h.b16 %v385
    %v1881 = vunpack.c.l.b16 %v386
    %v1882 = vunpack.c.h.b16 %v386
    %v1883 = vunpack.c.l.b16 %v387
    %v1884 = vunpack.c.h.b16 %v387
    %v1885 = vunpack.c.l.b16 %v388
    %v1886 = vunpack.c.h.b16 %v388
    %v1887 = vunpack.c.l.b16 %v389
    %v1888 = vunpack.c.h.b16 %v389
    %v1889 = vunpack.c.l.b16 %v390
    %v1890 = vunpack.c.h.b16 %v390
    %v1891 = vunpack.c.l.b16 %v391
    %v1892 = vunpack.c.h.b16 %v391
    %v1893 = vunpack.c.l.b16 %v392
    %v1894 = vunpack.c.h.b16 %v392
    %v1895 = vunpack.c.l.b16 %v393
    %v1896 = vunpack.c.h.b16 %v393
    %v1897 = vunpack.c.l.b16 %v394
    %v1898 = vunpack.c.h.b16 %v394
    %v1899 = vunpack.c.l.b16 %v395
    %v1900 = vunpack.c.h.b16 %v395
    %v1901 = vunpack.c.l.b16 %v396
    %v1902 = vunpack.c.h.b16 %v396
    %v1903 = vunpack.c.l.b16 %v397
    %v1904 = vunpack.c.h.b16 %v397
    %v1905 = vunpack.c.l.b16 %v398
    %v1906 = vunpack.c.h.b16 %v398
    %v1907 = vunpack.c.l.b16 %v399
    %v1908 = vunpack.c.h.b16 %v399
    %v1909 = vunpack.c.l.b16 %v400
    %v1910 = vunpack.c.h.b16 %v400
    %v1911 = vunpack.c.l.b16 %v401
    %v1912 = vunpack.c.h.b16 %v401
    %v1913 = vunpack.c.l.b16 %v402
    %v1914 = vunpack.c.h.b16 %v402
    %v1915 = vunpack.c.l.b16 %v403
    %v1916 = vunpack.c.h.b16 %v403
    %v1917 = vunpack.c.l.b16 %v404
    %v1918 = vunpack.c.h.b16 %v404
    %v1919 = vunpack.c.l.b16 %v405
    %v1920 = vunpack.c.h.b16 %v405
    %v1921 = vunpack.c.l.b16 %v406
    %v1922 = vunpack.c.h.b16 %v406
    %v1923 = vunpack.c.l.b16 %v407
    %v1924 = vunpack.c.h.b16 %v407
    %v1925 = vunpack.c.l.b16 %v408
    %v1926 = vunpack.c.h.b16 %v408
    %v1927 = vunpack.c.l.b16 %v409
    %v1928 = vunpack.c.h.b16 %v409
    %v1929 = vunpack.c.l.b16 %v410
    %v1930 = vunpack.c.h.b16 %v410
    %v1931 = vunpack.c.l.b16 %v411
    %v1932 = vunpack.c.h.b16 %v411
    %v1933 = vunpack.c.l.b16 %v412
    %v1934 = vunpack.c.h.b16 %v412
    %v1935 = vunpack.c.l.b16 %v413
    %v1936 = vunpack.c.h.b16 %v413
    %v1937 = vunpack.c.l.b16 %v414
    %v1938 = vunpack.c.h.b16 %v414
    %v1939 = vunpack.c.l.b16 %v415
    %v1940 = vunpack.c.h.b16 %v415
    %v1941 = vunpack.c.l.b16 %v416
    %v1942 = vunpack.c.h.b16 %v416
    %v1943 = vunpack.c.l.b16 %v417
    %v1944 = vunpack.c.h.b16 %v417
    %v1945 = vunpack.c.l.b16 %v418
    %v1946 = vunpack.c.h.b16 %v418
    %v1947 = vunpack.c.l.b16 %v419
    %v1948 = vunpack.c.h.b16 %v419
    %v1949 = vunpack.c.l.b16 %v420
    %v1950 = vunpack.c.h.b16 %v420
    %v1951 = vunpack.c.l.b16 %v421
    %v1952 = vunpack.c.h.b16 %v421
    %v1953 = vunpack.c.l.b16 %v422
    %v1954 = vunpack.c.h.b16 %v422
    %v1955 = vunpack.c.l.b16 %v423
    %v1956 = vunpack.c.h.b16 %v423
    %v1957 = vunpack.c.l.b16 %v424
    %v1958 = vunpack.c.h.b16 %v424
    %v1959 = vunpack.c.l.b16 %v425
    %v1960 = vunpack.c.h.b16 %v425
    %v1961 = vunpack.c.l.b16 %v426
    %v1962 = vunpack.c.h.b16 %v426
    %v1963 = vunpack.c.l.b16 %v427
    %v1964 = vunpack.c.h.b16 %v427
    %v1965 = vunpack.c.l.b16 %v428
    %v1966 = vunpack.c.h.b16 %v428
    %v1967 = vunpack.c.l.b16 %v429
    %v1968 = vunpack.c.h.b16 %v429
    %v1969 = vunpack.c.l.b16 %v430
    %v1970 = vunpack.c.h.b16 %v430
    %v1971 = vunpack.c.l.b16 %v431
    %v1972 = vunpack.c.h.b16 %v431
    %v1973 = vunpack.c.l.b16 %v432
    %v1974 = vunpack.c.h.b16 %v432
    %v1975 = vunpack.c.l.b16 %v433
    %v1976 = vunpack.c.h.b16 %v433
    %v1977 = vunpack.c.l.b16 %v434
    %v1978 = vunpack.c.h.b16 %v434
    %v1979 = vunpack.c.l.b16 %v435
    %v1980 = vunpack.c.h.b16 %v435
    %v1981 = vunpack.c.l.b16 %v436
    %v1982 = vunpack.c.h.b16 %v436
    %v1983 = vunpack.c.l.b16 %v437
    %v1984 = vunpack.c.h.b16 %v437
    %v1985 = vunpack.c.l.b16 %v438
    %v1986 = vunpack.c.h.b16 %v438
    %v1987 = vunpack.c.l.b16 %v439
    %v1988 = vunpack.c.h.b16 %v439
    %v1989 = vunpack.c.l.b16 %v440
    %v1990 = vunpack.c.h.b16 %v440
    %v1991 = vunpack.c.l.b16 %v441
    %v1992 = vunpack.c.h.b16 %v441
    %v1993 = vunpack.c.l.b16 %v442
    %v1994 = vunpack.c.h.b16 %v442
    %v1995 = vunpack.c.l.b16 %v443
    %v1996 = vunpack.c.h.b16 %v443
    %v1997 = vunpack.c.l.b16 %v444
    %v1998 = vunpack.c.h.b16 %v444
    %v1999 = vunpack.c.l.b16 %v445
    %v2000 = vunpack.c.h.b16 %v445
    %v2001 = vunpack.c.l.b16 %v446
    %v2002 = vunpack.c.h.b16 %v446
    %v2003 = vunpack.c.l.b16 %v447
    %v2004 = vunpack.c.h.b16 %v447
    %v2005 = vunpack.c.l.b16 %v448
    %v2006 = vunpack.c.h.b16 %v448
    %v2007 = vunpack.c.l.b16 %v449
    %v2008 = vunpack.c.h.b16 %v449
    %v2009 = vunpack.c.l.b16 %v450
    %v2010 = vunpack.c.h.b16 %v450
    %v2011 = vunpack.c.l.b16 %v451
    %v2012 = vunpack.c.h.b16 %v451
    %v2013 = vunpack.c.l.b16 %v452
    %v2014 = vunpack.c.h.b16 %v452
    %v2015 = vunpack.c.l.b16 %v453
    %v2016 = vunpack.c.h.b16 %v453
    %v2017 = vunpack.c.l.b16 %v454
    %v2018 = vunpack.c.h.b16 %v454
    %v2019 = vunpack.c.l.b16 %v455
    %v2020 = vunpack.c.h.b16 %v455
    %v2021 = vunpack.c.l.b16 %v456
    %v2022 = vunpack.c.h.b16 %v456
    %v2023 = vunpack.c.l.b16 %v457
    %v2024 = vunpack.c.h.b16 %v457
    %v2025 = vunpack.c.l.b16 %v458
    %v2026 = vunpack.c.h.b16 %v458
    %v2027 = vunpack.c.l.b16 %v459
    %v2028 = vunpack.c.h.b16 %v459
    %v2029 = vunpack.c.l.b16 %v460
    %v2030 = vunpack.c.h.b16 %v460
    %v2031 = vunpack.c.l.b16 %v461
    %v2032 = vunpack.c.h.b16 %v461
    %v2033 = vunpack.c.l.b16 %v462
    %v2034 = vunpack.c.h.b16 %v462
    %v2035 = vunpack.c.l.b16 %v463
    %v2036 = vunpack.c.h.b16 %v463
    %v2037 = vunpack.c.l.b16 %v464
    %v2038 = vunpack.c.h.b16 %v464
    %v2039 = vunpack.c.l.b16 %v465
    %v2040 = vunpack.c.h.b16 %v465
    %v2041 = vunpack.c.l.b16 %v466
    %v2042 = vunpack.c.h.b16 %v466
    %v2043 = vunpack.c.l.b16 %v467
    %v2044 = vunpack.c.h.b16 %v467
    %v2045 = vunpack.c.l.b16 %v468
    %v2046 = vunpack.c.h.b16 %v468
    %v2047 = vunpack.c.l.b16 %v469
    %v2048 = vunpack.c.h.b16 %v469
    %v2049 = vunpack.c.l.b16 %v470
    %v2050 = vunpack.c.h.b16 %v470
    %v2051 = vunpack.c.l.b16 %v471
    %v2052 = vunpack.c.h.b16 %v471
    %v2053 = vunpack.c.l.b16 %v472
    %v2054 = vunpack.c.h.b16 %v472
    %v2055 = vunpack.c.l.b16 %v473
    %v2056 = vunpack.c.h.b16 %v473
    %v2057 = vunpack.c.l.b16 %v474
    %v2058 = vunpack.c.h.b16 %v474
    %v2059 = vunpack.c.l.b16 %v475
    %v2060 = vunpack.c.h.b16 %v475
    %v2061 = vunpack.c.l.b16 %v476
    %v2062 = vunpack.c.h.b16 %v476
    %v2063 = vunpack.c.l.b16 %v477
    %v2064 = vunpack.c.h.b16 %v477
    %v2065 = vunpack.c.l.b16 %v478
    %v2066 = vunpack.c.h.b16 %v478
    %v2067 = vunpack.c.l.b16 %v479
    %v2068 = vunpack.c.h.b16 %v479
    %v2069 = vunpack.c.l.b16 %v480
    %v2070 = vunpack.c.h.b16 %v480
    %v2071 = vunpack.c.l.b16 %v481
    %v2072 = vunpack.c.h.b16 %v481
    %v2073 = vunpack.c.l.b16 %v482
    %v2074 = vunpack.c.h.b16 %v482
    %v2075 = vunpack.c.l.b16 %v483
    %v2076 = vunpack.c.h.b16 %v483
    %v2077 = vunpack.c.l.b16 %v484
    %v2078 = vunpack.c.h.b16 %v484
    %v2079 = vunpack.c.l.b16 %v485
    %v2080 = vunpack.c.h.b16 %v485
    %v2081 = vunpack.c.l.b16 %v486
    %v2082 = vunpack.c.h.b16 %v486
    %v2083 = vunpack.c.l.b16 %v487
    %v2084 = vunpack.c.h.b16 %v487
    %v2085 = vunpack.c.l.b16 %v488
    %v2086 = vunpack.c.h.b16 %v488
    %v2087 = vunpack.c.l.b16 %v489
    %v2088 = vunpack.c.h.b16 %v489
    %v2089 = vunpack.c.l.b16 %v490
    %v2090 = vunpack.c.h.b16 %v490
    %v2091 = vunpack.c.l.b16 %v491
    %v2092 = vunpack.c.h.b16 %v491
    %v2093 = vunpack.c.l.b16 %v492
    %v2094 = vunpack.c.h.b16 %v492
    %v2095 = vunpack.c.l.b16 %v493
    %v2096 = vunpack.c.h.b16 %v493
    %v2097 = vunpack.c.l.b16 %v494
    %v2098 = vunpack.c.h.b16 %v494
    %v2099 = vunpack.c.l.b16 %v495
    %v2100 = vunpack.c.h.b16 %v495
    %v2101 = vunpack.c.l.b16 %v496
    %v2102 = vunpack.c.h.b16 %v496
    %v2103 = vunpack.c.l.b16 %v497
    %v2104 = vunpack.c.h.b16 %v497
    %v2105 = vunpack.c.l.b16 %v498
    %v2106 = vunpack.c.h.b16 %v498
    %v2107 = vunpack.c.l.b16 %v499
    %v2108 = vunpack.c.h.b16 %v499
    %v2109 = vunpack.c.l.b16 %v500
    %v2110 = vunpack.c.h.b16 %v500
    %v2111 = vunpack.c.l.b16 %v501
    %v2112 = vunpack.c.h.b16 %v501
    %v2113 = vunpack.c.l.b16 %v502
    %v2114 = vunpack.c.h.b16 %v502
    %v2115 = vunpack.c.l.b16 %v503
    %v2116 = vunpack.c.h.b16 %v503
    %v2117 = vunpack.c.l.b16 %v504
    %v2118 = vunpack.c.h.b16 %v504
    %v2119 = vunpack.c.l.b16 %v505
    %v2120 = vunpack.c.h.b16 %v505
    %v2121 = vunpack.c.l.b16 %v506
    %v2122 = vunpack.c.h.b16 %v506
    %v2123 = vunpack.c.l.b16 %v507
    %v2124 = vunpack.c.h.b16 %v507
    %v2125 = vunpack.c.l.b16 %v508
    %v2126 = vunpack.c.h.b16 %v508
    %v2127 = vunpack.c.l.b16 %v509
    %v2128 = vunpack.c.h.b16 %v509
    %v2129 = vunpack.c.l.b16 %v510
    %v2130 = vunpack.c.h.b16 %v510
    %v2131 = vunpack.c.l.b16 %v511
    %v2132 = vunpack.c.h.b16 %v511
    %v2133 = vunpack.c.l.b16 %v512
    %v2134 = vunpack.c.h.b16 %v512
    %v2135 = vunpack.c.l.b16 %v513
    %v2136 = vunpack.c.h.b16 %v513
    %v2137 = vunpack.c.l.b16 %v514
    %v2138 = vunpack.c.h.b16 %v514
    %v2139 = vunpack.c.l.b16 %v515
    %v2140 = vunpack.c.h.b16 %v515
    %v2141 = vunpack.c.l.b16 %v516
    %v2142 = vunpack.c.h.b16 %v516
    %v2143 = vunpack.c.l.b16 %v517
    %v2144 = vunpack.c.h.b16 %v517
    %v2145 = vunpack.c.l.b16 %v518
    %v2146 = vunpack.c.h.b16 %v518
    %v2147 = vunpack.c.l.b16 %v519
    %v2148 = vunpack.c.h.b16 %v519
    %v2149 = vunpack.c.l.b16 %v520
    %v2150 = vunpack.c.h.b16 %v520
    %v2151 = vunpack.c.l.b16 %v521
    %v2152 = vunpack.c.h.b16 %v521
    %v2153 = vunpack.c.l.b16 %v522
    %v2154 = vunpack.c.h.b16 %v522
    %v2155 = vunpack.c.l.b16 %v523
    %v2156 = vunpack.c.h.b16 %v523
    %v2157 = vunpack.c.l.b16 %v524
    %v2158 = vunpack.c.h.b16 %v524
    %v2159 = vunpack.c.l.b16 %v525
    %v2160 = vunpack.c.h.b16 %v525
    %v2161 = vunpack.c.l.b16 %v526
    %v2162 = vunpack.c.h.b16 %v526
    %v2163 = vunpack.c.l.b16 %v527
    %v2164 = vunpack.c.h.b16 %v527
    %v2165 = vunpack.c.l.b16 %v528
    %v2166 = vunpack.c.h.b16 %v528
    %v2167 = vpack.c.b16 %v1151, %v1143
    %v2168 = vpack.c.b16 %v1152, %v1144
    %v2169 = vpack.c.b16 %v1153, %v1145
    %v2170 = vpack.c.b16 %v1154, %v1146
    %v2171 = vpack.c.b16 %v1155, %v1147
    %v2172 = vpack.c.b16 %v1156, %v1148
    %v2173 = vpack.c.b16 %v1157, %v1149
    %v2174 = vpack.c.b16 %v1158, %v1150
    %v2175 = vpack.c.b16 %v1167, %v1159
    %v2176 = vpack.c.b16 %v1168, %v1160
    %v2177 = vpack.c.b16 %v1169, %v1161
    %v2178 = vpack.c.b16 %v1170, %v1162
    %v2179 = vpack.c.b16 %v1171, %v1163
    %v2180 = vpack.c.b16 %v1172, %v1164
    %v2181 = vpack.c.b16 %v1173, %v1165
    %v2182 = vpack.c.b16 %v1174, %v1166
    %v2183 = vpack.c.b16 %v1183, %v1175
    %v2184 = vpack.c.b16 %v1184, %v1176
    %v2185 = vpack.c.b16 %v1185, %v1177
    %v2186 = vpack.c.b16 %v1186, %v1178
    %v2187 = vpack.c.b16 %v1187, %v1179
    %v2188 = vpack.c.b16 %v1188, %v1180
    %v2189 = vpack.c.b16 %v1189, %v1181
    %v2190 = vpack.c.b16 %v1190, %v1182
    %v2191 = vpack.c.b16 %v1199, %v1191
    %v2192 = vpack.c.b16 %v1200, %v1192
    %v2193 = vpack.c.b16 %v1201, %v1193
    %v2194 = vpack.c.b16 %v1202, %v1194
    %v2195 = vpack.c.b16 %v1203, %v1195
    %v2196 = vpack.c.b16 %v1204, %v1196
    %v2197 = vpack.c.b16 %v1205, %v1197
    %v2198 = vpack.c.b16 %v1206, %v1198
    %v2199 = vpack.c.b16 %v1215, %v1207
    %v2200 = vpack.c.b16 %v1216, %v1208
    %v2201 = vpack.c.b16 %v1217, %v1209
    %v2202 = vpack.c.b16 %v1218, %v1210
    %v2203 = vpack.c.b16 %v1219, %v1211
    %v2204 = vpack.c.b16 %v1220, %v1212
    %v2205 = vpack.c.b16 %v1221, %v1213
    %v2206 = vpack.c.b16 %v1222, %v1214
    %v2207 = vpack.c.b16 %v1231, %v1223
    %v2208 = vpack.c.b16 %v1232, %v1224
    %v2209 = vpack.c.b16 %v1233, %v1225
    %v2210 = vpack.c.b16 %v1234, %v1226
    %v2211 = vpack.c.b16 %v1235, %v1227
    %v2212 = vpack.c.b16 %v1236, %v1228
    %v2213 = vpack.c.b16 %v1237, %v1229
    %v2214 = vpack.c.b16 %v1238, %v1230
    %v2215 = vpack.c.b16 %v1247, %v1239
    %v2216 = vpack.c.b16 %v1248, %v1240
    %v2217 = vpack.c.b16 %v1249, %v1241
    %v2218 = vpack.c.b16 %v1250, %v1242
    %v2219 = vpack.c.b16 %v1251, %v1243
    %v2220 = vpack.c.b16 %v1252, %v1244
    %v2221 = vpack.c.b16 %v1253, %v1245
    %v2222 = vpack.c.b16 %v1254, %v1246
    %v2223 = vpack.c.b16 %v1263, %v1255
    %v2224 = vpack.c.b16 %v1264, %v1256
    %v2225 = vpack.c.b16 %v1265, %v1257
    %v2226 = vpack.c.b16 %v1266, %v1258
    %v2227 = vpack.c.b16 %v1267, %v1259
    %v2228 = vpack.c.b16 %v1268, %v1260
    %v2229 = vpack.c.b16 %v1269, %v1261
    %v2230 = vpack.c.b16 %v1270, %v1262
    %v2231 = vpack.c.b16 %v1279, %v1271
    %v2232 = vpack.c.b16 %v1280, %v1272
    %v2233 = vpack.c.b16 %v1281, %v1273
    %v2234 = vpack.c.b16 %v1282, %v1274
    %v2235 = vpack.c.b16 %v1283, %v1275
    %v2236 = vpack.c.b16 %v1284, %v1276
    %v2237 = vpack.c.b16 %v1285, %v1277
    %v2238 = vpack.c.b16 %v1286, %v1278
    %v2239 = vpack.c.b16 %v1295, %v1287
    %v2240 = vpack.c.b16 %v1296, %v1288
    %v2241 = vpack.c.b16 %v1297, %v1289
    %v2242 = vpack.c.b16 %v1298, %v1290
    %v2243 = vpack.c.b16 %v1299, %v1291
    %v2244 = vpack.c.b16 %v1300, %v1292
    %v2245 = vpack.c.b16 %v1301, %v1293
    %v2246 = vpack.c.b16 %v1302, %v1294
    %v2247 = vpack.c.b16 %v1311, %v1303
    %v2248 = vpack.c.b16 %v1312, %v1304
    %v2249 = vpack.c.b16 %v1313, %v1305
    %v2250 = vpack.c.b16 %v1314, %v1306
    %v2251 = vpack.c.b16 %v1315, %v1307
    %v2252 = vpack.c.b16 %v1316, %v1308
    %v2253 = vpack.c.b16 %v1317, %v1309
    %v2254 = vpack.c.b16 %v1318, %v1310
    %v2255 = vpack.c.b16 %v1327, %v1319
    %v2256 = vpack.c.b16 %v1328, %v1320
    %v2257 = vpack.c.b16 %v1329, %v1321
    %v2258 = vpack.c.b16 %v1330, %v1322
    %v2259 = vpack.c.b16 %v1331, %v1323
    %v2260 = vpack.c.b16 %v1332, %v1324
    %v2261 = vpack.c.b16 %v1333, %v1325
    %v2262 = vpack.c.b16 %v1334, %v1326
    %v2263 = vpack.c.b16 %v1343, %v1335
    %v2264 = vpack.c.b16 %v1344, %v1336
    %v2265 = vpack.c.b16 %v1345, %v1337
    %v2266 = vpack.c.b16 %v1346, %v1338
    %v2267 = vpack.c.b16 %v1347, %v1339
    %v2268 = vpack.c.b16 %v1348, %v1340
    %v2269 = vpack.c.b16 %v1349, %v1341
    %v2270 = vpack.c.b16 %v1350, %v1342
    %v2271 = vpack.c.b16 %v1359, %v1351
    %v2272 = vpack.c.b16 %v1360, %v1352
    %v2273 = vpack.c.b16 %v1361, %v1353
    %v2274 = vpack.c.b16 %v1362, %v1354
    %v2275 = vpack.c.b16 %v1363, %v1355
    %v2276 = vpack.c.b16 %v1364, %v1356
    %v2277 = vpack.c.b16 %v1365, %v1357
    %v2278 = vpack.c.b16 %v1366, %v1358
    %v2279 = vpack.c.b16 %v1375, %v1367
    %v2280 = vpack.c.b16 %v1376, %v1368
    %v2281 = vpack.c.b16 %v1377, %v1369
    %v2282 = vpack.c.b16 %v1378, %v1370
    %v2283 = vpack.c.b16 %v1379, %v1371
    %v2284 = vpack.c.b16 %v1380, %v1372
    %v2285 = vpack.c.b16 %v1381, %v1373
    %v2286 = vpack.c.b16 %v1382, %v1374
    %v2287 = vpack.c.b16 %v1391, %v1383
    %v2288 = vpack.c.b16 %v1392, %v1384
    %v2289 = vpack.c.b16 %v1393, %v1385
    %v2290 = vpack.c.b16 %v1394, %v1386
    %v2291 = vpack.c.b16 %v1395, %v1387
    %v2292 = vpack.c.b16 %v1396, %v1388
    %v2293 = vpack.c.b16 %v1397, %v1389
    %v2294 = vpack.c.b16 %v1398, %v1390
    %v2295 = vpack.c.b16 %v1407, %v1399
    %v2296 = vpack.c.b16 %v1408, %v1400
    %v2297 = vpack.c.b16 %v1409, %v1401
    %v2298 = vpack.c.b16 %v1410, %v1402
    %v2299 = vpack.c.b16 %v1411, %v1403
    %v2300 = vpack.c.b16 %v1412, %v1404
    %v2301 = vpack.c.b16 %v1413, %v1405
    %v2302 = vpack.c.b16 %v1414, %v1406
    %v2303 = vpack.c.b16 %v1423, %v1415
    %v2304 = vpack.c.b16 %v1424, %v1416
    %v2305 = vpack.c.b16 %v1425, %v1417
    %v2306 = vpack.c.b16 %v1426, %v1418
    %v2307 = vpack.c.b16 %v1427, %v1419
    %v2308 = vpack.c.b16 %v1428, %v1420
    %v2309 = vpack.c.b16 %v1429, %v1421
    %v2310 = vpack.c.b16 %v1430, %v1422
    %v2311 = vpack.c.b16 %v1439, %v1431
    %v2312 = vpack.c.b16 %v1440, %v1432
    %v2313 = vpack.c.b16 %v1441, %v1433
    %v2314 = vpack.c.b16 %v1442, %v1434
    %v2315 = vpack.c.b16 %v1443, %v1435
    %v2316 = vpack.c.b16 %v1444, %v1436
    %v2317 = vpack.c.b16 %v1445, %v1437
    %v2318 = vpack.c.b16 %v1446, %v1438
    %v2319 = vpack.c.b16 %v1455, %v1447
    %v2320 = vpack.c.b16 %v1456, %v1448
    %v2321 = vpack.c.b16 %v1457, %v1449
    %v2322 = vpack.c.b16 %v1458, %v1450
    %v2323 = vpack.c.b16 %v1459, %v1451
    %v2324 = vpack.c.b16 %v1460, %v1452
    %v2325 = vpack.c.b16 %v1461, %v1453
    %v2326 = vpack.c.b16 %v1462, %v1454
    %v2327 = vpack.c.b16 %v1471, %v1463
    %v2328 = vpack.c.b16 %v1472, %v1464
    %v2329 = vpack.c.b16 %v1473, %v1465
    %v2330 = vpack.c.b16 %v1474, %v1466
    %v2331 = vpack.c.b16 %v1475, %v1467
    %v2332 = vpack.c.b16 %v1476, %v1468
    %v2333 = vpack.c.b16 %v1477, %v1469
    %v2334 = vpack.c.b16 %v1478, %v1470
    %v2335 = vpack.c.b16 %v1487, %v1479
    %v2336 = vpack.c.b16 %v1488, %v1480
    %v2337 = vpack.c.b16 %v1489, %v1481
    %v2338 = vpack.c.b16 %v1490, %v1482
    %v2339 = vpack.c.b16 %v1491, %v1483
    %v2340 = vpack.c.b16 %v1492, %v1484
    %v2341 = vpack.c.b16 %v1493, %v1485
    %v2342 = vpack.c.b16 %v1494, %v1486
    %v2343 = vpack.c.b16 %v1503, %v1495
    %v2344 = vpack.c.b16 %v1504, %v1496
    %v2345 = vpack.c.b16 %v1505, %v1497
    %v2346 = vpack.c.b16 %v1506, %v1498
    %v2347 = vpack.c.b16 %v1507, %v1499
    %v2348 = vpack.c.b16 %v1508, %v1500
    %v2349 = vpack.c.b16 %v1509, %v1501
    %v2350 = vpack.c.b16 %v1510, %v1502
    %v2351 = vpack.c.b16 %v1519, %v1511
    %v2352 = vpack.c.b16 %v1520, %v1512
    %v2353 = vpack.c.b16 %v1521, %v1513
    %v2354 = vpack.c.b16 %v1522, %v1514
    %v2355 = vpack.c.b16 %v1523, %v1515
    %v2356 = vpack.c.b16 %v1524, %v1516
    %v2357 = vpack.c.b16 %v1525, %v1517
    %v2358 = vpack.c.b16 %v1526, %v1518
    %v2359 = vpack.c.b16 %v1535, %v1527
    %v2360 = vpack.c.b16 %v1536, %v1528
    %v2361 = vpack.c.b16 %v1537, %v1529
    %v2362 = vpack.c.b16 %v1538, %v1530
    %v2363 = vpack.c.b16 %v1539, %v1531
    %v2364 = vpack.c.b16 %v1540, %v1532
    %v2365 = vpack.c.b16 %v1541, %v1533
    %v2366 = vpack.c.b16 %v1542, %v1534
    %v2367 = vpack.c.b16 %v1551, %v1543
    %v2368 = vpack.c.b16 %v1552, %v1544
    %v2369 = vpack.c.b16 %v1553, %v1545
    %v2370 = vpack.c.b16 %v1554, %v1546
    %v2371 = vpack.c.b16 %v1555, %v1547
    %v2372 = vpack.c.b16 %v1556, %v1548
    %v2373 = vpack.c.b16 %v1557, %v1549
    %v2374 = vpack.c.b16 %v1558, %v1550
    %v2375 = vpack.c.b16 %v1567, %v1559
    %v2376 = vpack.c.b16 %v1568, %v1560
    %v2377 = vpack.c.b16 %v1569, %v1561
    %v2378 = vpack.c.b16 %v1570, %v1562
    %v2379 = vpack.c.b16 %v1571, %v1563
    %v2380 = vpack.c.b16 %v1572, %v1564
    %v2381 = vpack.c.b16 %v1573, %v1565
    %v2382 = vpack.c.b16 %v1574, %v1566
    %v2383 = vpack.c.b16 %v1583, %v1575
    %v2384 = vpack.c.b16 %v1584, %v1576
    %v2385 = vpack.c.b16 %v1585, %v1577
    %v2386 = vpack.c.b16 %v1586, %v1578
    %v2387 = vpack.c.b16 %v1587, %v1579
    %v2388 = vpack.c.b16 %v1588, %v1580
    %v2389 = vpack.c.b16 %v1589, %v1581
    %v2390 = vpack.c.b16 %v1590, %v1582
    %v2391 = vpack.c.b16 %v1599, %v1591
    %v2392 = vpack.c.b16 %v1600, %v1592
    %v2393 = vpack.c.b16 %v1601, %v1593
    %v2394 = vpack.c.b16 %v1602, %v1594
    %v2395 = vpack.c.b16 %v1603, %v1595
    %v2396 = vpack.c.b16 %v1604, %v1596
    %v2397 = vpack.c.b16 %v1605, %v1597
    %v2398 = vpack.c.b16 %v1606, %v1598
    %v2399 = vpack.c.b16 %v1615, %v1607
    %v2400 = vpack.c.b16 %v1616, %v1608
    %v2401 = vpack.c.b16 %v1617, %v1609
    %v2402 = vpack.c.b16 %v1618, %v1610
    %v2403 = vpack.c.b16 %v1619, %v1611
    %v2404 = vpack.c.b16 %v1620, %v1612
    %v2405 = vpack.c.b16 %v1621, %v1613
    %v2406 = vpack.c.b16 %v1622, %v1614
    %v2407 = vpack.c.b16 %v1631, %v1623
    %v2408 = vpack.c.b16 %v1632, %v1624
    %v2409 = vpack.c.b16 %v1633, %v1625
    %v2410 = vpack.c.b16 %v1634, %v1626
    %v2411 = vpack.c.b16 %v1635, %v1627
    %v2412 = vpack.c.b16 %v1636, %v1628
    %v2413 = vpack.c.b16 %v1637, %v1629
    %v2414 = vpack.c.b16 %v1638, %v1630
    %v2415 = vpack.c.b16 %v1647, %v1639
    %v2416 = vpack.c.b16 %v1648, %v1640
    %v2417 = vpack.c.b16 %v1649, %v1641
    %v2418 = vpack.c.b16 %v1650, %v1642
    %v2419 = vpack.c.b16 %v1651, %v1643
    %v2420 = vpack.c.b16 %v1652, %v1644
    %v2421 = vpack.c.b16 %v1653, %v1645
    %v2422 = vpack.c.b16 %v1654, %v1646
    %v2423 = vpack.c.b16 %v1663, %v1655
    %v2424 = vpack.c.b16 %v1664, %v1656
    %v2425 = vpack.c.b16 %v1665, %v1657
    %v2426 = vpack.c.b16 %v1666, %v1658
    %v2427 = vpack.c.b16 %v1667, %v1659
    %v2428 = vpack.c.b16 %v1668, %v1660
    %v2429 = vpack.c.b16 %v1669, %v1661
    %v2430 = vpack.c.b16 %v1670, %v1662
    %v2431 = vpack.c.b16 %v1679, %v1671
    %v2432 = vpack.c.b16 %v1680, %v1672
    %v2433 = vpack.c.b16 %v1681, %v1673
    %v2434 = vpack.c.b16 %v1682, %v1674
    %v2435 = vpack.c.b16 %v1683, %v1675
    %v2436 = vpack.c.b16 %v1684, %v1676
    %v2437 = vpack.c.b16 %v1685, %v1677
    %v2438 = vpack.c.b16 %v1686, %v1678
    %v2439 = vpack.c.b16 %v1695, %v1687
    %v2440 = vpack.c.b16 %v1696, %v1688
    %v2441 = vpack.c.b16 %v1697, %v1689
    %v2442 = vpack.c.b16 %v1698, %v1690
    %v2443 = vpack.c.b16 %v1699, %v1691
    %v2444 = vpack.c.b16 %v1700, %v1692
    %v2445 = vpack.c.b16 %v1701, %v1693
    %v2446 = vpack.c.b16 %v1702, %v1694
    %v2447 = vpack.c.b16 %v1711, %v1703
    %v2448 = vpack.c.b16 %v1712, %v1704
    %v2449 = vpack.c.b16 %v1713, %v1705
    %v2450 = vpack.c.b16 %v1714, %v1706
    %v2451 = vpack.c.b16 %v1715, %v1707
    %v2452 = vpack.c.b16 %v1716, %v1708
    %v2453 = vpack.c.b16 %v1717, %v1709
    %v2454 = vpack.c.b16 %v1718, %v1710
    %v2455 = vpack.c.b16 %v1727, %v1719
    %v2456 = vpack.c.b16 %v1728, %v1720
    %v2457 = vpack.c.b16 %v1729, %v1721
    %v2458 = vpack.c.b16 %v1730, %v1722
    %v2459 = vpack.c.b16 %v1731, %v1723
    %v2460 = vpack.c.b16 %v1732, %v1724
    %v2461 = vpack.c.b16 %v1733, %v1725
    %v2462 = vpack.c.b16 %v1734, %v1726
    %v2463 = vpack.c.b16 %v1743, %v1735
    %v2464 = vpack.c.b16 %v1744, %v1736
    %v2465 = vpack.c.b16 %v1745, %v1737
    %v2466 = vpack.c.b16 %v1746, %v1738
    %v2467 = vpack.c.b16 %v1747, %v1739
    %v2468 = vpack.c.b16 %v1748, %v1740
    %v2469 = vpack.c.b16 %v1749, %v1741
    %v2470 = vpack.c.b16 %v1750, %v1742
    %v2471 = vpack.c.b16 %v1759, %v1751
    %v2472 = vpack.c.b16 %v1760, %v1752
    %v2473 = vpack.c.b16 %v1761, %v1753
    %v2474 = vpack.c.b16 %v1762, %v1754
    %v2475 = vpack.c.b16 %v1763, %v1755
    %v2476 = vpack.c.b16 %v1764, %v1756
    %v2477 = vpack.c.b16 %v1765, %v1757
    %v2478 = vpack.c.b16 %v1766, %v1758
    %v2479 = vpack.c.b16 %v1775, %v1767
    %v2480 = vpack.c.b16 %v1776, %v1768
    %v2481 = vpack.c.b16 %v1777, %v1769
    %v2482 = vpack.c.b16 %v1778, %v1770
    %v2483 = vpack.c.b16 %v1779, %v1771
    %v2484 = vpack.c.b16 %v1780, %v1772
    %v2485 = vpack.c.b16 %v1781, %v1773
    %v2486 = vpack.c.b16 %v1782, %v1774
    %v2487 = vpack.c.b16 %v1791, %v1783
    %v2488 = vpack.c.b16 %v1792, %v1784
    %v2489 = vpack.c.b16 %v1793, %v1785
    %v2490 = vpack.c.b16 %v1794, %v1786
    %v2491 = vpack.c.b16 %v1795, %v1787
    %v2492 = vpack.c.b16 %v1796, %v1788
    %v2493 = vpack.c.b16 %v1797, %v1789
    %v2494 = vpack.c.b16 %v1798, %v1790
    %v2495 = vpack.c.b16 %v1807, %v1799
    %v2496 = vpack.c.b16 %v1808, %v1800
    %v2497 = vpack.c.b16 %v1809, %v1801
    %v2498 = vpack.c.b16 %v1810, %v1802
    %v2499 = vpack.c.b16 %v1811, %v1803
    %v2500 = vpack.c.b16 %v1812, %v1804
    %v2501 = vpack.c.b16 %v1813, %v1805
    %v2502 = vpack.c.b16 %v1814, %v1806
    %v2503 = vpack.c.b16 %v1823, %v1815
    %v2504 = vpack.c.b16 %v1824, %v1816
    %v2505 = vpack.c.b16 %v1825, %v1817
    %v2506 = vpack.c.b16 %v1826, %v1818
    %v2507 = vpack.c.b16 %v1827, %v1819
    %v2508 = vpack.c.b16 %v1828, %v1820
    %v2509 = vpack.c.b16 %v1829, %v1821
    %v2510 = vpack.c.b16 %v1830, %v1822
    %v2511 = vpack.c.b16 %v1839, %v1831
    %v2512 = vpack.c.b16 %v1840, %v1832
    %v2513 = vpack.c.b16 %v1841, %v1833
    %v2514 = vpack.c.b16 %v1842, %v1834
    %v2515 = vpack.c.b16 %v1843, %v1835
    %v2516 = vpack.c.b16 %v1844, %v1836
    %v2517 = vpack.c.b16 %v1845, %v1837
    %v2518 = vpack.c.b16 %v1846, %v1838
    %v2519 = vpack.c.b16 %v1855, %v1847
    %v2520 = vpack.c.b16 %v1856, %v1848
    %v2521 = vpack.c.b16 %v1857, %v1849
    %v2522 = vpack.c.b16 %v1858, %v1850
    %v2523 = vpack.c.b16 %v1859, %v1851
    %v2524 = vpack.c.b16 %v1860, %v1852
    %v2525 = vpack.c.b16 %v1861, %v1853
    %v2526 = vpack.c.b16 %v1862, %v1854
    %v2527 = vpack.c.b16 %v1871, %v1863
    %v2528 = vpack.c.b16 %v1872, %v1864
    %v2529 = vpack.c.b16 %v1873, %v1865
    %v2530 = vpack.c.b16 %v1874, %v1866
    %v2531 = vpack.c.b16 %v1875, %v1867
    %v2532 = vpack.c.b16 %v1876, %v1868
    %v2533 = vpack.c.b16 %v1877, %v1869
    %v2534 = vpack.c.b16 %v1878, %v1870
    %v2535 = vpack.c.b16 %v1887, %v1879
    %v2536 = vpack.c.b16 %v1888, %v1880
    %v2537 = vpack.c.b16 %v1889, %v1881
    %v2538 = vpack.c.b16 %v1890, %v1882
    %v2539 = vpack.c.b16 %v1891, %v1883
    %v2540 = vpack.c.b16 %v1892, %v1884
    %v2541 = vpack.c.b16 %v1893, %v1885
    %v2542 = vpack.c.b16 %v1894, %v1886
    %v2543 = vpack.c.b16 %v1903, %v1895
    %v2544 = vpack.c.b16 %v1904, %v1896
    %v2545 = vpack.c.b16 %v1905, %v1897
    %v2546 = vpack.c.b16 %v1906, %v1898
    %v2547 = vpack.c.b16 %v1907, %v1899
    %v2548 = vpack.c.b16 %v1908, %v1900
    %v2549 = vpack.c.b16 %v1909, %v1901
    %v2550 = vpack.c.b16 %v1910, %v1902
    %v2551 = vpack.c.b16 %v1919, %v1911
    %v2552 = vpack.c.b16 %v1920, %v1912
    %v2553 = vpack.c.b16 %v1921, %v1913
    %v2554 = vpack.c.b16 %v1922, %v1914
    %v2555 = vpack.c.b16 %v1923, %v1915
    %v2556 = vpack.c.b16 %v1924, %v1916
    %v2557 = vpack.c.b16 %v1925, %v1917
    %v2558 = vpack.c.b16 %v1926, %v1918
    %v2559 = vpack.c.b16 %v1935, %v1927
    %v2560 = vpack.c.b16 %v1936, %v1928
    %v2561 = vpack.c.b16 %v1937, %v1929
    %v2562 = vpack.c.b16 %v1938, %v1930
    %v2563 = vpack.c.b16 %v1939, %v1931
    %v2564 = vpack.c.b16 %v1940, %v1932
    %v2565 = vpack.c.b16 %v1941, %v1933
    %v2566 = vpack.c.b16 %v1942, %v1934
    %v2567 = vpack.c.b16 %v1951, %v1943
    %v2568 = vpack.c.b16 %v1952, %v1944
    %v2569 = vpack.c.b16 %v1953, %v1945
    %v2570 = vpack.c.b16 %v1954, %v1946
    %v2571 = vpack.c.b16 %v1955, %v1947
    %v2572 = vpack.c.b16 %v1956, %v1948
    %v2573 = vpack.c.b16 %v1957, %v1949
    %v2574 = vpack.c.b16 %v1958, %v1950
    %v2575 = vpack.c.b16 %v1967, %v1959
    %v2576 = vpack.c.b16 %v1968, %v1960
    %v2577 = vpack.c.b16 %v1969, %v1961
    %v2578 = vpack.c.b16 %v1970, %v1962
    %v2579 = vpack.c.b16 %v1971, %v1963
    %v2580 = vpack.c.b16 %v1972, %v1964
    %v2581 = vpack.c.b16 %v1973, %v1965
    %v2582 = vpack.c.b16 %v1974, %v1966
    %v2583 = vpack.c.b16 %v1983, %v1975
    %v2584 = vpack.c.b16 %v1984, %v1976
    %v2585 = vpack.c.b16 %v1985, %v1977
    %v2586 = vpack.c.b16 %v1986, %v1978
    %v2587 = vpack.c.b16 %v1987, %v1979
    %v2588 = vpack.c.b16 %v1988, %v1980
    %v2589 = vpack.c.b16 %v1989, %v1981
    %v2590 = vpack.c.b16 %v1990, %v1982
    %v2591 = vpack.c.b16 %v1999, %v1991
    %v2592 = vpack.c.b16 %v2000, %v1992
    %v2593 = vpack.c.b16 %v2001, %v1993
    %v2594 = vpack.c.b16 %v2002, %v1994
    %v2595 = vpack.c.b16 %v2003, %v1995
    %v2596 = vpack.c.b16 %v2004, %v1996
    %v2597 = vpack.c.b16 %v2005, %v1997
    %v2598 = vpack.c.b16 %v2006, %v1998
    %v2599 = vpack.c.b16 %v2015, %v2007
    %v2600 = vpack.c.b16 %v2016, %v2008
    %v2601 = vpack.c.b16 %v2017, %v2009
    %v2602 = vpack.c.b16 %v2018, %v2010
    %v2603 = vpack.c.b16 %v2019, %v2011
    %v2604 = vpack.c.b16 %v2020, %v2012
    %v2605 = vpack.c.b16 %v2021, %v2013
    %v2606 = vpack.c.b16 %v2022, %v2014
    %v2607 = vpack.c.b16 %v2031, %v2023
    %v2608 = vpack.c.b16 %v2032, %v2024
    %v2609 = vpack.c.b16 %v2033, %v2025
    %v2610 = vpack.c.b16 %v2034, %v2026
    %v2611 = vpack.c.b16 %v2035, %v2027
    %v2612 = vpack.c.b16 %v2036, %v2028
    %v2613 = vpack.c.b16 %v2037, %v2029
    %v2614 = vpack.c.b16 %v2038, %v2030
    %v2615 = vpack.c.b16 %v2047, %v2039
    %v2616 = vpack.c.b16 %v2048, %v2040
    %v2617 = vpack.c.b16 %v2049, %v2041
    %v2618 = vpack.c.b16 %v2050, %v2042
    %v2619 = vpack.c.b16 %v2051, %v2043
    %v2620 = vpack.c.b16 %v2052, %v2044
    %v2621 = vpack.c.b16 %v2053, %v2045
    %v2622 = vpack.c.b16 %v2054, %v2046
    %v2623 = vpack.c.b16 %v2063, %v2055
    %v2624 = vpack.c.b16 %v2064, %v2056
    %v2625 = vpack.c.b16 %v2065, %v2057
    %v2626 = vpack.c.b16 %v2066, %v2058
    %v2627 = vpack.c.b16 %v2067, %v2059
    %v2628 = vpack.c.b16 %v2068, %v2060
    %v2629 = vpack.c.b16 %v2069, %v2061
    %v2630 = vpack.c.b16 %v2070, %v2062
    %v2631 = vpack.c.b16 %v2079, %v2071
    %v2632 = vpack.c.b16 %v2080, %v2072
    %v2633 = vpack.c.b16 %v2081, %v2073
    %v2634 = vpack.c.b16 %v2082, %v2074
    %v2635 = vpack.c.b16 %v2083, %v2075
    %v2636 = vpack.c.b16 %v2084, %v2076
    %v2637 = vpack.c.b16 %v2085, %v2077
    %v2638 = vpack.c.b16 %v2086, %v2078
    %v2639 = vpack.c.b16 %v2095, %v2087
    %v2640 = vpack.c.b16 %v2096, %v2088
    %v2641 = vpack.c.b16 %v2097, %v2089
    %v2642 = vpack.c.b16 %v2098, %v2090
    %v2643 = vpack.c.b16 %v2099, %v2091
    %v2644 = vpack.c.b16 %v2100, %v2092
    %v2645 = vpack.c.b16 %v2101, %v2093
    %v2646 = vpack.c.b16 %v2102, %v2094
    %v2647 = vpack.c.b16 %v2111, %v2103
    %v2648 = vpack.c.b16 %v2112, %v2104
    %v2649 = vpack.c.b16 %v2113, %v2105
    %v2650 = vpack.c.b16 %v2114, %v2106
    %v2651 = vpack.c.b16 %v2115, %v2107
    %v2652 = vpack.c.b16 %v2116, %v2108
    %v2653 = vpack.c.b16 %v2117, %v2109
    %v2654 = vpack.c.b16 %v2118, %v2110
    %v2655 = vpack.c.b16 %v2127, %v2119
    %v2656 = vpack.c.b16 %v2128, %v2120
    %v2657 = vpack.c.b16 %v2129, %v2121
    %v2658 = vpack.c.b16 %v2130, %v2122
    %v2659 = vpack.c.b16 %v2131, %v2123
    %v2660 = vpack.c.b16 %v2132, %v2124
    %v2661 = vpack.c.b16 %v2133, %v2125
    %v2662 = vpack.c.b16 %v2134, %v2126
    %v2663 = vpack.c.b16 %v2143, %v2135
    %v2664 = vpack.c.b16 %v2144, %v2136
    %v2665 = vpack.c.b16 %v2145, %v2137
    %v2666 = vpack.c.b16 %v2146, %v2138
    %v2667 = vpack.c.b16 %v2147, %v2139
    %v2668 = vpack.c.b16 %v2148, %v2140
    %v2669 = vpack.c.b16 %v2149, %v2141
    %v2670 = vpack.c.b16 %v2150, %v2142
    %v2671 = vpack.c.b16 %v2159, %v2151
    %v2672 = vpack.c.b16 %v2160, %v2152
    %v2673 = vpack.c.b16 %v2161, %v2153
    %v2674 = vpack.c.b16 %v2162, %v2154
    %v2675 = vpack.c.b16 %v2163, %v2155
    %v2676 = vpack.c.b16 %v2164, %v2156
    %v2677 = vpack.c.b16 %v2165, %v2157
    %v2678 = vpack.c.b16 %v2166, %v2158
    %3191 = vmatprep.subr.bf16.mxu0 %v2224
    %3192 = vmatpush1.bf16.msra.mxu0 %v2223
    %3193 = vmatprep.subr.bf16.mxu0 %v2216
    %3194 = vmatpush1.bf16.msra.mxu0 %v2215
    %3195 = vmatprep.subr.bf16.mxu0 %v2208
    %3196 = vmatpush1.bf16.msra.mxu0 %v2207
    %3197 = vmatprep.subr.bf16.mxu0 %v2200
    %3198 = vmatpush1.bf16.msra.mxu0 %v2199
    %3199 = vmatprep.subr.bf16.mxu0 %v2192
    %3200 = vmatpush1.bf16.msra.mxu0 %v2191
    %3201 = vmatprep.subr.bf16.mxu0 %v2184
    %3202 = vmatpush1.bf16.msra.mxu0 %v2183
    %3203 = vmatprep.subr.bf16.mxu0 %v2176
    %3204 = vmatpush1.bf16.msra.mxu0 %v2175
    %3205 = vmatprep.subr.bf16.mxu0 %v2168
    %3206 = vmatpush1.bf16.msra.mxu0 %v2167
    %3207 = vmatprep.subr.bf16.mxu0 %v2288
    %3208 = vmatpush2.bf16.msra.mxu0 %v2287
    %3209 = vmatprep.subr.bf16.mxu0 %v2280
    %3210 = vmatpush2.bf16.msra.mxu0 %v2279
    %3211 = vmatprep.subr.bf16.mxu0 %v2272
    %3212 = vmatpush2.bf16.msra.mxu0 %v2271
    %3213 = vmatprep.subr.bf16.mxu0 %v2264
    %3214 = vmatpush2.bf16.msra.mxu0 %v2263
    %3215 = vmatprep.subr.bf16.mxu0 %v2256
    %3216 = vmatpush2.bf16.msra.mxu0 %v2255
    %3217 = vmatprep.subr.bf16.mxu0 %v2248
    %3218 = vmatpush2.bf16.msra.mxu0 %v2247
    %3219 = vmatprep.subr.bf16.mxu0 %v2240
    %3220 = vmatpush2.bf16.msra.mxu0 %v2239
    %3221 = vmatprep.subr.bf16.mxu0 %v2232
    %3222 = vmatpush2.bf16.msra.mxu0 %v2231
    %3223 = vmatprep.mubr.bf16.mxu0 %v611
    %3224 = vmatmul.mubr.bf16.gmra.mxu0 %v597
    %v3225 = vpop.f32.mrf.mxu0
    %v3226 = vadd.f32 %v536, %v3225
    %v3227 = vpop.f32.mrf.mxu0
    %v3228 = vadd.f32 %v540, %v3227
    %v3229 = vpop.f32.mrf.mxu0
    %v3230 = vpop.f32.mrf.mxu0
    %3231 = vdwg.mxu0
    %3232 = vmatprep.subr.bf16.mxu0 %v2352
    %3233 = vmatpush1.bf16.msra.mxu0 %v2351
    %3234 = vmatprep.subr.bf16.mxu0 %v2344
    %3235 = vmatpush1.bf16.msra.mxu0 %v2343
    %3236 = vmatprep.subr.bf16.mxu0 %v2336
    %3237 = vmatpush1.bf16.msra.mxu0 %v2335
    %3238 = vmatprep.subr.bf16.mxu0 %v2328
    %3239 = vmatpush1.bf16.msra.mxu0 %v2327
    %3240 = vmatprep.subr.bf16.mxu0 %v2320
    %3241 = vmatpush1.bf16.msra.mxu0 %v2319
    %3242 = vmatprep.subr.bf16.mxu0 %v2312
    %3243 = vmatpush1.bf16.msra.mxu0 %v2311
    %3244 = vmatprep.subr.bf16.mxu0 %v2304
    %3245 = vmatpush1.bf16.msra.mxu0 %v2303
    %3246 = vmatprep.subr.bf16.mxu0 %v2296
    %3247 = vmatpush1.bf16.msra.mxu0 %v2295
    %3248 = vmatprep.subr.bf16.mxu0 %v2416
    %3249 = vmatpush2.bf16.msra.mxu0 %v2415
    %3250 = vmatprep.subr.bf16.mxu0 %v2408
    %3251 = vmatpush2.bf16.msra.mxu0 %v2407
    %3252 = vmatprep.subr.bf16.mxu0 %v2400
    %3253 = vmatpush2.bf16.msra.mxu0 %v2399
    %3254 = vmatprep.subr.bf16.mxu0 %v2392
    %3255 = vmatpush2.bf16.msra.mxu0 %v2391
    %3256 = vmatprep.subr.bf16.mxu0 %v2384
    %3257 = vmatpush2.bf16.msra.mxu0 %v2383
    %3258 = vmatprep.subr.bf16.mxu0 %v2376
    %3259 = vmatpush2.bf16.msra.mxu0 %v2375
    %3260 = vmatprep.subr.bf16.mxu0 %v2368
    %3261 = vmatpush2.bf16.msra.mxu0 %v2367
    %3262 = vmatprep.subr.bf16.mxu0 %v2360
    %3263 = vmatpush2.bf16.msra.mxu0 %v2359
    %3264 = vmatprep.mubr.bf16.mxu0 %v621
    %3265 = vmatmul.mubr.bf16.gmra.mxu0 %v619
    %v3266 = vpop.f32.mrf.mxu0
    %v3267 = vadd.f32 %v3226, %v3266
    %v3268 = vpop.f32.mrf.mxu0
    %v3269 = vadd.f32 %v3228, %v3268
    %v3270 = vpop.f32.mrf.mxu0
    %v3271 = vpop.f32.mrf.mxu0
    %3272 = vdwg.mxu0
    %3273 = vmatprep.subr.bf16.mxu0 %v2480
    %3274 = vmatpush1.bf16.msra.mxu0 %v2479
    %3275 = vmatprep.subr.bf16.mxu0 %v2472
    %3276 = vmatpush1.bf16.msra.mxu0 %v2471
    %3277 = vmatprep.subr.bf16.mxu0 %v2464
    %3278 = vmatpush1.bf16.msra.mxu0 %v2463
    %3279 = vmatprep.subr.bf16.mxu0 %v2456
    %3280 = vmatpush1.bf16.msra.mxu0 %v2455
    %3281 = vmatprep.subr.bf16.mxu0 %v2448
    %3282 = vmatpush1.bf16.msra.mxu0 %v2447
    %3283 = vmatprep.subr.bf16.mxu0 %v2440
    %3284 = vmatpush1.bf16.msra.mxu0 %v2439
    %3285 = vmatprep.subr.bf16.mxu0 %v2432
    %3286 = vmatpush1.bf16.msra.mxu0 %v2431
    %3287 = vmatprep.subr.bf16.mxu0 %v2424
    %3288 = vmatpush1.bf16.msra.mxu0 %v2423
    %3289 = vmatprep.subr.bf16.mxu0 %v2544
    %3290 = vmatpush2.bf16.msra.mxu0 %v2543
    %3291 = vmatprep.subr.bf16.mxu0 %v2536
    %3292 = vmatpush2.bf16.msra.mxu0 %v2535
    %3293 = vmatprep.subr.bf16.mxu0 %v2528
    %3294 = vmatpush2.bf16.msra.mxu0 %v2527
    %3295 = vmatprep.subr.bf16.mxu0 %v2520
    %3296 = vmatpush2.bf16.msra.mxu0 %v2519
    %3297 = vmatprep.subr.bf16.mxu0 %v2512
    %3298 = vmatpush2.bf16.msra.mxu0 %v2511
    %3299 = vmatprep.subr.bf16.mxu0 %v2504
    %3300 = vmatpush2.bf16.msra.mxu0 %v2503
    %3301 = vmatprep.subr.bf16.mxu0 %v2496
    %3302 = vmatpush2.bf16.msra.mxu0 %v2495
    %3303 = vmatprep.subr.bf16.mxu0 %v2488
    %3304 = vmatpush2.bf16.msra.mxu0 %v2487
    %3305 = vmatprep.mubr.bf16.mxu0 %v618
    %3306 = vmatmul.mubr.bf16.gmra.mxu0 %v604
    %v3307 = vpop.f32.mrf.mxu0
    %v3308 = vadd.f32 %v3267, %v3307
    %v3309 = vpop.f32.mrf.mxu0
    %v3310 = vadd.f32 %v3269, %v3309
    %v3311 = vpop.f32.mrf.mxu0
    %v3312 = vpop.f32.mrf.mxu0
    %3313 = vdwg.mxu0
    %3314 = vmatprep.subr.bf16.mxu0 %v2608
    %3315 = vmatpush1.bf16.msra.mxu0 %v2607
    %3316 = vmatprep.subr.bf16.mxu0 %v2600
    %3317 = vmatpush1.bf16.msra.mxu0 %v2599
    %3318 = vmatprep.subr.bf16.mxu0 %v2592
    %3319 = vmatpush1.bf16.msra.mxu0 %v2591
    %3320 = vmatprep.subr.bf16.mxu0 %v2584
    %3321 = vmatpush1.bf16.msra.mxu0 %v2583
    %3322 = vmatprep.subr.bf16.mxu0 %v2576
    %3323 = vmatpush1.bf16.msra.mxu0 %v2575
    %3324 = vmatprep.subr.bf16.mxu0 %v2568
    %3325 = vmatpush1.bf16.msra.mxu0 %v2567
    %3326 = vmatprep.subr.bf16.mxu0 %v2560
    %3327 = vmatpush1.bf16.msra.mxu0 %v2559
    %3328 = vmatprep.subr.bf16.mxu0 %v2552
    %3329 = vmatpush1.bf16.msra.mxu0 %v2551
    %3330 = vmatprep.subr.bf16.mxu0 %v2672
    %3331 = vmatpush2.bf16.msra.mxu0 %v2671
    %3332 = vmatprep.subr.bf16.mxu0 %v2664
    %3333 = vmatpush2.bf16.msra.mxu0 %v2663
    %3334 = vmatprep.subr.bf16.mxu0 %v2656
    %3335 = vmatpush2.bf16.msra.mxu0 %v2655
    %3336 = vmatprep.subr.bf16.mxu0 %v2648
    %3337 = vmatpush2.bf16.msra.mxu0 %v2647
    %3338 = vmatprep.subr.bf16.mxu0 %v2640
    %3339 = vmatpush2.bf16.msra.mxu0 %v2639
    %3340 = vmatprep.subr.bf16.mxu0 %v2632
    %3341 = vmatpush2.bf16.msra.mxu0 %v2631
    %3342 = vmatprep.subr.bf16.mxu0 %v2624
    %3343 = vmatpush2.bf16.msra.mxu0 %v2623
    %3344 = vmatprep.subr.bf16.mxu0 %v2616
    %3345 = vmatpush2.bf16.msra.mxu0 %v2615
    %3346 = vmatprep.mubr.bf16.mxu0 %v622
    %3347 = vmatmul.mubr.bf16.gmra.mxu0 %v620
    %v3348 = vpop.f32.mrf.mxu0
    %v3349 = vadd.f32 %v3308, %v3348
    %v3350 = vpop.f32.mrf.mxu0
    %v3351 = vadd.f32 %v3310, %v3350
    %v3352 = vpop.f32.mrf.mxu0
    %v3353 = vpop.f32.mrf.mxu0
    %3354 = vdwg.mxu0
    %3355 = vmatprep.subr.bf16.mxu0 %v2226
    %3356 = vmatpush1.bf16.msra.mxu0 %v2225
    %3357 = vmatprep.subr.bf16.mxu0 %v2218
    %3358 = vmatpush1.bf16.msra.mxu0 %v2217
    %3359 = vmatprep.subr.bf16.mxu0 %v2210
    %3360 = vmatpush1.bf16.msra.mxu0 %v2209
    %3361 = vmatprep.subr.bf16.mxu0 %v2202
    %3362 = vmatpush1.bf16.msra.mxu0 %v2201
    %3363 = vmatprep.subr.bf16.mxu0 %v2194
    %3364 = vmatpush1.bf16.msra.mxu0 %v2193
    %3365 = vmatprep.subr.bf16.mxu0 %v2186
    %3366 = vmatpush1.bf16.msra.mxu0 %v2185
    %3367 = vmatprep.subr.bf16.mxu0 %v2178
    %3368 = vmatpush1.bf16.msra.mxu0 %v2177
    %3369 = vmatprep.subr.bf16.mxu0 %v2170
    %3370 = vmatpush1.bf16.msra.mxu0 %v2169
    %3371 = vmatprep.subr.bf16.mxu0 %v2290
    %3372 = vmatpush2.bf16.msra.mxu0 %v2289
    %3373 = vmatprep.subr.bf16.mxu0 %v2282
    %3374 = vmatpush2.bf16.msra.mxu0 %v2281
    %3375 = vmatprep.subr.bf16.mxu0 %v2274
    %3376 = vmatpush2.bf16.msra.mxu0 %v2273
    %3377 = vmatprep.subr.bf16.mxu0 %v2266
    %3378 = vmatpush2.bf16.msra.mxu0 %v2265
    %3379 = vmatprep.subr.bf16.mxu0 %v2258
    %3380 = vmatpush2.bf16.msra.mxu0 %v2257
    %3381 = vmatprep.subr.bf16.mxu0 %v2250
    %3382 = vmatpush2.bf16.msra.mxu0 %v2249
    %3383 = vmatprep.subr.bf16.mxu0 %v2242
    %3384 = vmatpush2.bf16.msra.mxu0 %v2241
    %3385 = vmatprep.subr.bf16.mxu0 %v2234
    %3386 = vmatpush2.bf16.msra.mxu0 %v2233
    %3387 = vmatprep.mubr.bf16.mxu0 %v611
    %3388 = vmatmul.mubr.bf16.gmra.mxu0 %v597
    %v3389 = vpop.f32.mrf.mxu0
    %v3390 = vadd.f32 %v544, %v3389
    %v3391 = vpop.f32.mrf.mxu0
    %v3392 = vadd.f32 %v548, %v3391
    %v3393 = vpop.f32.mrf.mxu0
    %v3394 = vpop.f32.mrf.mxu0
    %3395 = vdwg.mxu0
    %3396 = vmatprep.subr.bf16.mxu0 %v2354
    %3397 = vmatpush1.bf16.msra.mxu0 %v2353
    %3398 = vmatprep.subr.bf16.mxu0 %v2346
    %3399 = vmatpush1.bf16.msra.mxu0 %v2345
    %3400 = vmatprep.subr.bf16.mxu0 %v2338
    %3401 = vmatpush1.bf16.msra.mxu0 %v2337
    %3402 = vmatprep.subr.bf16.mxu0 %v2330
    %3403 = vmatpush1.bf16.msra.mxu0 %v2329
    %3404 = vmatprep.subr.bf16.mxu0 %v2322
    %3405 = vmatpush1.bf16.msra.mxu0 %v2321
    %3406 = vmatprep.subr.bf16.mxu0 %v2314
    %3407 = vmatpush1.bf16.msra.mxu0 %v2313
    %3408 = vmatprep.subr.bf16.mxu0 %v2306
    %3409 = vmatpush1.bf16.msra.mxu0 %v2305
    %3410 = vmatprep.subr.bf16.mxu0 %v2298
    %3411 = vmatpush1.bf16.msra.mxu0 %v2297
    %3412 = vmatprep.subr.bf16.mxu0 %v2418
    %3413 = vmatpush2.bf16.msra.mxu0 %v2417
    %3414 = vmatprep.subr.bf16.mxu0 %v2410
    %3415 = vmatpush2.bf16.msra.mxu0 %v2409
    %3416 = vmatprep.subr.bf16.mxu0 %v2402
    %3417 = vmatpush2.bf16.msra.mxu0 %v2401
    %3418 = vmatprep.subr.bf16.mxu0 %v2394
    %3419 = vmatpush2.bf16.msra.mxu0 %v2393
    %3420 = vmatprep.subr.bf16.mxu0 %v2386
    %3421 = vmatpush2.bf16.msra.mxu0 %v2385
    %3422 = vmatprep.subr.bf16.mxu0 %v2378
    %3423 = vmatpush2.bf16.msra.mxu0 %v2377
    %3424 = vmatprep.subr.bf16.mxu0 %v2370
    %3425 = vmatpush2.bf16.msra.mxu0 %v2369
    %3426 = vmatprep.subr.bf16.mxu0 %v2362
    %3427 = vmatpush2.bf16.msra.mxu0 %v2361
    %3428 = vmatprep.mubr.bf16.mxu0 %v621
    %3429 = vmatmul.mubr.bf16.gmra.mxu0 %v619
    %v3430 = vpop.f32.mrf.mxu0
    %v3431 = vadd.f32 %v3390, %v3430
    %v3432 = vpop.f32.mrf.mxu0
    %v3433 = vadd.f32 %v3392, %v3432
    %v3434 = vpop.f32.mrf.mxu0
    %v3435 = vpop.f32.mrf.mxu0
    %3436 = vdwg.mxu0
    %3437 = vmatprep.subr.bf16.mxu0 %v2482
    %3438 = vmatpush1.bf16.msra.mxu0 %v2481
    %3439 = vmatprep.subr.bf16.mxu0 %v2474
    %3440 = vmatpush1.bf16.msra.mxu0 %v2473
    %3441 = vmatprep.subr.bf16.mxu0 %v2466
    %3442 = vmatpush1.bf16.msra.mxu0 %v2465
    %3443 = vmatprep.subr.bf16.mxu0 %v2458
    %3444 = vmatpush1.bf16.msra.mxu0 %v2457
    %3445 = vmatprep.subr.bf16.mxu0 %v2450
    %3446 = vmatpush1.bf16.msra.mxu0 %v2449
    %3447 = vmatprep.subr.bf16.mxu0 %v2442
    %3448 = vmatpush1.bf16.msra.mxu0 %v2441
    %3449 = vmatprep.subr.bf16.mxu0 %v2434
    %3450 = vmatpush1.bf16.msra.mxu0 %v2433
    %3451 = vmatprep.subr.bf16.mxu0 %v2426
    %3452 = vmatpush1.bf16.msra.mxu0 %v2425
    %3453 = vmatprep.subr.bf16.mxu0 %v2546
    %3454 = vmatpush2.bf16.msra.mxu0 %v2545
    %3455 = vmatprep.subr.bf16.mxu0 %v2538
    %3456 = vmatpush2.bf16.msra.mxu0 %v2537
    %3457 = vmatprep.subr.bf16.mxu0 %v2530
    %3458 = vmatpush2.bf16.msra.mxu0 %v2529
    %3459 = vmatprep.subr.bf16.mxu0 %v2522
    %3460 = vmatpush2.bf16.msra.mxu0 %v2521
    %3461 = vmatprep.subr.bf16.mxu0 %v2514
    %3462 = vmatpush2.bf16.msra.mxu0 %v2513
    %3463 = vmatprep.subr.bf16.mxu0 %v2506
    %3464 = vmatpush2.bf16.msra.mxu0 %v2505
    %3465 = vmatprep.subr.bf16.mxu0 %v2498
    %3466 = vmatpush2.bf16.msra.mxu0 %v2497
    %3467 = vmatprep.subr.bf16.mxu0 %v2490
    %3468 = vmatpush2.bf16.msra.mxu0 %v2489
    %3469 = vmatprep.mubr.bf16.mxu0 %v618
    %3470 = vmatmul.mubr.bf16.gmra.mxu0 %v604
    %v3471 = vpop.f32.mrf.mxu0
    %v3472 = vadd.f32 %v3431, %v3471
    %v3473 = vpop.f32.mrf.mxu0
    %v3474 = vadd.f32 %v3433, %v3473
    %v3475 = vpop.f32.mrf.mxu0
    %v3476 = vpop.f32.mrf.mxu0
    %3477 = vdwg.mxu0
    %3478 = vmatprep.subr.bf16.mxu0 %v2610
    %3479 = vmatpush1.bf16.msra.mxu0 %v2609
    %3480 = vmatprep.subr.bf16.mxu0 %v2602
    %3481 = vmatpush1.bf16.msra.mxu0 %v2601
    %3482 = vmatprep.subr.bf16.mxu0 %v2594
    %3483 = vmatpush1.bf16.msra.mxu0 %v2593
    %3484 = vmatprep.subr.bf16.mxu0 %v2586
    %3485 = vmatpush1.bf16.msra.mxu0 %v2585
    %3486 = vmatprep.subr.bf16.mxu0 %v2578
    %3487 = vmatpush1.bf16.msra.mxu0 %v2577
    %3488 = vmatprep.subr.bf16.mxu0 %v2570
    %3489 = vmatpush1.bf16.msra.mxu0 %v2569
    %3490 = vmatprep.subr.bf16.mxu0 %v2562
    %3491 = vmatpush1.bf16.msra.mxu0 %v2561
    %3492 = vmatprep.subr.bf16.mxu0 %v2554
    %3493 = vmatpush1.bf16.msra.mxu0 %v2553
    %3494 = vmatprep.subr.bf16.mxu0 %v2674
    %3495 = vmatpush2.bf16.msra.mxu0 %v2673
    %3496 = vmatprep.subr.bf16.mxu0 %v2666
    %3497 = vmatpush2.bf16.msra.mxu0 %v2665
    %3498 = vmatprep.subr.bf16.mxu0 %v2658
    %3499 = vmatpush2.bf16.msra.mxu0 %v2657
    %3500 = vmatprep.subr.bf16.mxu0 %v2650
    %3501 = vmatpush2.bf16.msra.mxu0 %v2649
    %3502 = vmatprep.subr.bf16.mxu0 %v2642
    %3503 = vmatpush2.bf16.msra.mxu0 %v2641
    %3504 = vmatprep.subr.bf16.mxu0 %v2634
    %3505 = vmatpush2.bf16.msra.mxu0 %v2633
    %3506 = vmatprep.subr.bf16.mxu0 %v2626
    %3507 = vmatpush2.bf16.msra.mxu0 %v2625
    %3508 = vmatprep.subr.bf16.mxu0 %v2618
    %3509 = vmatpush2.bf16.msra.mxu0 %v2617
    %3510 = vmatprep.mubr.bf16.mxu0 %v622
    %3511 = vmatmul.mubr.bf16.gmra.mxu0 %v620
    %v3512 = vpop.f32.mrf.mxu0
    %v3513 = vadd.f32 %v3472, %v3512
    %v3514 = vpop.f32.mrf.mxu0
    %v3515 = vadd.f32 %v3474, %v3514
    %v3516 = vpop.f32.mrf.mxu0
    %v3517 = vpop.f32.mrf.mxu0
    %3518 = vdwg.mxu0
    %3519 = vmatprep.subr.bf16.mxu0 %v2228
    %3520 = vmatpush1.bf16.msra.mxu0 %v2227
    %3521 = vmatprep.subr.bf16.mxu0 %v2220
    %3522 = vmatpush1.bf16.msra.mxu0 %v2219
    %3523 = vmatprep.subr.bf16.mxu0 %v2212
    %3524 = vmatpush1.bf16.msra.mxu0 %v2211
    %3525 = vmatprep.subr.bf16.mxu0 %v2204
    %3526 = vmatpush1.bf16.msra.mxu0 %v2203
    %3527 = vmatprep.subr.bf16.mxu0 %v2196
    %3528 = vmatpush1.bf16.msra.mxu0 %v2195
    %3529 = vmatprep.subr.bf16.mxu0 %v2188
    %3530 = vmatpush1.bf16.msra.mxu0 %v2187
    %3531 = vmatprep.subr.bf16.mxu0 %v2180
    %3532 = vmatpush1.bf16.msra.mxu0 %v2179
    %3533 = vmatprep.subr.bf16.mxu0 %v2172
    %3534 = vmatpush1.bf16.msra.mxu0 %v2171
    %3535 = vmatprep.subr.bf16.mxu0 %v2292
    %3536 = vmatpush2.bf16.msra.mxu0 %v2291
    %3537 = vmatprep.subr.bf16.mxu0 %v2284
    %3538 = vmatpush2.bf16.msra.mxu0 %v2283
    %3539 = vmatprep.subr.bf16.mxu0 %v2276
    %3540 = vmatpush2.bf16.msra.mxu0 %v2275
    %3541 = vmatprep.subr.bf16.mxu0 %v2268
    %3542 = vmatpush2.bf16.msra.mxu0 %v2267
    %3543 = vmatprep.subr.bf16.mxu0 %v2260
    %3544 = vmatpush2.bf16.msra.mxu0 %v2259
    %3545 = vmatprep.subr.bf16.mxu0 %v2252
    %3546 = vmatpush2.bf16.msra.mxu0 %v2251
    %3547 = vmatprep.subr.bf16.mxu0 %v2244
    %3548 = vmatpush2.bf16.msra.mxu0 %v2243
    %3549 = vmatprep.subr.bf16.mxu0 %v2236
    %3550 = vmatpush2.bf16.msra.mxu0 %v2235
    %3551 = vmatprep.mubr.bf16.mxu0 %v611
    %3552 = vmatmul.mubr.bf16.gmra.mxu0 %v597
    %v3553 = vpop.f32.mrf.mxu0
    %v3554 = vadd.f32 %v552, %v3553
    %v3555 = vpop.f32.mrf.mxu0
    %v3556 = vadd.f32 %v556, %v3555
    %v3557 = vpop.f32.mrf.mxu0
    %v3558 = vpop.f32.mrf.mxu0
    %3559 = vdwg.mxu0
    %3560 = vmatprep.subr.bf16.mxu0 %v2356
    %3561 = vmatpush1.bf16.msra.mxu0 %v2355
    %3562 = vmatprep.subr.bf16.mxu0 %v2348
    %3563 = vmatpush1.bf16.msra.mxu0 %v2347
    %3564 = vmatprep.subr.bf16.mxu0 %v2340
    %3565 = vmatpush1.bf16.msra.mxu0 %v2339
    %3566 = vmatprep.subr.bf16.mxu0 %v2332
    %3567 = vmatpush1.bf16.msra.mxu0 %v2331
    %3568 = vmatprep.subr.bf16.mxu0 %v2324
    %3569 = vmatpush1.bf16.msra.mxu0 %v2323
    %3570 = vmatprep.subr.bf16.mxu0 %v2316
    %3571 = vmatpush1.bf16.msra.mxu0 %v2315
    %3572 = vmatprep.subr.bf16.mxu0 %v2308
    %3573 = vmatpush1.bf16.msra.mxu0 %v2307
    %3574 = vmatprep.subr.bf16.mxu0 %v2300
    %3575 = vmatpush1.bf16.msra.mxu0 %v2299
    %3576 = vmatprep.subr.bf16.mxu0 %v2420
    %3577 = vmatpush2.bf16.msra.mxu0 %v2419
    %3578 = vmatprep.subr.bf16.mxu0 %v2412
    %3579 = vmatpush2.bf16.msra.mxu0 %v2411
    %3580 = vmatprep.subr.bf16.mxu0 %v2404
    %3581 = vmatpush2.bf16.msra.mxu0 %v2403
    %3582 = vmatprep.subr.bf16.mxu0 %v2396
    %3583 = vmatpush2.bf16.msra.mxu0 %v2395
    %3584 = vmatprep.subr.bf16.mxu0 %v2388
    %3585 = vmatpush2.bf16.msra.mxu0 %v2387
    %3586 = vmatprep.subr.bf16.mxu0 %v2380
    %3587 = vmatpush2.bf16.msra.mxu0 %v2379
    %3588 = vmatprep.subr.bf16.mxu0 %v2372
    %3589 = vmatpush2.bf16.msra.mxu0 %v2371
    %3590 = vmatprep.subr.bf16.mxu0 %v2364
    %3591 = vmatpush2.bf16.msra.mxu0 %v2363
    %3592 = vmatprep.mubr.bf16.mxu0 %v621
    %3593 = vmatmul.mubr.bf16.gmra.mxu0 %v619
    %v3594 = vpop.f32.mrf.mxu0
    %v3595 = vadd.f32 %v3554, %v3594
    %v3596 = vpop.f32.mrf.mxu0
    %v3597 = vadd.f32 %v3556, %v3596
    %v3598 = vpop.f32.mrf.mxu0
    %v3599 = vpop.f32.mrf.mxu0
    %3600 = vdwg.mxu0
    %3601 = vmatprep.subr.bf16.mxu0 %v2484
    %3602 = vmatpush1.bf16.msra.mxu0 %v2483
    %3603 = vmatprep.subr.bf16.mxu0 %v2476
    %3604 = vmatpush1.bf16.msra.mxu0 %v2475
    %3605 = vmatprep.subr.bf16.mxu0 %v2468
    %3606 = vmatpush1.bf16.msra.mxu0 %v2467
    %3607 = vmatprep.subr.bf16.mxu0 %v2460
    %3608 = vmatpush1.bf16.msra.mxu0 %v2459
    %3609 = vmatprep.subr.bf16.mxu0 %v2452
    %3610 = vmatpush1.bf16.msra.mxu0 %v2451
    %3611 = vmatprep.subr.bf16.mxu0 %v2444
    %3612 = vmatpush1.bf16.msra.mxu0 %v2443
    %3613 = vmatprep.subr.bf16.mxu0 %v2436
    %3614 = vmatpush1.bf16.msra.mxu0 %v2435
    %3615 = vmatprep.subr.bf16.mxu0 %v2428
    %3616 = vmatpush1.bf16.msra.mxu0 %v2427
    %3617 = vmatprep.subr.bf16.mxu0 %v2548
    %3618 = vmatpush2.bf16.msra.mxu0 %v2547
    %3619 = vmatprep.subr.bf16.mxu0 %v2540
    %3620 = vmatpush2.bf16.msra.mxu0 %v2539
    %3621 = vmatprep.subr.bf16.mxu0 %v2532
    %3622 = vmatpush2.bf16.msra.mxu0 %v2531
    %3623 = vmatprep.subr.bf16.mxu0 %v2524
    %3624 = vmatpush2.bf16.msra.mxu0 %v2523
    %3625 = vmatprep.subr.bf16.mxu0 %v2516
    %3626 = vmatpush2.bf16.msra.mxu0 %v2515
    %3627 = vmatprep.subr.bf16.mxu0 %v2508
    %3628 = vmatpush2.bf16.msra.mxu0 %v2507
    %3629 = vmatprep.subr.bf16.mxu0 %v2500
    %3630 = vmatpush2.bf16.msra.mxu0 %v2499
    %3631 = vmatprep.subr.bf16.mxu0 %v2492
    %3632 = vmatpush2.bf16.msra.mxu0 %v2491
    %3633 = vmatprep.mubr.bf16.mxu0 %v618
    %3634 = vmatmul.mubr.bf16.gmra.mxu0 %v604
    %v3635 = vpop.f32.mrf.mxu0
    %v3636 = vadd.f32 %v3595, %v3635
    %v3637 = vpop.f32.mrf.mxu0
    %v3638 = vadd.f32 %v3597, %v3637
    %v3639 = vpop.f32.mrf.mxu0
    %v3640 = vpop.f32.mrf.mxu0
    %3641 = vdwg.mxu0
    %3642 = vmatprep.subr.bf16.mxu0 %v2612
    %3643 = vmatpush1.bf16.msra.mxu0 %v2611
    %3644 = vmatprep.subr.bf16.mxu0 %v2604
    %3645 = vmatpush1.bf16.msra.mxu0 %v2603
    %3646 = vmatprep.subr.bf16.mxu0 %v2596
    %3647 = vmatpush1.bf16.msra.mxu0 %v2595
    %3648 = vmatprep.subr.bf16.mxu0 %v2588
    %3649 = vmatpush1.bf16.msra.mxu0 %v2587
    %3650 = vmatprep.subr.bf16.mxu0 %v2580
    %3651 = vmatpush1.bf16.msra.mxu0 %v2579
    %3652 = vmatprep.subr.bf16.mxu0 %v2572
    %3653 = vmatpush1.bf16.msra.mxu0 %v2571
    %3654 = vmatprep.subr.bf16.mxu0 %v2564
    %3655 = vmatpush1.bf16.msra.mxu0 %v2563
    %3656 = vmatprep.subr.bf16.mxu0 %v2556
    %3657 = vmatpush1.bf16.msra.mxu0 %v2555
    %3658 = vmatprep.subr.bf16.mxu0 %v2676
    %3659 = vmatpush2.bf16.msra.mxu0 %v2675
    %3660 = vmatprep.subr.bf16.mxu0 %v2668
    %3661 = vmatpush2.bf16.msra.mxu0 %v2667
    %3662 = vmatprep.subr.bf16.mxu0 %v2660
    %3663 = vmatpush2.bf16.msra.mxu0 %v2659
    %3664 = vmatprep.subr.bf16.mxu0 %v2652
    %3665 = vmatpush2.bf16.msra.mxu0 %v2651
    %3666 = vmatprep.subr.bf16.mxu0 %v2644
    %3667 = vmatpush2.bf16.msra.mxu0 %v2643
    %3668 = vmatprep.subr.bf16.mxu0 %v2636
    %3669 = vmatpush2.bf16.msra.mxu0 %v2635
    %3670 = vmatprep.subr.bf16.mxu0 %v2628
    %3671 = vmatpush2.bf16.msra.mxu0 %v2627
    %3672 = vmatprep.subr.bf16.mxu0 %v2620
    %3673 = vmatpush2.bf16.msra.mxu0 %v2619
    %3674 = vmatprep.mubr.bf16.mxu0 %v622
    %3675 = vmatmul.mubr.bf16.gmra.mxu0 %v620
    %v3676 = vpop.f32.mrf.mxu0
    %v3677 = vadd.f32 %v3636, %v3676
    %v3678 = vpop.f32.mrf.mxu0
    %v3679 = vadd.f32 %v3638, %v3678
    %v3680 = vpop.f32.mrf.mxu0
    %v3681 = vpop.f32.mrf.mxu0
    %3682 = vdwg.mxu0
    %3683 = vmatprep.subr.bf16.mxu0 %v2230
    %3684 = vmatpush1.bf16.msra.mxu0 %v2229
    %3685 = vmatprep.subr.bf16.mxu0 %v2222
    %3686 = vmatpush1.bf16.msra.mxu0 %v2221
    %3687 = vmatprep.subr.bf16.mxu0 %v2214
    %3688 = vmatpush1.bf16.msra.mxu0 %v2213
    %3689 = vmatprep.subr.bf16.mxu0 %v2206
    %3690 = vmatpush1.bf16.msra.mxu0 %v2205
    %3691 = vmatprep.subr.bf16.mxu0 %v2198
    %3692 = vmatpush1.bf16.msra.mxu0 %v2197
    %3693 = vmatprep.subr.bf16.mxu0 %v2190
    %3694 = vmatpush1.bf16.msra.mxu0 %v2189
    %3695 = vmatprep.subr.bf16.mxu0 %v2182
    %3696 = vmatpush1.bf16.msra.mxu0 %v2181
    %3697 = vmatprep.subr.bf16.mxu0 %v2174
    %3698 = vmatpush1.bf16.msra.mxu0 %v2173
    %3699 = vmatprep.subr.bf16.mxu0 %v2294
    %3700 = vmatpush2.bf16.msra.mxu0 %v2293
    %3701 = vmatprep.subr.bf16.mxu0 %v2286
    %3702 = vmatpush2.bf16.msra.mxu0 %v2285
    %3703 = vmatprep.subr.bf16.mxu0 %v2278
    %3704 = vmatpush2.bf16.msra.mxu0 %v2277
    %3705 = vmatprep.subr.bf16.mxu0 %v2270
    %3706 = vmatpush2.bf16.msra.mxu0 %v2269
    %3707 = vmatprep.subr.bf16.mxu0 %v2262
    %3708 = vmatpush2.bf16.msra.mxu0 %v2261
    %3709 = vmatprep.subr.bf16.mxu0 %v2254
    %3710 = vmatpush2.bf16.msra.mxu0 %v2253
    %3711 = vmatprep.subr.bf16.mxu0 %v2246
    %3712 = vmatpush2.bf16.msra.mxu0 %v2245
    %3713 = vmatprep.subr.bf16.mxu0 %v2238
    %3714 = vmatpush2.bf16.msra.mxu0 %v2237
    %3715 = vmatprep.mubr.bf16.mxu0 %v611
    %3716 = vmatmul.mubr.bf16.gmra.mxu0 %v597
    %v3717 = vpop.f32.mrf.mxu0
    %v3718 = vadd.f32 %v560, %v3717
    %v3719 = vpop.f32.mrf.mxu0
    %v3720 = vadd.f32 %v564, %v3719
    %v3721 = vpop.f32.mrf.mxu0
    %v3722 = vpop.f32.mrf.mxu0
    %3723 = vdwg.mxu0
    %3724 = vmatprep.subr.bf16.mxu0 %v2358
    %3725 = vmatpush1.bf16.msra.mxu0 %v2357
    %3726 = vmatprep.subr.bf16.mxu0 %v2350
    %3727 = vmatpush1.bf16.msra.mxu0 %v2349
    %3728 = vmatprep.subr.bf16.mxu0 %v2342
    %3729 = vmatpush1.bf16.msra.mxu0 %v2341
    %3730 = vmatprep.subr.bf16.mxu0 %v2334
    %3731 = vmatpush1.bf16.msra.mxu0 %v2333
    %3732 = vmatprep.subr.bf16.mxu0 %v2326
    %3733 = vmatpush1.bf16.msra.mxu0 %v2325
    %3734 = vmatprep.subr.bf16.mxu0 %v2318
    %3735 = vmatpush1.bf16.msra.mxu0 %v2317
    %3736 = vmatprep.subr.bf16.mxu0 %v2310
    %3737 = vmatpush1.bf16.msra.mxu0 %v2309
    %3738 = vmatprep.subr.bf16.mxu0 %v2302
    %3739 = vmatpush1.bf16.msra.mxu0 %v2301
    %3740 = vmatprep.subr.bf16.mxu0 %v2422
    %3741 = vmatpush2.bf16.msra.mxu0 %v2421
    %3742 = vmatprep.subr.bf16.mxu0 %v2414
    %3743 = vmatpush2.bf16.msra.mxu0 %v2413
    %3744 = vmatprep.subr.bf16.mxu0 %v2406
    %3745 = vmatpush2.bf16.msra.mxu0 %v2405
    %3746 = vmatprep.subr.bf16.mxu0 %v2398
    %3747 = vmatpush2.bf16.msra.mxu0 %v2397
    %3748 = vmatprep.subr.bf16.mxu0 %v2390
    %3749 = vmatpush2.bf16.msra.mxu0 %v2389
    %3750 = vmatprep.subr.bf16.mxu0 %v2382
    %3751 = vmatpush2.bf16.msra.mxu0 %v2381
    %3752 = vmatprep.subr.bf16.mxu0 %v2374
    %3753 = vmatpush2.bf16.msra.mxu0 %v2373
    %3754 = vmatprep.subr.bf16.mxu0 %v2366
    %3755 = vmatpush2.bf16.msra.mxu0 %v2365
    %3756 = vmatprep.mubr.bf16.mxu0 %v621
    %3757 = vmatmul.mubr.bf16.gmra.mxu0 %v619
    %v3758 = vpop.f32.mrf.mxu0
    %v3759 = vadd.f32 %v3718, %v3758
    %v3760 = vpop.f32.mrf.mxu0
    %v3761 = vadd.f32 %v3720, %v3760
    %v3762 = vpop.f32.mrf.mxu0
    %v3763 = vpop.f32.mrf.mxu0
    %3764 = vdwg.mxu0
    %3765 = vmatprep.subr.bf16.mxu0 %v2486
    %3766 = vmatpush1.bf16.msra.mxu0 %v2485
    %3767 = vmatprep.subr.bf16.mxu0 %v2478
    %3768 = vmatpush1.bf16.msra.mxu0 %v2477
    %3769 = vmatprep.subr.bf16.mxu0 %v2470
    %3770 = vmatpush1.bf16.msra.mxu0 %v2469
    %3771 = vmatprep.subr.bf16.mxu0 %v2462
    %3772 = vmatpush1.bf16.msra.mxu0 %v2461
    %3773 = vmatprep.subr.bf16.mxu0 %v2454
    %3774 = vmatpush1.bf16.msra.mxu0 %v2453
    %3775 = vmatprep.subr.bf16.mxu0 %v2446
    %3776 = vmatpush1.bf16.msra.mxu0 %v2445
    %3777 = vmatprep.subr.bf16.mxu0 %v2438
    %3778 = vmatpush1.bf16.msra.mxu0 %v2437
    %3779 = vmatprep.subr.bf16.mxu0 %v2430
    %3780 = vmatpush1.bf16.msra.mxu0 %v2429
    %3781 = vmatprep.subr.bf16.mxu0 %v2550
    %3782 = vmatpush2.bf16.msra.mxu0 %v2549
    %3783 = vmatprep.subr.bf16.mxu0 %v2542
    %3784 = vmatpush2.bf16.msra.mxu0 %v2541
    %3785 = vmatprep.subr.bf16.mxu0 %v2534
    %3786 = vmatpush2.bf16.msra.mxu0 %v2533
    %3787 = vmatprep.subr.bf16.mxu0 %v2526
    %3788 = vmatpush2.bf16.msra.mxu0 %v2525
    %3789 = vmatprep.subr.bf16.mxu0 %v2518
    %3790 = vmatpush2.bf16.msra.mxu0 %v2517
    %3791 = vmatprep.subr.bf16.mxu0 %v2510
    %3792 = vmatpush2.bf16.msra.mxu0 %v2509
    %3793 = vmatprep.subr.bf16.mxu0 %v2502
    %3794 = vmatpush2.bf16.msra.mxu0 %v2501
    %3795 = vmatprep.subr.bf16.mxu0 %v2494
    %3796 = vmatpush2.bf16.msra.mxu0 %v2493
    %3797 = vmatprep.mubr.bf16.mxu0 %v618
    %3798 = vmatmul.mubr.bf16.gmra.mxu0 %v604
    %v3799 = vpop.f32.mrf.mxu0
    %v3800 = vadd.f32 %v3759, %v3799
    %v3801 = vpop.f32.mrf.mxu0
    %v3802 = vadd.f32 %v3761, %v3801
    %v3803 = vpop.f32.mrf.mxu0
    %v3804 = vpop.f32.mrf.mxu0
    %3805 = vdwg.mxu0
    %3806 = vmatprep.subr.bf16.mxu0 %v2614
    %3807 = vmatpush1.bf16.msra.mxu0 %v2613
    %3808 = vmatprep.subr.bf16.mxu0 %v2606
    %3809 = vmatpush1.bf16.msra.mxu0 %v2605
    %3810 = vmatprep.subr.bf16.mxu0 %v2598
    %3811 = vmatpush1.bf16.msra.mxu0 %v2597
    %3812 = vmatprep.subr.bf16.mxu0 %v2590
    %3813 = vmatpush1.bf16.msra.mxu0 %v2589
    %3814 = vmatprep.subr.bf16.mxu0 %v2582
    %3815 = vmatpush1.bf16.msra.mxu0 %v2581
    %3816 = vmatprep.subr.bf16.mxu0 %v2574
    %3817 = vmatpush1.bf16.msra.mxu0 %v2573
    %3818 = vmatprep.subr.bf16.mxu0 %v2566
    %3819 = vmatpush1.bf16.msra.mxu0 %v2565
    %3820 = vmatprep.subr.bf16.mxu0 %v2558
    %3821 = vmatpush1.bf16.msra.mxu0 %v2557
    %3822 = vmatprep.subr.bf16.mxu0 %v2678
    %3823 = vmatpush2.bf16.msra.mxu0 %v2677
    %3824 = vmatprep.subr.bf16.mxu0 %v2670
    %3825 = vmatpush2.bf16.msra.mxu0 %v2669
    %3826 = vmatprep.subr.bf16.mxu0 %v2662
    %3827 = vmatpush2.bf16.msra.mxu0 %v2661
    %3828 = vmatprep.subr.bf16.mxu0 %v2654
    %3829 = vmatpush2.bf16.msra.mxu0 %v2653
    %3830 = vmatprep.subr.bf16.mxu0 %v2646
    %3831 = vmatpush2.bf16.msra.mxu0 %v2645
    %3832 = vmatprep.subr.bf16.mxu0 %v2638
    %3833 = vmatpush2.bf16.msra.mxu0 %v2637
    %3834 = vmatprep.subr.bf16.mxu0 %v2630
    %3835 = vmatpush2.bf16.msra.mxu0 %v2629
    %3836 = vmatprep.subr.bf16.mxu0 %v2622
    %3837 = vmatpush2.bf16.msra.mxu0 %v2621
    %3838 = vmatprep.mubr.bf16.mxu0 %v622
    %3839 = vmatmul.mubr.bf16.gmra.mxu0 %v620
    %v3840 = vpop.f32.mrf.mxu0
    %v3841 = vadd.f32 %v3800, %v3840
    %v3842 = vpop.f32.mrf.mxu0
    %v3843 = vadd.f32 %v3802, %v3842
    %v3844 = vpop.f32.mrf.mxu0
    %v3845 = vpop.f32.mrf.mxu0
    %3846 = vdwg.mxu0
    %vm3847 = vcmp.gt.f32.partialorder %v3349, 0.0
    %vm3848 = vcmp.gt.f32.partialorder %v3351, 0.0
    %vm3849 = vcmp.gt.f32.partialorder %v3513, 0.0
    %vm3850 = vcmp.gt.f32.partialorder %v3515, 0.0
    %vm3851 = vcmp.gt.f32.partialorder %v3677, 0.0
    %vm3852 = vcmp.gt.f32.partialorder %v3679, 0.0
    %vm3853 = vcmp.gt.f32.partialorder %v3841, 0.0
    %vm3854 = vcmp.gt.f32.partialorder %v3843, 0.0
    %v3855 = vmul.f32 %v3349, 0.2
    %v3856 = vmul.f32 %v3351, 0.2
    %v3857 = vmul.f32 %v3513, 0.2
    %v3858 = vmul.f32 %v3515, 0.2
    %v3859 = vmul.f32 %v3677, 0.2
    %v3860 = vmul.f32 %v3679, 0.2
    %v3861 = vmul.f32 %v3841, 0.2
    %v3862 = vmul.f32 %v3843, 0.2
    %v3863 = vsel %vm3847, %v3349, %v3855
    %v3864 = vsel %vm3848, %v3351, %v3856
    %v3865 = vsel %vm3849, %v3513, %v3857
    %v3866 = vsel %vm3850, %v3515, %v3858
    %v3867 = vsel %vm3851, %v3677, %v3859
    %v3868 = vsel %vm3852, %v3679, %v3860
    %v3869 = vsel %vm3853, %v3841, %v3861
    %v3870 = vsel %vm3854, %v3843, %v3862
    %v3871 = vpack.c.bf16 %v3863, %v3863
    %v3872 = vpack.c.bf16 %v3864, %v3864
    %v3873 = vpack.c.bf16 %v3865, %v3865
    %v3874 = vpack.c.bf16 %v3866, %v3866
    %v3875 = vpack.c.bf16 %v3867, %v3867
    %v3876 = vpack.c.bf16 %v3868, %v3868
    %v3877 = vpack.c.bf16 %v3869, %v3869
    %v3878 = vpack.c.bf16 %v3870, %v3870
    %v3879 = vld [vmem:[%s1 + $0x20] sm:$0xff]
    %v3880 = vld [vmem:[%s1 + $0x28] sm:$0xff]
    %v3881 = vld [vmem:[%s1 + $0x60] sm:$0xff]
    %v3882 = vld [vmem:[%s1 + $0x68] sm:$0xff]
    %v3883 = vld [vmem:[%s1 + $0xa0] sm:$0xff]
    %v3884 = vld [vmem:[%s1 + $0xa8] sm:$0xff]
    %v3885 = vld [vmem:[%s1 + $0xe0] sm:$0xff]
    %v3886 = vld [vmem:[%s1 + $0xe8] sm:$0xff]
    %v3887 = vld [vmem:[%s1 + $0x120] sm:$0xff]
    %v3888 = vld [vmem:[%s1 + $0x128] sm:$0xff]
    %v3889 = vld [vmem:[%s1 + $0x160] sm:$0xff]
    %v3890 = vld [vmem:[%s1 + $0x168] sm:$0xff]
    %v3891 = vld [vmem:[%s1 + $0x1a0] sm:$0xff]
    %v3892 = vld [vmem:[%s1 + $0x1a8] sm:$0xff]
    %v3893 = vld [vmem:[%s1 + $0x1e0] sm:$0xff]
    %v3894 = vld [vmem:[%s1 + $0x1e8] sm:$0xff]
    %v3895 = vld [vmem:[%s1 + $0x220] sm:$0xff]
    %v3896 = vld [vmem:[%s1 + $0x228] sm:$0xff]
    %v3897 = vld [vmem:[%s1 + $0x260] sm:$0xff]
    %v3898 = vld [vmem:[%s1 + $0x268] sm:$0xff]
    %v3899 = vld [vmem:[%s1 + $0x2a0] sm:$0xff]
    %v3900 = vld [vmem:[%s1 + $0x2a8] sm:$0xff]
    %v3901 = vld [vmem:[%s1 + $0x2e0] sm:$0xff]
    %v3902 = vld [vmem:[%s1 + $0x2e8] sm:$0xff]
    %v3903 = vld [vmem:[%s1 + $0x320] sm:$0xff]
    %v3904 = vld [vmem:[%s1 + $0x328] sm:$0xff]
    %v3905 = vld [vmem:[%s1 + $0x360] sm:$0xff]
    %v3906 = vld [vmem:[%s1 + $0x368] sm:$0xff]
    %v3907 = vld [vmem:[%s1 + $0x3a0] sm:$0xff]
    %v3908 = vld [vmem:[%s1 + $0x3a8] sm:$0xff]
    %v3909 = vld [vmem:[%s1 + $0x3e0] sm:$0xff]
    %v3910 = vld [vmem:[%s1 + $0x3e8] sm:$0xff]
    %v3911 = vld [vmem:[%s1 + $0x420] sm:$0xff]
    %v3912 = vld [vmem:[%s1 + $0x428] sm:$0xff]
    %v3913 = vld [vmem:[%s1 + $0x460] sm:$0xff]
    %v3914 = vld [vmem:[%s1 + $0x468] sm:$0xff]
    %v3915 = vld [vmem:[%s1 + $0x4a0] sm:$0xff]
    %v3916 = vld [vmem:[%s1 + $0x4a8] sm:$0xff]
    %v3917 = vld [vmem:[%s1 + $0x4e0] sm:$0xff]
    %v3918 = vld [vmem:[%s1 + $0x4e8] sm:$0xff]
    %v3919 = vld [vmem:[%s1 + $0x520] sm:$0xff]
    %v3920 = vld [vmem:[%s1 + $0x528] sm:$0xff]
    %v3921 = vld [vmem:[%s1 + $0x560] sm:$0xff]
    %v3922 = vld [vmem:[%s1 + $0x568] sm:$0xff]
    %v3923 = vld [vmem:[%s1 + $0x5a0] sm:$0xff]
    %v3924 = vld [vmem:[%s1 + $0x5a8] sm:$0xff]
    %v3925 = vld [vmem:[%s1 + $0x5e0] sm:$0xff]
    %v3926 = vld [vmem:[%s1 + $0x5e8] sm:$0xff]
    %v3927 = vld [vmem:[%s1 + $0x620] sm:$0xff]
    %v3928 = vld [vmem:[%s1 + $0x628] sm:$0xff]
    %v3929 = vld [vmem:[%s1 + $0x660] sm:$0xff]
    %v3930 = vld [vmem:[%s1 + $0x668] sm:$0xff]
    %v3931 = vld [vmem:[%s1 + $0x6a0] sm:$0xff]
    %v3932 = vld [vmem:[%s1 + $0x6a8] sm:$0xff]
    %v3933 = vld [vmem:[%s1 + $0x6e0] sm:$0xff]
    %v3934 = vld [vmem:[%s1 + $0x6e8] sm:$0xff]
    %v3935 = vld [vmem:[%s1 + $0x720] sm:$0xff]
    %v3936 = vld [vmem:[%s1 + $0x728] sm:$0xff]
    %v3937 = vld [vmem:[%s1 + $0x760] sm:$0xff]
    %v3938 = vld [vmem:[%s1 + $0x768] sm:$0xff]
    %v3939 = vld [vmem:[%s1 + $0x7a0] sm:$0xff]
    %v3940 = vld [vmem:[%s1 + $0x7a8] sm:$0xff]
    %v3941 = vld [vmem:[%s1 + $0x7e0] sm:$0xff]
    %v3942 = vld [vmem:[%s1 + $0x7e8] sm:$0xff]
    %v3943 = vld [vmem:[%s1 + $0x820] sm:$0xff]
    %v3944 = vld [vmem:[%s1 + $0x828] sm:$0xff]
    %v3945 = vld [vmem:[%s1 + $0x860] sm:$0xff]
    %v3946 = vld [vmem:[%s1 + $0x868] sm:$0xff]
    %v3947 = vld [vmem:[%s1 + $0x8a0] sm:$0xff]
    %v3948 = vld [vmem:[%s1 + $0x8a8] sm:$0xff]
    %v3949 = vld [vmem:[%s1 + $0x8e0] sm:$0xff]
    %v3950 = vld [vmem:[%s1 + $0x8e8] sm:$0xff]
    %v3951 = vld [vmem:[%s1 + $0x920] sm:$0xff]
    %v3952 = vld [vmem:[%s1 + $0x928] sm:$0xff]
    %v3953 = vld [vmem:[%s1 + $0x960] sm:$0xff]
    %v3954 = vld [vmem:[%s1 + $0x968] sm:$0xff]
    %v3955 = vld [vmem:[%s1 + $0x9a0] sm:$0xff]
    %v3956 = vld [vmem:[%s1 + $0x9a8] sm:$0xff]
    %v3957 = vld [vmem:[%s1 + $0x9e0] sm:$0xff]
    %v3958 = vld [vmem:[%s1 + $0x9e8] sm:$0xff]
    %v3959 = vld [vmem:[%s1 + $0xa20] sm:$0xff]
    %v3960 = vld [vmem:[%s1 + $0xa28] sm:$0xff]
    %v3961 = vld [vmem:[%s1 + $0xa60] sm:$0xff]
    %v3962 = vld [vmem:[%s1 + $0xa68] sm:$0xff]
    %v3963 = vld [vmem:[%s1 + $0xaa0] sm:$0xff]
    %v3964 = vld [vmem:[%s1 + $0xaa8] sm:$0xff]
    %v3965 = vld [vmem:[%s1 + $0xae0] sm:$0xff]
    %v3966 = vld [vmem:[%s1 + $0xae8] sm:$0xff]
    %v3967 = vld [vmem:[%s1 + $0xb20] sm:$0xff]
    %v3968 = vld [vmem:[%s1 + $0xb28] sm:$0xff]
    %v3969 = vld [vmem:[%s1 + $0xb60] sm:$0xff]
    %v3970 = vld [vmem:[%s1 + $0xb68] sm:$0xff]
    %v3971 = vld [vmem:[%s1 + $0xba0] sm:$0xff]
    %v3972 = vld [vmem:[%s1 + $0xba8] sm:$0xff]
    %v3973 = vld [vmem:[%s1 + $0xbe0] sm:$0xff]
    %v3974 = vld [vmem:[%s1 + $0xbe8] sm:$0xff]
    %v3975 = vld [vmem:[%s1 + $0xc20] sm:$0xff]
    %v3976 = vld [vmem:[%s1 + $0xc28] sm:$0xff]
    %v3977 = vld [vmem:[%s1 + $0xc60] sm:$0xff]
    %v3978 = vld [vmem:[%s1 + $0xc68] sm:$0xff]
    %v3979 = vld [vmem:[%s1 + $0xca0] sm:$0xff]
    %v3980 = vld [vmem:[%s1 + $0xca8] sm:$0xff]
    %v3981 = vld [vmem:[%s1 + $0xce0] sm:$0xff]
    %v3982 = vld [vmem:[%s1 + $0xce8] sm:$0xff]
    %v3983 = vld [vmem:[%s1 + $0xd20] sm:$0xff]
    %v3984 = vld [vmem:[%s1 + $0xd28] sm:$0xff]
    %v3985 = vld [vmem:[%s1 + $0xd60] sm:$0xff]
    %v3986 = vld [vmem:[%s1 + $0xd68] sm:$0xff]
    %v3987 = vld [vmem:[%s1 + $0xda0] sm:$0xff]
    %v3988 = vld [vmem:[%s1 + $0xda8] sm:$0xff]
    %v3989 = vld [vmem:[%s1 + $0xde0] sm:$0xff]
    %v3990 = vld [vmem:[%s1 + $0xde8] sm:$0xff]
    %v3991 = vld [vmem:[%s1 + $0xe20] sm:$0xff]
    %v3992 = vld [vmem:[%s1 + $0xe28] sm:$0xff]
    %v3993 = vld [vmem:[%s1 + $0xe60] sm:$0xff]
    %v3994 = vld [vmem:[%s1 + $0xe68] sm:$0xff]
    %v3995 = vld [vmem:[%s1 + $0xea0] sm:$0xff]
    %v3996 = vld [vmem:[%s1 + $0xea8] sm:$0xff]
    %v3997 = vld [vmem:[%s1 + $0xee0] sm:$0xff]
    %v3998 = vld [vmem:[%s1 + $0xee8] sm:$0xff]
    %v3999 = vld [vmem:[%s1 + $0xf20] sm:$0xff]
    %v4000 = vld [vmem:[%s1 + $0xf28] sm:$0xff]
    %v4001 = vld [vmem:[%s1 + $0xf60] sm:$0xff]
    %v4002 = vld [vmem:[%s1 + $0xf68] sm:$0xff]
    %v4003 = vld [vmem:[%s1 + $0xfa0] sm:$0xff]
    %v4004 = vld [vmem:[%s1 + $0xfa8] sm:$0xff]
    %v4005 = vld [vmem:[%s1 + $0xfe0] sm:$0xff]
    %v4006 = vld [vmem:[%s1 + $0xfe8] sm:$0xff]
    %v4007 = vld [vmem:[%s1 + $0x1020] sm:$0xff]
    %v4008 = vld [vmem:[%s1 + $0x1028] sm:$0xff]
    %v4009 = vld [vmem:[%s1 + $0x1060] sm:$0xff]
    %v4010 = vld [vmem:[%s1 + $0x1068] sm:$0xff]
    %v4011 = vld [vmem:[%s1 + $0x10a0] sm:$0xff]
    %v4012 = vld [vmem:[%s1 + $0x10a8] sm:$0xff]
    %v4013 = vld [vmem:[%s1 + $0x10e0] sm:$0xff]
    %v4014 = vld [vmem:[%s1 + $0x10e8] sm:$0xff]
    %v4015 = vld [vmem:[%s1 + $0x1120] sm:$0xff]
    %v4016 = vld [vmem:[%s1 + $0x1128] sm:$0xff]
    %v4017 = vld [vmem:[%s1 + $0x1160] sm:$0xff]
    %v4018 = vld [vmem:[%s1 + $0x1168] sm:$0xff]
    %v4019 = vld [vmem:[%s1 + $0x11a0] sm:$0xff]
    %v4020 = vld [vmem:[%s1 + $0x11a8] sm:$0xff]
    %v4021 = vld [vmem:[%s1 + $0x11e0] sm:$0xff]
    %v4022 = vld [vmem:[%s1 + $0x11e8] sm:$0xff]
    %v4023 = vld [vmem:[%s1 + $0x1220] sm:$0xff]
    %v4024 = vld [vmem:[%s1 + $0x1228] sm:$0xff]
    %v4025 = vld [vmem:[%s1 + $0x1260] sm:$0xff]
    %v4026 = vld [vmem:[%s1 + $0x1268] sm:$0xff]
    %v4027 = vld [vmem:[%s1 + $0x12a0] sm:$0xff]
    %v4028 = vld [vmem:[%s1 + $0x12a8] sm:$0xff]
    %v4029 = vld [vmem:[%s1 + $0x12e0] sm:$0xff]
    %v4030 = vld [vmem:[%s1 + $0x12e8] sm:$0xff]
    %v4031 = vld [vmem:[%s1 + $0x1320] sm:$0xff]
    %v4032 = vld [vmem:[%s1 + $0x1328] sm:$0xff]
    %v4033 = vld [vmem:[%s1 + $0x1360] sm:$0xff]
    %v4034 = vld [vmem:[%s1 + $0x1368] sm:$0xff]
    %v4035 = vld [vmem:[%s1 + $0x13a0] sm:$0xff]
    %v4036 = vld [vmem:[%s1 + $0x13a8] sm:$0xff]
    %v4037 = vld [vmem:[%s1 + $0x13e0] sm:$0xff]
    %v4038 = vld [vmem:[%s1 + $0x13e8] sm:$0xff]
    %v4039 = vld [vmem:[%s1 + $0x1420] sm:$0xff]
    %v4040 = vld [vmem:[%s1 + $0x1428] sm:$0xff]
    %v4041 = vld [vmem:[%s1 + $0x1460] sm:$0xff]
    %v4042 = vld [vmem:[%s1 + $0x1468] sm:$0xff]
    %v4043 = vld [vmem:[%s1 + $0x14a0] sm:$0xff]
    %v4044 = vld [vmem:[%s1 + $0x14a8] sm:$0xff]
    %v4045 = vld [vmem:[%s1 + $0x14e0] sm:$0xff]
    %v4046 = vld [vmem:[%s1 + $0x14e8] sm:$0xff]
    %v4047 = vld [vmem:[%s1 + $0x1520] sm:$0xff]
    %v4048 = vld [vmem:[%s1 + $0x1528] sm:$0xff]
    %v4049 = vld [vmem:[%s1 + $0x1560] sm:$0xff]
    %v4050 = vld [vmem:[%s1 + $0x1568] sm:$0xff]
    %v4051 = vld [vmem:[%s1 + $0x15a0] sm:$0xff]
    %v4052 = vld [vmem:[%s1 + $0x15a8] sm:$0xff]
    %v4053 = vld [vmem:[%s1 + $0x15e0] sm:$0xff]
    %v4054 = vld [vmem:[%s1 + $0x15e8] sm:$0xff]
    %v4055 = vld [vmem:[%s1 + $0x1620] sm:$0xff]
    %v4056 = vld [vmem:[%s1 + $0x1628] sm:$0xff]
    %v4057 = vld [vmem:[%s1 + $0x1660] sm:$0xff]
    %v4058 = vld [vmem:[%s1 + $0x1668] sm:$0xff]
    %v4059 = vld [vmem:[%s1 + $0x16a0] sm:$0xff]
    %v4060 = vld [vmem:[%s1 + $0x16a8] sm:$0xff]
    %v4061 = vld [vmem:[%s1 + $0x16e0] sm:$0xff]
    %v4062 = vld [vmem:[%s1 + $0x16e8] sm:$0xff]
    %v4063 = vld [vmem:[%s1 + $0x1720] sm:$0xff]
    %v4064 = vld [vmem:[%s1 + $0x1728] sm:$0xff]
    %v4065 = vld [vmem:[%s1 + $0x1760] sm:$0xff]
    %v4066 = vld [vmem:[%s1 + $0x1768] sm:$0xff]
    %v4067 = vld [vmem:[%s1 + $0x17a0] sm:$0xff]
    %v4068 = vld [vmem:[%s1 + $0x17a8] sm:$0xff]
    %v4069 = vld [vmem:[%s1 + $0x17e0] sm:$0xff]
    %v4070 = vld [vmem:[%s1 + $0x17e8] sm:$0xff]
    %v4071 = vld [vmem:[%s1 + $0x1820] sm:$0xff]
    %v4072 = vld [vmem:[%s1 + $0x1828] sm:$0xff]
    %v4073 = vld [vmem:[%s1 + $0x1860] sm:$0xff]
    %v4074 = vld [vmem:[%s1 + $0x1868] sm:$0xff]
    %v4075 = vld [vmem:[%s1 + $0x18a0] sm:$0xff]
    %v4076 = vld [vmem:[%s1 + $0x18a8] sm:$0xff]
    %v4077 = vld [vmem:[%s1 + $0x18e0] sm:$0xff]
    %v4078 = vld [vmem:[%s1 + $0x18e8] sm:$0xff]
    %v4079 = vld [vmem:[%s1 + $0x1920] sm:$0xff]
    %v4080 = vld [vmem:[%s1 + $0x1928] sm:$0xff]
    %v4081 = vld [vmem:[%s1 + $0x1960] sm:$0xff]
    %v4082 = vld [vmem:[%s1 + $0x1968] sm:$0xff]
    %v4083 = vld [vmem:[%s1 + $0x19a0] sm:$0xff]
    %v4084 = vld [vmem:[%s1 + $0x19a8] sm:$0xff]
    %v4085 = vld [vmem:[%s1 + $0x19e0] sm:$0xff]
    %v4086 = vld [vmem:[%s1 + $0x19e8] sm:$0xff]
    %v4087 = vld [vmem:[%s1 + $0x1a20] sm:$0xff]
    %v4088 = vld [vmem:[%s1 + $0x1a28] sm:$0xff]
    %v4089 = vld [vmem:[%s1 + $0x1a60] sm:$0xff]
    %v4090 = vld [vmem:[%s1 + $0x1a68] sm:$0xff]
    %v4091 = vld [vmem:[%s1 + $0x1aa0] sm:$0xff]
    %v4092 = vld [vmem:[%s1 + $0x1aa8] sm:$0xff]
    %v4093 = vld [vmem:[%s1 + $0x1ae0] sm:$0xff]
    %v4094 = vld [vmem:[%s1 + $0x1ae8] sm:$0xff]
    %v4095 = vld [vmem:[%s1 + $0x1b20] sm:$0xff]
    %v4096 = vld [vmem:[%s1 + $0x1b28] sm:$0xff]
    %v4097 = vld [vmem:[%s1 + $0x1b60] sm:$0xff]
    %v4098 = vld [vmem:[%s1 + $0x1b68] sm:$0xff]
    %v4099 = vld [vmem:[%s1 + $0x1ba0] sm:$0xff]
    %v4100 = vld [vmem:[%s1 + $0x1ba8] sm:$0xff]
    %v4101 = vld [vmem:[%s1 + $0x1be0] sm:$0xff]
    %v4102 = vld [vmem:[%s1 + $0x1be8] sm:$0xff]
    %v4103 = vld [vmem:[%s1 + $0x1c20] sm:$0xff]
    %v4104 = vld [vmem:[%s1 + $0x1c28] sm:$0xff]
    %v4105 = vld [vmem:[%s1 + $0x1c60] sm:$0xff]
    %v4106 = vld [vmem:[%s1 + $0x1c68] sm:$0xff]
    %v4107 = vld [vmem:[%s1 + $0x1ca0] sm:$0xff]
    %v4108 = vld [vmem:[%s1 + $0x1ca8] sm:$0xff]
    %v4109 = vld [vmem:[%s1 + $0x1ce0] sm:$0xff]
    %v4110 = vld [vmem:[%s1 + $0x1ce8] sm:$0xff]
    %v4111 = vld [vmem:[%s1 + $0x1d20] sm:$0xff]
    %v4112 = vld [vmem:[%s1 + $0x1d28] sm:$0xff]
    %v4113 = vld [vmem:[%s1 + $0x1d60] sm:$0xff]
    %v4114 = vld [vmem:[%s1 + $0x1d68] sm:$0xff]
    %v4115 = vld [vmem:[%s1 + $0x1da0] sm:$0xff]
    %v4116 = vld [vmem:[%s1 + $0x1da8] sm:$0xff]
    %v4117 = vld [vmem:[%s1 + $0x1de0] sm:$0xff]
    %v4118 = vld [vmem:[%s1 + $0x1de8] sm:$0xff]
    %v4119 = vld [vmem:[%s1 + $0x1e20] sm:$0xff]
    %v4120 = vld [vmem:[%s1 + $0x1e28] sm:$0xff]
    %v4121 = vld [vmem:[%s1 + $0x1e60] sm:$0xff]
    %v4122 = vld [vmem:[%s1 + $0x1e68] sm:$0xff]
    %v4123 = vld [vmem:[%s1 + $0x1ea0] sm:$0xff]
    %v4124 = vld [vmem:[%s1 + $0x1ea8] sm:$0xff]
    %v4125 = vld [vmem:[%s1 + $0x1ee0] sm:$0xff]
    %v4126 = vld [vmem:[%s1 + $0x1ee8] sm:$0xff]
    %v4127 = vld [vmem:[%s1 + $0x1f20] sm:$0xff]
    %v4128 = vld [vmem:[%s1 + $0x1f28] sm:$0xff]
    %v4129 = vld [vmem:[%s1 + $0x1f60] sm:$0xff]
    %v4130 = vld [vmem:[%s1 + $0x1f68] sm:$0xff]
    %v4131 = vld [vmem:[%s1 + $0x1fa0] sm:$0xff]
    %v4132 = vld [vmem:[%s1 + $0x1fa8] sm:$0xff]
    %v4133 = vld [vmem:[%s1 + $0x1fe0] sm:$0xff]
    %v4134 = vld [vmem:[%s1 + $0x1fe8] sm:$0xff]
    %s4135 = scalar_lea.vmem %s2, 1
    %v4136 = vld [vmem:[%s4135] ss:$8 sm:$0xf]
    %v4138 = vlaneseq
    %v4139 = vshrl.u32 %v4138, 7
    %v4140 = vsub.s32 0, %v4139
    %v4141 = vrot.slane %v4136, %v4140
    %v4142 = vlaneseq
    %v4143 = vshrl.u32 %v4142, 7
    %v4144 = vsub.s32 1, %v4143
    %v4145 = vrot.slane %v4136, %v4144
    %v4146 = vlaneseq
    %v4147 = vshrl.u32 %v4146, 7
    %v4148 = vsub.s32 2, %v4147
    %v4149 = vrot.slane %v4136, %v4148
    %v4150 = vlaneseq
    %v4151 = vshrl.u32 %v4150, 7
    %v4152 = vsub.s32 3, %v4151
    %v4153 = vrot.slane %v4136, %v4152
    %v4414 = vunpack.c.l.b16 %v3879
    %v4415 = vunpack.c.h.b16 %v3879
    %v4416 = vunpack.c.l.b16 %v3880
    %v4417 = vunpack.c.h.b16 %v3880
    %v4418 = vunpack.c.l.b16 %v3881
    %v4419 = vunpack.c.h.b16 %v3881
    %v4420 = vunpack.c.l.b16 %v3882
    %v4421 = vunpack.c.h.b16 %v3882
    %v4422 = vunpack.c.l.b16 %v3883
    %v4423 = vunpack.c.h.b16 %v3883
    %v4424 = vunpack.c.l.b16 %v3884
    %v4425 = vunpack.c.h.b16 %v3884
    %v4426 = vunpack.c.l.b16 %v3885
    %v4427 = vunpack.c.h.b16 %v3885
    %v4428 = vunpack.c.l.b16 %v3886
    %v4429 = vunpack.c.h.b16 %v3886
    %v4430 = vunpack.c.l.b16 %v3887
    %v4431 = vunpack.c.h.b16 %v3887
    %v4432 = vunpack.c.l.b16 %v3888
    %v4433 = vunpack.c.h.b16 %v3888
    %v4434 = vunpack.c.l.b16 %v3889
    %v4435 = vunpack.c.h.b16 %v3889
    %v4436 = vunpack.c.l.b16 %v3890
    %v4437 = vunpack.c.h.b16 %v3890
    %v4438 = vunpack.c.l.b16 %v3891
    %v4439 = vunpack.c.h.b16 %v3891
    %v4440 = vunpack.c.l.b16 %v3892
    %v4441 = vunpack.c.h.b16 %v3892
    %v4442 = vunpack.c.l.b16 %v3893
    %v4443 = vunpack.c.h.b16 %v3893
    %v4444 = vunpack.c.l.b16 %v3894
    %v4445 = vunpack.c.h.b16 %v3894
    %v4446 = vunpack.c.l.b16 %v3895
    %v4447 = vunpack.c.h.b16 %v3895
    %v4448 = vunpack.c.l.b16 %v3896
    %v4449 = vunpack.c.h.b16 %v3896
    %v4450 = vunpack.c.l.b16 %v3897
    %v4451 = vunpack.c.h.b16 %v3897
    %v4452 = vunpack.c.l.b16 %v3898
    %v4453 = vunpack.c.h.b16 %v3898
    %v4454 = vunpack.c.l.b16 %v3899
    %v4455 = vunpack.c.h.b16 %v3899
    %v4456 = vunpack.c.l.b16 %v3900
    %v4457 = vunpack.c.h.b16 %v3900
    %v4458 = vunpack.c.l.b16 %v3901
    %v4459 = vunpack.c.h.b16 %v3901
    %v4460 = vunpack.c.l.b16 %v3902
    %v4461 = vunpack.c.h.b16 %v3902
    %v4462 = vunpack.c.l.b16 %v3903
    %v4463 = vunpack.c.h.b16 %v3903
    %v4464 = vunpack.c.l.b16 %v3904
    %v4465 = vunpack.c.h.b16 %v3904
    %v4466 = vunpack.c.l.b16 %v3905
    %v4467 = vunpack.c.h.b16 %v3905
    %v4468 = vunpack.c.l.b16 %v3906
    %v4469 = vunpack.c.h.b16 %v3906
    %v4470 = vunpack.c.l.b16 %v3907
    %v4471 = vunpack.c.h.b16 %v3907
    %v4472 = vunpack.c.l.b16 %v3908
    %v4473 = vunpack.c.h.b16 %v3908
    %v4474 = vunpack.c.l.b16 %v3909
    %v4475 = vunpack.c.h.b16 %v3909
    %v4476 = vunpack.c.l.b16 %v3910
    %v4477 = vunpack.c.h.b16 %v3910
    %v4478 = vunpack.c.l.b16 %v3911
    %v4479 = vunpack.c.h.b16 %v3911
    %v4480 = vunpack.c.l.b16 %v3912
    %v4481 = vunpack.c.h.b16 %v3912
    %v4482 = vunpack.c.l.b16 %v3913
    %v4483 = vunpack.c.h.b16 %v3913
    %v4484 = vunpack.c.l.b16 %v3914
    %v4485 = vunpack.c.h.b16 %v3914
    %v4486 = vunpack.c.l.b16 %v3915
    %v4487 = vunpack.c.h.b16 %v3915
    %v4488 = vunpack.c.l.b16 %v3916
    %v4489 = vunpack.c.h.b16 %v3916
    %v4490 = vunpack.c.l.b16 %v3917
    %v4491 = vunpack.c.h.b16 %v3917
    %v4492 = vunpack.c.l.b16 %v3918
    %v4493 = vunpack.c.h.b16 %v3918
    %v4494 = vunpack.c.l.b16 %v3919
    %v4495 = vunpack.c.h.b16 %v3919
    %v4496 = vunpack.c.l.b16 %v3920
    %v4497 = vunpack.c.h.b16 %v3920
    %v4498 = vunpack.c.l.b16 %v3921
    %v4499 = vunpack.c.h.b16 %v3921
    %v4500 = vunpack.c.l.b16 %v3922
    %v4501 = vunpack.c.h.b16 %v3922
    %v4502 = vunpack.c.l.b16 %v3923
    %v4503 = vunpack.c.h.b16 %v3923
    %v4504 = vunpack.c.l.b16 %v3924
    %v4505 = vunpack.c.h.b16 %v3924
    %v4506 = vunpack.c.l.b16 %v3925
    %v4507 = vunpack.c.h.b16 %v3925
    %v4508 = vunpack.c.l.b16 %v3926
    %v4509 = vunpack.c.h.b16 %v3926
    %v4510 = vunpack.c.l.b16 %v3927
    %v4511 = vunpack.c.h.b16 %v3927
    %v4512 = vunpack.c.l.b16 %v3928
    %v4513 = vunpack.c.h.b16 %v3928
    %v4514 = vunpack.c.l.b16 %v3929
    %v4515 = vunpack.c.h.b16 %v3929
    %v4516 = vunpack.c.l.b16 %v3930
    %v4517 = vunpack.c.h.b16 %v3930
    %v4518 = vunpack.c.l.b16 %v3931
    %v4519 = vunpack.c.h.b16 %v3931
    %v4520 = vunpack.c.l.b16 %v3932
    %v4521 = vunpack.c.h.b16 %v3932
    %v4522 = vunpack.c.l.b16 %v3933
    %v4523 = vunpack.c.h.b16 %v3933
    %v4524 = vunpack.c.l.b16 %v3934
    %v4525 = vunpack.c.h.b16 %v3934
    %v4526 = vunpack.c.l.b16 %v3935
    %v4527 = vunpack.c.h.b16 %v3935
    %v4528 = vunpack.c.l.b16 %v3936
    %v4529 = vunpack.c.h.b16 %v3936
    %v4530 = vunpack.c.l.b16 %v3937
    %v4531 = vunpack.c.h.b16 %v3937
    %v4532 = vunpack.c.l.b16 %v3938
    %v4533 = vunpack.c.h.b16 %v3938
    %v4534 = vunpack.c.l.b16 %v3939
    %v4535 = vunpack.c.h.b16 %v3939
    %v4536 = vunpack.c.l.b16 %v3940
    %v4537 = vunpack.c.h.b16 %v3940
    %v4538 = vunpack.c.l.b16 %v3941
    %v4539 = vunpack.c.h.b16 %v3941
    %v4540 = vunpack.c.l.b16 %v3942
    %v4541 = vunpack.c.h.b16 %v3942
    %v4542 = vunpack.c.l.b16 %v3943
    %v4543 = vunpack.c.h.b16 %v3943
    %v4544 = vunpack.c.l.b16 %v3944
    %v4545 = vunpack.c.h.b16 %v3944
    %v4546 = vunpack.c.l.b16 %v3945
    %v4547 = vunpack.c.h.b16 %v3945
    %v4548 = vunpack.c.l.b16 %v3946
    %v4549 = vunpack.c.h.b16 %v3946
    %v4550 = vunpack.c.l.b16 %v3947
    %v4551 = vunpack.c.h.b16 %v3947
    %v4552 = vunpack.c.l.b16 %v3948
    %v4553 = vunpack.c.h.b16 %v3948
    %v4554 = vunpack.c.l.b16 %v3949
    %v4555 = vunpack.c.h.b16 %v3949
    %v4556 = vunpack.c.l.b16 %v3950
    %v4557 = vunpack.c.h.b16 %v3950
    %v4558 = vunpack.c.l.b16 %v3951
    %v4559 = vunpack.c.h.b16 %v3951
    %v4560 = vunpack.c.l.b16 %v3952
    %v4561 = vunpack.c.h.b16 %v3952
    %v4562 = vunpack.c.l.b16 %v3953
    %v4563 = vunpack.c.h.b16 %v3953
    %v4564 = vunpack.c.l.b16 %v3954
    %v4565 = vunpack.c.h.b16 %v3954
    %v4566 = vunpack.c.l.b16 %v3955
    %v4567 = vunpack.c.h.b16 %v3955
    %v4568 = vunpack.c.l.b16 %v3956
    %v4569 = vunpack.c.h.b16 %v3956
    %v4570 = vunpack.c.l.b16 %v3957
    %v4571 = vunpack.c.h.b16 %v3957
    %v4572 = vunpack.c.l.b16 %v3958
    %v4573 = vunpack.c.h.b16 %v3958
    %v4574 = vunpack.c.l.b16 %v3959
    %v4575 = vunpack.c.h.b16 %v3959
    %v4576 = vunpack.c.l.b16 %v3960
    %v4577 = vunpack.c.h.b16 %v3960
    %v4578 = vunpack.c.l.b16 %v3961
    %v4579 = vunpack.c.h.b16 %v3961
    %v4580 = vunpack.c.l.b16 %v3962
    %v4581 = vunpack.c.h.b16 %v3962
    %v4582 = vunpack.c.l.b16 %v3963
    %v4583 = vunpack.c.h.b16 %v3963
    %v4584 = vunpack.c.l.b16 %v3964
    %v4585 = vunpack.c.h.b16 %v3964
    %v4586 = vunpack.c.l.b16 %v3965
    %v4587 = vunpack.c.h.b16 %v3965
    %v4588 = vunpack.c.l.b16 %v3966
    %v4589 = vunpack.c.h.b16 %v3966
    %v4590 = vunpack.c.l.b16 %v3967
    %v4591 = vunpack.c.h.b16 %v3967
    %v4592 = vunpack.c.l.b16 %v3968
    %v4593 = vunpack.c.h.b16 %v3968
    %v4594 = vunpack.c.l.b16 %v3969
    %v4595 = vunpack.c.h.b16 %v3969
    %v4596 = vunpack.c.l.b16 %v3970
    %v4597 = vunpack.c.h.b16 %v3970
    %v4598 = vunpack.c.l.b16 %v3971
    %v4599 = vunpack.c.h.b16 %v3971
    %v4600 = vunpack.c.l.b16 %v3972
    %v4601 = vunpack.c.h.b16 %v3972
    %v4602 = vunpack.c.l.b16 %v3973
    %v4603 = vunpack.c.h.b16 %v3973
    %v4604 = vunpack.c.l.b16 %v3974
    %v4605 = vunpack.c.h.b16 %v3974
    %v4606 = vunpack.c.l.b16 %v3975
    %v4607 = vunpack.c.h.b16 %v3975
    %v4608 = vunpack.c.l.b16 %v3976
    %v4609 = vunpack.c.h.b16 %v3976
    %v4610 = vunpack.c.l.b16 %v3977
    %v4611 = vunpack.c.h.b16 %v3977
    %v4612 = vunpack.c.l.b16 %v3978
    %v4613 = vunpack.c.h.b16 %v3978
    %v4614 = vunpack.c.l.b16 %v3979
    %v4615 = vunpack.c.h.b16 %v3979
    %v4616 = vunpack.c.l.b16 %v3980
    %v4617 = vunpack.c.h.b16 %v3980
    %v4618 = vunpack.c.l.b16 %v3981
    %v4619 = vunpack.c.h.b16 %v3981
    %v4620 = vunpack.c.l.b16 %v3982
    %v4621 = vunpack.c.h.b16 %v3982
    %v4622 = vunpack.c.l.b16 %v3983
    %v4623 = vunpack.c.h.b16 %v3983
    %v4624 = vunpack.c.l.b16 %v3984
    %v4625 = vunpack.c.h.b16 %v3984
    %v4626 = vunpack.c.l.b16 %v3985
    %v4627 = vunpack.c.h.b16 %v3985
    %v4628 = vunpack.c.l.b16 %v3986
    %v4629 = vunpack.c.h.b16 %v3986
    %v4630 = vunpack.c.l.b16 %v3987
    %v4631 = vunpack.c.h.b16 %v3987
    %v4632 = vunpack.c.l.b16 %v3988
    %v4633 = vunpack.c.h.b16 %v3988
    %v4634 = vunpack.c.l.b16 %v3989
    %v4635 = vunpack.c.h.b16 %v3989
    %v4636 = vunpack.c.l.b16 %v3990
    %v4637 = vunpack.c.h.b16 %v3990
    %v4638 = vunpack.c.l.b16 %v3991
    %v4639 = vunpack.c.h.b16 %v3991
    %v4640 = vunpack.c.l.b16 %v3992
    %v4641 = vunpack.c.h.b16 %v3992
    %v4642 = vunpack.c.l.b16 %v3993
    %v4643 = vunpack.c.h.b16 %v3993
    %v4644 = vunpack.c.l.b16 %v3994
    %v4645 = vunpack.c.h.b16 %v3994
    %v4646 = vunpack.c.l.b16 %v3995
    %v4647 = vunpack.c.h.b16 %v3995
    %v4648 = vunpack.c.l.b16 %v3996
    %v4649 = vunpack.c.h.b16 %v3996
    %v4650 = vunpack.c.l.b16 %v3997
    %v4651 = vunpack.c.h.b16 %v3997
    %v4652 = vunpack.c.l.b16 %v3998
    %v4653 = vunpack.c.h.b16 %v3998
    %v4654 = vunpack.c.l.b16 %v3999
    %v4655 = vunpack.c.h.b16 %v3999
    %v4656 = vunpack.c.l.b16 %v4000
    %v4657 = vunpack.c.h.b16 %v4000
    %v4658 = vunpack.c.l.b16 %v4001
    %v4659 = vunpack.c.h.b16 %v4001
    %v4660 = vunpack.c.l.b16 %v4002
    %v4661 = vunpack.c.h.b16 %v4002
    %v4662 = vunpack.c.l.b16 %v4003
    %v4663 = vunpack.c.h.b16 %v4003
    %v4664 = vunpack.c.l.b16 %v4004
    %v4665 = vunpack.c.h.b16 %v4004
    %v4666 = vunpack.c.l.b16 %v4005
    %v4667 = vunpack.c.h.b16 %v4005
    %v4668 = vunpack.c.l.b16 %v4006
    %v4669 = vunpack.c.h.b16 %v4006
    %v4670 = vunpack.c.l.b16 %v4007
    %v4671 = vunpack.c.h.b16 %v4007
    %v4672 = vunpack.c.l.b16 %v4008
    %v4673 = vunpack.c.h.b16 %v4008
    %v4674 = vunpack.c.l.b16 %v4009
    %v4675 = vunpack.c.h.b16 %v4009
    %v4676 = vunpack.c.l.b16 %v4010
    %v4677 = vunpack.c.h.b16 %v4010
    %v4678 = vunpack.c.l.b16 %v4011
    %v4679 = vunpack.c.h.b16 %v4011
    %v4680 = vunpack.c.l.b16 %v4012
    %v4681 = vunpack.c.h.b16 %v4012
    %v4682 = vunpack.c.l.b16 %v4013
    %v4683 = vunpack.c.h.b16 %v4013
    %v4684 = vunpack.c.l.b16 %v4014
    %v4685 = vunpack.c.h.b16 %v4014
    %v4686 = vunpack.c.l.b16 %v4015
    %v4687 = vunpack.c.h.b16 %v4015
    %v4688 = vunpack.c.l.b16 %v4016
    %v4689 = vunpack.c.h.b16 %v4016
    %v4690 = vunpack.c.l.b16 %v4017
    %v4691 = vunpack.c.h.b16 %v4017
    %v4692 = vunpack.c.l.b16 %v4018
    %v4693 = vunpack.c.h.b16 %v4018
    %v4694 = vunpack.c.l.b16 %v4019
    %v4695 = vunpack.c.h.b16 %v4019
    %v4696 = vunpack.c.l.b16 %v4020
    %v4697 = vunpack.c.h.b16 %v4020
    %v4698 = vunpack.c.l.b16 %v4021
    %v4699 = vunpack.c.h.b16 %v4021
    %v4700 = vunpack.c.l.b16 %v4022
    %v4701 = vunpack.c.h.b16 %v4022
    %v4702 = vunpack.c.l.b16 %v4023
    %v4703 = vunpack.c.h.b16 %v4023
    %v4704 = vunpack.c.l.b16 %v4024
    %v4705 = vunpack.c.h.b16 %v4024
    %v4706 = vunpack.c.l.b16 %v4025
    %v4707 = vunpack.c.h.b16 %v4025
    %v4708 = vunpack.c.l.b16 %v4026
    %v4709 = vunpack.c.h.b16 %v4026
    %v4710 = vunpack.c.l.b16 %v4027
    %v4711 = vunpack.c.h.b16 %v4027
    %v4712 = vunpack.c.l.b16 %v4028
    %v4713 = vunpack.c.h.b16 %v4028
    %v4714 = vunpack.c.l.b16 %v4029
    %v4715 = vunpack.c.h.b16 %v4029
    %v4716 = vunpack.c.l.b16 %v4030
    %v4717 = vunpack.c.h.b16 %v4030
    %v4718 = vunpack.c.l.b16 %v4031
    %v4719 = vunpack.c.h.b16 %v4031
    %v4720 = vunpack.c.l.b16 %v4032
    %v4721 = vunpack.c.h.b16 %v4032
    %v4722 = vunpack.c.l.b16 %v4033
    %v4723 = vunpack.c.h.b16 %v4033
    %v4724 = vunpack.c.l.b16 %v4034
    %v4725 = vunpack.c.h.b16 %v4034
    %v4726 = vunpack.c.l.b16 %v4035
    %v4727 = vunpack.c.h.b16 %v4035
    %v4728 = vunpack.c.l.b16 %v4036
    %v4729 = vunpack.c.h.b16 %v4036
    %v4730 = vunpack.c.l.b16 %v4037
    %v4731 = vunpack.c.h.b16 %v4037
    %v4732 = vunpack.c.l.b16 %v4038
    %v4733 = vunpack.c.h.b16 %v4038
    %v4734 = vunpack.c.l.b16 %v4039
    %v4735 = vunpack.c.h.b16 %v4039
    %v4736 = vunpack.c.l.b16 %v4040
    %v4737 = vunpack.c.h.b16 %v4040
    %v4738 = vunpack.c.l.b16 %v4041
    %v4739 = vunpack.c.h.b16 %v4041
    %v4740 = vunpack.c.l.b16 %v4042
    %v4741 = vunpack.c.h.b16 %v4042
    %v4742 = vunpack.c.l.b16 %v4043
    %v4743 = vunpack.c.h.b16 %v4043
    %v4744 = vunpack.c.l.b16 %v4044
    %v4745 = vunpack.c.h.b16 %v4044
    %v4746 = vunpack.c.l.b16 %v4045
    %v4747 = vunpack.c.h.b16 %v4045
    %v4748 = vunpack.c.l.b16 %v4046
    %v4749 = vunpack.c.h.b16 %v4046
    %v4750 = vunpack.c.l.b16 %v4047
    %v4751 = vunpack.c.h.b16 %v4047
    %v4752 = vunpack.c.l.b16 %v4048
    %v4753 = vunpack.c.h.b16 %v4048
    %v4754 = vunpack.c.l.b16 %v4049
    %v4755 = vunpack.c.h.b16 %v4049
    %v4756 = vunpack.c.l.b16 %v4050
    %v4757 = vunpack.c.h.b16 %v4050
    %v4758 = vunpack.c.l.b16 %v4051
    %v4759 = vunpack.c.h.b16 %v4051
    %v4760 = vunpack.c.l.b16 %v4052
    %v4761 = vunpack.c.h.b16 %v4052
    %v4762 = vunpack.c.l.b16 %v4053
    %v4763 = vunpack.c.h.b16 %v4053
    %v4764 = vunpack.c.l.b16 %v4054
    %v4765 = vunpack.c.h.b16 %v4054
    %v4766 = vunpack.c.l.b16 %v4055
    %v4767 = vunpack.c.h.b16 %v4055
    %v4768 = vunpack.c.l.b16 %v4056
    %v4769 = vunpack.c.h.b16 %v4056
    %v4770 = vunpack.c.l.b16 %v4057
    %v4771 = vunpack.c.h.b16 %v4057
    %v4772 = vunpack.c.l.b16 %v4058
    %v4773 = vunpack.c.h.b16 %v4058
    %v4774 = vunpack.c.l.b16 %v4059
    %v4775 = vunpack.c.h.b16 %v4059
    %v4776 = vunpack.c.l.b16 %v4060
    %v4777 = vunpack.c.h.b16 %v4060
    %v4778 = vunpack.c.l.b16 %v4061
    %v4779 = vunpack.c.h.b16 %v4061
    %v4780 = vunpack.c.l.b16 %v4062
    %v4781 = vunpack.c.h.b16 %v4062
    %v4782 = vunpack.c.l.b16 %v4063
    %v4783 = vunpack.c.h.b16 %v4063
    %v4784 = vunpack.c.l.b16 %v4064
    %v4785 = vunpack.c.h.b16 %v4064
    %v4786 = vunpack.c.l.b16 %v4065
    %v4787 = vunpack.c.h.b16 %v4065
    %v4788 = vunpack.c.l.b16 %v4066
    %v4789 = vunpack.c.h.b16 %v4066
    %v4790 = vunpack.c.l.b16 %v4067
    %v4791 = vunpack.c.h.b16 %v4067
    %v4792 = vunpack.c.l.b16 %v4068
    %v4793 = vunpack.c.h.b16 %v4068
    %v4794 = vunpack.c.l.b16 %v4069
    %v4795 = vunpack.c.h.b16 %v4069
    %v4796 = vunpack.c.l.b16 %v4070
    %v4797 = vunpack.c.h.b16 %v4070
    %v4798 = vunpack.c.l.b16 %v4071
    %v4799 = vunpack.c.h.b16 %v4071
    %v4800 = vunpack.c.l.b16 %v4072
    %v4801 = vunpack.c.h.b16 %v4072
    %v4802 = vunpack.c.l.b16 %v4073
    %v4803 = vunpack.c.h.b16 %v4073
    %v4804 = vunpack.c.l.b16 %v4074
    %v4805 = vunpack.c.h.b16 %v4074
    %v4806 = vunpack.c.l.b16 %v4075
    %v4807 = vunpack.c.h.b16 %v4075
    %v4808 = vunpack.c.l.b16 %v4076
    %v4809 = vunpack.c.h.b16 %v4076
    %v4810 = vunpack.c.l.b16 %v4077
    %v4811 = vunpack.c.h.b16 %v4077
    %v4812 = vunpack.c.l.b16 %v4078
    %v4813 = vunpack.c.h.b16 %v4078
    %v4814 = vunpack.c.l.b16 %v4079
    %v4815 = vunpack.c.h.b16 %v4079
    %v4816 = vunpack.c.l.b16 %v4080
    %v4817 = vunpack.c.h.b16 %v4080
    %v4818 = vunpack.c.l.b16 %v4081
    %v4819 = vunpack.c.h.b16 %v4081
    %v4820 = vunpack.c.l.b16 %v4082
    %v4821 = vunpack.c.h.b16 %v4082
    %v4822 = vunpack.c.l.b16 %v4083
    %v4823 = vunpack.c.h.b16 %v4083
    %v4824 = vunpack.c.l.b16 %v4084
    %v4825 = vunpack.c.h.b16 %v4084
    %v4826 = vunpack.c.l.b16 %v4085
    %v4827 = vunpack.c.h.b16 %v4085
    %v4828 = vunpack.c.l.b16 %v4086
    %v4829 = vunpack.c.h.b16 %v4086
    %v4830 = vunpack.c.l.b16 %v4087
    %v4831 = vunpack.c.h.b16 %v4087
    %v4832 = vunpack.c.l.b16 %v4088
    %v4833 = vunpack.c.h.b16 %v4088
    %v4834 = vunpack.c.l.b16 %v4089
    %v4835 = vunpack.c.h.b16 %v4089
    %v4836 = vunpack.c.l.b16 %v4090
    %v4837 = vunpack.c.h.b16 %v4090
    %v4838 = vunpack.c.l.b16 %v4091
    %v4839 = vunpack.c.h.b16 %v4091
    %v4840 = vunpack.c.l.b16 %v4092
    %v4841 = vunpack.c.h.b16 %v4092
    %v4842 = vunpack.c.l.b16 %v4093
    %v4843 = vunpack.c.h.b16 %v4093
    %v4844 = vunpack.c.l.b16 %v4094
    %v4845 = vunpack.c.h.b16 %v4094
    %v4846 = vunpack.c.l.b16 %v4095
    %v4847 = vunpack.c.h.b16 %v4095
    %v4848 = vunpack.c.l.b16 %v4096
    %v4849 = vunpack.c.h.b16 %v4096
    %v4850 = vunpack.c.l.b16 %v4097
    %v4851 = vunpack.c.h.b16 %v4097
    %v4852 = vunpack.c.l.b16 %v4098
    %v4853 = vunpack.c.h.b16 %v4098
    %v4854 = vunpack.c.l.b16 %v4099
    %v4855 = vunpack.c.h.b16 %v4099
    %v4856 = vunpack.c.l.b16 %v4100
    %v4857 = vunpack.c.h.b16 %v4100
    %v4858 = vunpack.c.l.b16 %v4101
    %v4859 = vunpack.c.h.b16 %v4101
    %v4860 = vunpack.c.l.b16 %v4102
    %v4861 = vunpack.c.h.b16 %v4102
    %v4862 = vunpack.c.l.b16 %v4103
    %v4863 = vunpack.c.h.b16 %v4103
    %v4864 = vunpack.c.l.b16 %v4104
    %v4865 = vunpack.c.h.b16 %v4104
    %v4866 = vunpack.c.l.b16 %v4105
    %v4867 = vunpack.c.h.b16 %v4105
    %v4868 = vunpack.c.l.b16 %v4106
    %v4869 = vunpack.c.h.b16 %v4106
    %v4870 = vunpack.c.l.b16 %v4107
    %v4871 = vunpack.c.h.b16 %v4107
    %v4872 = vunpack.c.l.b16 %v4108
    %v4873 = vunpack.c.h.b16 %v4108
    %v4874 = vunpack.c.l.b16 %v4109
    %v4875 = vunpack.c.h.b16 %v4109
    %v4876 = vunpack.c.l.b16 %v4110
    %v4877 = vunpack.c.h.b16 %v4110
    %v4878 = vunpack.c.l.b16 %v4111
    %v4879 = vunpack.c.h.b16 %v4111
    %v4880 = vunpack.c.l.b16 %v4112
    %v4881 = vunpack.c.h.b16 %v4112
    %v4882 = vunpack.c.l.b16 %v4113
    %v4883 = vunpack.c.h.b16 %v4113
    %v4884 = vunpack.c.l.b16 %v4114
    %v4885 = vunpack.c.h.b16 %v4114
    %v4886 = vunpack.c.l.b16 %v4115
    %v4887 = vunpack.c.h.b16 %v4115
    %v4888 = vunpack.c.l.b16 %v4116
    %v4889 = vunpack.c.h.b16 %v4116
    %v4890 = vunpack.c.l.b16 %v4117
    %v4891 = vunpack.c.h.b16 %v4117
    %v4892 = vunpack.c.l.b16 %v4118
    %v4893 = vunpack.c.h.b16 %v4118
    %v4894 = vunpack.c.l.b16 %v4119
    %v4895 = vunpack.c.h.b16 %v4119
    %v4896 = vunpack.c.l.b16 %v4120
    %v4897 = vunpack.c.h.b16 %v4120
    %v4898 = vunpack.c.l.b16 %v4121
    %v4899 = vunpack.c.h.b16 %v4121
    %v4900 = vunpack.c.l.b16 %v4122
    %v4901 = vunpack.c.h.b16 %v4122
    %v4902 = vunpack.c.l.b16 %v4123
    %v4903 = vunpack.c.h.b16 %v4123
    %v4904 = vunpack.c.l.b16 %v4124
    %v4905 = vunpack.c.h.b16 %v4124
    %v4906 = vunpack.c.l.b16 %v4125
    %v4907 = vunpack.c.h.b16 %v4125
    %v4908 = vunpack.c.l.b16 %v4126
    %v4909 = vunpack.c.h.b16 %v4126
    %v4910 = vunpack.c.l.b16 %v4127
    %v4911 = vunpack.c.h.b16 %v4127
    %v4912 = vunpack.c.l.b16 %v4128
    %v4913 = vunpack.c.h.b16 %v4128
    %v4914 = vunpack.c.l.b16 %v4129
    %v4915 = vunpack.c.h.b16 %v4129
    %v4916 = vunpack.c.l.b16 %v4130
    %v4917 = vunpack.c.h.b16 %v4130
    %v4918 = vunpack.c.l.b16 %v4131
    %v4919 = vunpack.c.h.b16 %v4131
    %v4920 = vunpack.c.l.b16 %v4132
    %v4921 = vunpack.c.h.b16 %v4132
    %v4922 = vunpack.c.l.b16 %v4133
    %v4923 = vunpack.c.h.b16 %v4133
    %v4924 = vunpack.c.l.b16 %v4134
    %v4925 = vunpack.c.h.b16 %v4134
    %v4926 = vpack.c.b16 %v4418, %v4414
    %v4927 = vpack.c.b16 %v4419, %v4415
    %v4928 = vpack.c.b16 %v4420, %v4416
    %v4929 = vpack.c.b16 %v4421, %v4417
    %v4930 = vpack.c.b16 %v4426, %v4422
    %v4931 = vpack.c.b16 %v4427, %v4423
    %v4932 = vpack.c.b16 %v4428, %v4424
    %v4933 = vpack.c.b16 %v4429, %v4425
    %v4934 = vpack.c.b16 %v4434, %v4430
    %v4935 = vpack.c.b16 %v4435, %v4431
    %v4936 = vpack.c.b16 %v4436, %v4432
    %v4937 = vpack.c.b16 %v4437, %v4433
    %v4938 = vpack.c.b16 %v4442, %v4438
    %v4939 = vpack.c.b16 %v4443, %v4439
    %v4940 = vpack.c.b16 %v4444, %v4440
    %v4941 = vpack.c.b16 %v4445, %v4441
    %v4942 = vpack.c.b16 %v4450, %v4446
    %v4943 = vpack.c.b16 %v4451, %v4447
    %v4944 = vpack.c.b16 %v4452, %v4448
    %v4945 = vpack.c.b16 %v4453, %v4449
    %v4946 = vpack.c.b16 %v4458, %v4454
    %v4947 = vpack.c.b16 %v4459, %v4455
    %v4948 = vpack.c.b16 %v4460, %v4456
    %v4949 = vpack.c.b16 %v4461, %v4457
    %v4950 = vpack.c.b16 %v4466, %v4462
    %v4951 = vpack.c.b16 %v4467, %v4463
    %v4952 = vpack.c.b16 %v4468, %v4464
    %v4953 = vpack.c.b16 %v4469, %v4465
    %v4954 = vpack.c.b16 %v4474, %v4470
    %v4955 = vpack.c.b16 %v4475, %v4471
    %v4956 = vpack.c.b16 %v4476, %v4472
    %v4957 = vpack.c.b16 %v4477, %v4473
    %v4958 = vpack.c.b16 %v4482, %v4478
    %v4959 = vpack.c.b16 %v4483, %v4479
    %v4960 = vpack.c.b16 %v4484, %v4480
    %v4961 = vpack.c.b16 %v4485, %v4481
    %v4962 = vpack.c.b16 %v4490, %v4486
    %v4963 = vpack.c.b16 %v4491, %v4487
    %v4964 = vpack.c.b16 %v4492, %v4488
    %v4965 = vpack.c.b16 %v4493, %v4489
    %v4966 = vpack.c.b16 %v4498, %v4494
    %v4967 = vpack.c.b16 %v4499, %v4495
    %v4968 = vpack.c.b16 %v4500, %v4496
    %v4969 = vpack.c.b16 %v4501, %v4497
    %v4970 = vpack.c.b16 %v4506, %v4502
    %v4971 = vpack.c.b16 %v4507, %v4503
    %v4972 = vpack.c.b16 %v4508, %v4504
    %v4973 = vpack.c.b16 %v4509, %v4505
    %v4974 = vpack.c.b16 %v4514, %v4510
    %v4975 = vpack.c.b16 %v4515, %v4511
    %v4976 = vpack.c.b16 %v4516, %v4512
    %v4977 = vpack.c.b16 %v4517, %v4513
    %v4978 = vpack.c.b16 %v4522, %v4518
    %v4979 = vpack.c.b16 %v4523, %v4519
    %v4980 = vpack.c.b16 %v4524, %v4520
    %v4981 = vpack.c.b16 %v4525, %v4521
    %v4982 = vpack.c.b16 %v4530, %v4526
    %v4983 = vpack.c.b16 %v4531, %v4527
    %v4984 = vpack.c.b16 %v4532, %v4528
    %v4985 = vpack.c.b16 %v4533, %v4529
    %v4986 = vpack.c.b16 %v4538, %v4534
    %v4987 = vpack.c.b16 %v4539, %v4535
    %v4988 = vpack.c.b16 %v4540, %v4536
    %v4989 = vpack.c.b16 %v4541, %v4537
    %v4990 = vpack.c.b16 %v4546, %v4542
    %v4991 = vpack.c.b16 %v4547, %v4543
    %v4992 = vpack.c.b16 %v4548, %v4544
    %v4993 = vpack.c.b16 %v4549, %v4545
    %v4994 = vpack.c.b16 %v4554, %v4550
    %v4995 = vpack.c.b16 %v4555, %v4551
    %v4996 = vpack.c.b16 %v4556, %v4552
    %v4997 = vpack.c.b16 %v4557, %v4553
    %v4998 = vpack.c.b16 %v4562, %v4558
    %v4999 = vpack.c.b16 %v4563, %v4559
    %v5000 = vpack.c.b16 %v4564, %v4560
    %v5001 = vpack.c.b16 %v4565, %v4561
    %v5002 = vpack.c.b16 %v4570, %v4566
    %v5003 = vpack.c.b16 %v4571, %v4567
    %v5004 = vpack.c.b16 %v4572, %v4568
    %v5005 = vpack.c.b16 %v4573, %v4569
    %v5006 = vpack.c.b16 %v4578, %v4574
    %v5007 = vpack.c.b16 %v4579, %v4575
    %v5008 = vpack.c.b16 %v4580, %v4576
    %v5009 = vpack.c.b16 %v4581, %v4577
    %v5010 = vpack.c.b16 %v4586, %v4582
    %v5011 = vpack.c.b16 %v4587, %v4583
    %v5012 = vpack.c.b16 %v4588, %v4584
    %v5013 = vpack.c.b16 %v4589, %v4585
    %v5014 = vpack.c.b16 %v4594, %v4590
    %v5015 = vpack.c.b16 %v4595, %v4591
    %v5016 = vpack.c.b16 %v4596, %v4592
    %v5017 = vpack.c.b16 %v4597, %v4593
    %v5018 = vpack.c.b16 %v4602, %v4598
    %v5019 = vpack.c.b16 %v4603, %v4599
    %v5020 = vpack.c.b16 %v4604, %v4600
    %v5021 = vpack.c.b16 %v4605, %v4601
    %v5022 = vpack.c.b16 %v4610, %v4606
    %v5023 = vpack.c.b16 %v4611, %v4607
    %v5024 = vpack.c.b16 %v4612, %v4608
    %v5025 = vpack.c.b16 %v4613, %v4609
    %v5026 = vpack.c.b16 %v4618, %v4614
    %v5027 = vpack.c.b16 %v4619, %v4615
    %v5028 = vpack.c.b16 %v4620, %v4616
    %v5029 = vpack.c.b16 %v4621, %v4617
    %v5030 = vpack.c.b16 %v4626, %v4622
    %v5031 = vpack.c.b16 %v4627, %v4623
    %v5032 = vpack.c.b16 %v4628, %v4624
    %v5033 = vpack.c.b16 %v4629, %v4625
    %v5034 = vpack.c.b16 %v4634, %v4630
    %v5035 = vpack.c.b16 %v4635, %v4631
    %v5036 = vpack.c.b16 %v4636, %v4632
    %v5037 = vpack.c.b16 %v4637, %v4633
    %v5038 = vpack.c.b16 %v4642, %v4638
    %v5039 = vpack.c.b16 %v4643, %v4639
    %v5040 = vpack.c.b16 %v4644, %v4640
    %v5041 = vpack.c.b16 %v4645, %v4641
    %v5042 = vpack.c.b16 %v4650, %v4646
    %v5043 = vpack.c.b16 %v4651, %v4647
    %v5044 = vpack.c.b16 %v4652, %v4648
    %v5045 = vpack.c.b16 %v4653, %v4649
    %v5046 = vpack.c.b16 %v4658, %v4654
    %v5047 = vpack.c.b16 %v4659, %v4655
    %v5048 = vpack.c.b16 %v4660, %v4656
    %v5049 = vpack.c.b16 %v4661, %v4657
    %v5050 = vpack.c.b16 %v4666, %v4662
    %v5051 = vpack.c.b16 %v4667, %v4663
    %v5052 = vpack.c.b16 %v4668, %v4664
    %v5053 = vpack.c.b16 %v4669, %v4665
    %v5054 = vpack.c.b16 %v4674, %v4670
    %v5055 = vpack.c.b16 %v4675, %v4671
    %v5056 = vpack.c.b16 %v4676, %v4672
    %v5057 = vpack.c.b16 %v4677, %v4673
    %v5058 = vpack.c.b16 %v4682, %v4678
    %v5059 = vpack.c.b16 %v4683, %v4679
    %v5060 = vpack.c.b16 %v4684, %v4680
    %v5061 = vpack.c.b16 %v4685, %v4681
    %v5062 = vpack.c.b16 %v4690, %v4686
    %v5063 = vpack.c.b16 %v4691, %v4687
    %v5064 = vpack.c.b16 %v4692, %v4688
    %v5065 = vpack.c.b16 %v4693, %v4689
    %v5066 = vpack.c.b16 %v4698, %v4694
    %v5067 = vpack.c.b16 %v4699, %v4695
    %v5068 = vpack.c.b16 %v4700, %v4696
    %v5069 = vpack.c.b16 %v4701, %v4697
    %v5070 = vpack.c.b16 %v4706, %v4702
    %v5071 = vpack.c.b16 %v4707, %v4703
    %v5072 = vpack.c.b16 %v4708, %v4704
    %v5073 = vpack.c.b16 %v4709, %v4705
    %v5074 = vpack.c.b16 %v4714, %v4710
    %v5075 = vpack.c.b16 %v4715, %v4711
    %v5076 = vpack.c.b16 %v4716, %v4712
    %v5077 = vpack.c.b16 %v4717, %v4713
    %v5078 = vpack.c.b16 %v4722, %v4718
    %v5079 = vpack.c.b16 %v4723, %v4719
    %v5080 = vpack.c.b16 %v4724, %v4720
    %v5081 = vpack.c.b16 %v4725, %v4721
    %v5082 = vpack.c.b16 %v4730, %v4726
    %v5083 = vpack.c.b16 %v4731, %v4727
    %v5084 = vpack.c.b16 %v4732, %v4728
    %v5085 = vpack.c.b16 %v4733, %v4729
    %v5086 = vpack.c.b16 %v4738, %v4734
    %v5087 = vpack.c.b16 %v4739, %v4735
    %v5088 = vpack.c.b16 %v4740, %v4736
    %v5089 = vpack.c.b16 %v4741, %v4737
    %v5090 = vpack.c.b16 %v4746, %v4742
    %v5091 = vpack.c.b16 %v4747, %v4743
    %v5092 = vpack.c.b16 %v4748, %v4744
    %v5093 = vpack.c.b16 %v4749, %v4745
    %v5094 = vpack.c.b16 %v4754, %v4750
    %v5095 = vpack.c.b16 %v4755, %v4751
    %v5096 = vpack.c.b16 %v4756, %v4752
    %v5097 = vpack.c.b16 %v4757, %v4753
    %v5098 = vpack.c.b16 %v4762, %v4758
    %v5099 = vpack.c.b16 %v4763, %v4759
    %v5100 = vpack.c.b16 %v4764, %v4760
    %v5101 = vpack.c.b16 %v4765, %v4761
    %v5102 = vpack.c.b16 %v4770, %v4766
    %v5103 = vpack.c.b16 %v4771, %v4767
    %v5104 = vpack.c.b16 %v4772, %v4768
    %v5105 = vpack.c.b16 %v4773, %v4769
    %v5106 = vpack.c.b16 %v4778, %v4774
    %v5107 = vpack.c.b16 %v4779, %v4775
    %v5108 = vpack.c.b16 %v4780, %v4776
    %v5109 = vpack.c.b16 %v4781, %v4777
    %v5110 = vpack.c.b16 %v4786, %v4782
    %v5111 = vpack.c.b16 %v4787, %v4783
    %v5112 = vpack.c.b16 %v4788, %v4784
    %v5113 = vpack.c.b16 %v4789, %v4785
    %v5114 = vpack.c.b16 %v4794, %v4790
    %v5115 = vpack.c.b16 %v4795, %v4791
    %v5116 = vpack.c.b16 %v4796, %v4792
    %v5117 = vpack.c.b16 %v4797, %v4793
    %v5118 = vpack.c.b16 %v4802, %v4798
    %v5119 = vpack.c.b16 %v4803, %v4799
    %v5120 = vpack.c.b16 %v4804, %v4800
    %v5121 = vpack.c.b16 %v4805, %v4801
    %v5122 = vpack.c.b16 %v4810, %v4806
    %v5123 = vpack.c.b16 %v4811, %v4807
    %v5124 = vpack.c.b16 %v4812, %v4808
    %v5125 = vpack.c.b16 %v4813, %v4809
    %v5126 = vpack.c.b16 %v4818, %v4814
    %v5127 = vpack.c.b16 %v4819, %v4815
    %v5128 = vpack.c.b16 %v4820, %v4816
    %v5129 = vpack.c.b16 %v4821, %v4817
    %v5130 = vpack.c.b16 %v4826, %v4822
    %v5131 = vpack.c.b16 %v4827, %v4823
    %v5132 = vpack.c.b16 %v4828, %v4824
    %v5133 = vpack.c.b16 %v4829, %v4825
    %v5134 = vpack.c.b16 %v4834, %v4830
    %v5135 = vpack.c.b16 %v4835, %v4831
    %v5136 = vpack.c.b16 %v4836, %v4832
    %v5137 = vpack.c.b16 %v4837, %v4833
    %v5138 = vpack.c.b16 %v4842, %v4838
    %v5139 = vpack.c.b16 %v4843, %v4839
    %v5140 = vpack.c.b16 %v4844, %v4840
    %v5141 = vpack.c.b16 %v4845, %v4841
    %v5142 = vpack.c.b16 %v4850, %v4846
    %v5143 = vpack.c.b16 %v4851, %v4847
    %v5144 = vpack.c.b16 %v4852, %v4848
    %v5145 = vpack.c.b16 %v4853, %v4849
    %v5146 = vpack.c.b16 %v4858, %v4854
    %v5147 = vpack.c.b16 %v4859, %v4855
    %v5148 = vpack.c.b16 %v4860, %v4856
    %v5149 = vpack.c.b16 %v4861, %v4857
    %v5150 = vpack.c.b16 %v4866, %v4862
    %v5151 = vpack.c.b16 %v4867, %v4863
    %v5152 = vpack.c.b16 %v4868, %v4864
    %v5153 = vpack.c.b16 %v4869, %v4865
    %v5154 = vpack.c.b16 %v4874, %v4870
    %v5155 = vpack.c.b16 %v4875, %v4871
    %v5156 = vpack.c.b16 %v4876, %v4872
    %v5157 = vpack.c.b16 %v4877, %v4873
    %v5158 = vpack.c.b16 %v4882, %v4878
    %v5159 = vpack.c.b16 %v4883, %v4879
    %v5160 = vpack.c.b16 %v4884, %v4880
    %v5161 = vpack.c.b16 %v4885, %v4881
    %v5162 = vpack.c.b16 %v4890, %v4886
    %v5163 = vpack.c.b16 %v4891, %v4887
    %v5164 = vpack.c.b16 %v4892, %v4888
    %v5165 = vpack.c.b16 %v4893, %v4889
    %v5166 = vpack.c.b16 %v4898, %v4894
    %v5167 = vpack.c.b16 %v4899, %v4895
    %v5168 = vpack.c.b16 %v4900, %v4896
    %v5169 = vpack.c.b16 %v4901, %v4897
    %v5170 = vpack.c.b16 %v4906, %v4902
    %v5171 = vpack.c.b16 %v4907, %v4903
    %v5172 = vpack.c.b16 %v4908, %v4904
    %v5173 = vpack.c.b16 %v4909, %v4905
    %v5174 = vpack.c.b16 %v4914, %v4910
    %v5175 = vpack.c.b16 %v4915, %v4911
    %v5176 = vpack.c.b16 %v4916, %v4912
    %v5177 = vpack.c.b16 %v4917, %v4913
    %v5178 = vpack.c.b16 %v4922, %v4918
    %v5179 = vpack.c.b16 %v4923, %v4919
    %v5180 = vpack.c.b16 %v4924, %v4920
    %v5181 = vpack.c.b16 %v4925, %v4921
    %5438 = vmatprep.subr.bf16.mxu0 %v4955
    %5439 = vmatpush1.bf16.msra.mxu0 %v4954
    %5440 = vmatprep.subr.bf16.mxu0 %v4951
    %5441 = vmatpush1.bf16.msra.mxu0 %v4950
    %5442 = vmatprep.subr.bf16.mxu0 %v4947
    %5443 = vmatpush1.bf16.msra.mxu0 %v4946
    %5444 = vmatprep.subr.bf16.mxu0 %v4943
    %5445 = vmatpush1.bf16.msra.mxu0 %v4942
    %5446 = vmatprep.subr.bf16.mxu0 %v4939
    %5447 = vmatpush1.bf16.msra.mxu0 %v4938
    %5448 = vmatprep.subr.bf16.mxu0 %v4935
    %5449 = vmatpush1.bf16.msra.mxu0 %v4934
    %5450 = vmatprep.subr.bf16.mxu0 %v4931
    %5451 = vmatpush1.bf16.msra.mxu0 %v4930
    %5452 = vmatprep.subr.bf16.mxu0 %v4927
    %5453 = vmatpush1.bf16.msra.mxu0 %v4926
    %5454 = vmatprep.subr.bf16.mxu0 %v4987
    %5455 = vmatpush2.bf16.msra.mxu0 %v4986
    %5456 = vmatprep.subr.bf16.mxu0 %v4983
    %5457 = vmatpush2.bf16.msra.mxu0 %v4982
    %5458 = vmatprep.subr.bf16.mxu0 %v4979
    %5459 = vmatpush2.bf16.msra.mxu0 %v4978
    %5460 = vmatprep.subr.bf16.mxu0 %v4975
    %5461 = vmatpush2.bf16.msra.mxu0 %v4974
    %5462 = vmatprep.subr.bf16.mxu0 %v4971
    %5463 = vmatpush2.bf16.msra.mxu0 %v4970
    %5464 = vmatprep.subr.bf16.mxu0 %v4967
    %5465 = vmatpush2.bf16.msra.mxu0 %v4966
    %5466 = vmatprep.subr.bf16.mxu0 %v4963
    %5467 = vmatpush2.bf16.msra.mxu0 %v4962
    %5468 = vmatprep.subr.bf16.mxu0 %v4959
    %5469 = vmatpush2.bf16.msra.mxu0 %v4958
    %5470 = vmatprep.mubr.bf16.mxu0 %v3872
    %5471 = vmatmul.mubr.bf16.gmra.mxu0 %v3871
    %v5472 = vpop.f32.mrf.mxu0
    %v5473 = vadd.f32 %v4141, %v5472
    %v5474 = vpop.f32.mrf.mxu0
    %v5475 = vadd.f32 %v4145, %v5474
    %v5476 = vpop.f32.mrf.mxu0
    %v5477 = vpop.f32.mrf.mxu0
    %5478 = vdwg.mxu0
    %5479 = vmatprep.subr.bf16.mxu0 %v5019
    %5480 = vmatpush1.bf16.msra.mxu0 %v5018
    %5481 = vmatprep.subr.bf16.mxu0 %v5015
    %5482 = vmatpush1.bf16.msra.mxu0 %v5014
    %5483 = vmatprep.subr.bf16.mxu0 %v5011
    %5484 = vmatpush1.bf16.msra.mxu0 %v5010
    %5485 = vmatprep.subr.bf16.mxu0 %v5007
    %5486 = vmatpush1.bf16.msra.mxu0 %v5006
    %5487 = vmatprep.subr.bf16.mxu0 %v5003
    %5488 = vmatpush1.bf16.msra.mxu0 %v5002
    %5489 = vmatprep.subr.bf16.mxu0 %v4999
    %5490 = vmatpush1.bf16.msra.mxu0 %v4998
    %5491 = vmatprep.subr.bf16.mxu0 %v4995
    %5492 = vmatpush1.bf16.msra.mxu0 %v4994
    %5493 = vmatprep.subr.bf16.mxu0 %v4991
    %5494 = vmatpush1.bf16.msra.mxu0 %v4990
    %5495 = vmatprep.subr.bf16.mxu0 %v5051
    %5496 = vmatpush2.bf16.msra.mxu0 %v5050
    %5497 = vmatprep.subr.bf16.mxu0 %v5047
    %5498 = vmatpush2.bf16.msra.mxu0 %v5046
    %5499 = vmatprep.subr.bf16.mxu0 %v5043
    %5500 = vmatpush2.bf16.msra.mxu0 %v5042
    %5501 = vmatprep.subr.bf16.mxu0 %v5039
    %5502 = vmatpush2.bf16.msra.mxu0 %v5038
    %5503 = vmatprep.subr.bf16.mxu0 %v5035
    %5504 = vmatpush2.bf16.msra.mxu0 %v5034
    %5505 = vmatprep.subr.bf16.mxu0 %v5031
    %5506 = vmatpush2.bf16.msra.mxu0 %v5030
    %5507 = vmatprep.subr.bf16.mxu0 %v5027
    %5508 = vmatpush2.bf16.msra.mxu0 %v5026
    %5509 = vmatprep.subr.bf16.mxu0 %v5023
    %5510 = vmatpush2.bf16.msra.mxu0 %v5022
    %5511 = vmatprep.mubr.bf16.mxu0 %v3874
    %5512 = vmatmul.mubr.bf16.gmra.mxu0 %v3873
    %v5513 = vpop.f32.mrf.mxu0
    %v5514 = vadd.f32 %v5473, %v5513
    %v5515 = vpop.f32.mrf.mxu0
    %v5516 = vadd.f32 %v5475, %v5515
    %v5517 = vpop.f32.mrf.mxu0
    %v5518 = vpop.f32.mrf.mxu0
    %5519 = vdwg.mxu0
    %5520 = vmatprep.subr.bf16.mxu0 %v5083
    %5521 = vmatpush1.bf16.msra.mxu0 %v5082
    %5522 = vmatprep.subr.bf16.mxu0 %v5079
    %5523 = vmatpush1.bf16.msra.mxu0 %v5078
    %5524 = vmatprep.subr.bf16.mxu0 %v5075
    %5525 = vmatpush1.bf16.msra.mxu0 %v5074
    %5526 = vmatprep.subr.bf16.mxu0 %v5071
    %5527 = vmatpush1.bf16.msra.mxu0 %v5070
    %5528 = vmatprep.subr.bf16.mxu0 %v5067
    %5529 = vmatpush1.bf16.msra.mxu0 %v5066
    %5530 = vmatprep.subr.bf16.mxu0 %v5063
    %5531 = vmatpush1.bf16.msra.mxu0 %v5062
    %5532 = vmatprep.subr.bf16.mxu0 %v5059
    %5533 = vmatpush1.bf16.msra.mxu0 %v5058
    %5534 = vmatprep.subr.bf16.mxu0 %v5055
    %5535 = vmatpush1.bf16.msra.mxu0 %v5054
    %5536 = vmatprep.subr.bf16.mxu0 %v5115
    %5537 = vmatpush2.bf16.msra.mxu0 %v5114
    %5538 = vmatprep.subr.bf16.mxu0 %v5111
    %5539 = vmatpush2.bf16.msra.mxu0 %v5110
    %5540 = vmatprep.subr.bf16.mxu0 %v5107
    %5541 = vmatpush2.bf16.msra.mxu0 %v5106
    %5542 = vmatprep.subr.bf16.mxu0 %v5103
    %5543 = vmatpush2.bf16.msra.mxu0 %v5102
    %5544 = vmatprep.subr.bf16.mxu0 %v5099
    %5545 = vmatpush2.bf16.msra.mxu0 %v5098
    %5546 = vmatprep.subr.bf16.mxu0 %v5095
    %5547 = vmatpush2.bf16.msra.mxu0 %v5094
    %5548 = vmatprep.subr.bf16.mxu0 %v5091
    %5549 = vmatpush2.bf16.msra.mxu0 %v5090
    %5550 = vmatprep.subr.bf16.mxu0 %v5087
    %5551 = vmatpush2.bf16.msra.mxu0 %v5086
    %5552 = vmatprep.mubr.bf16.mxu0 %v3876
    %5553 = vmatmul.mubr.bf16.gmra.mxu0 %v3875
    %v5554 = vpop.f32.mrf.mxu0
    %v5555 = vadd.f32 %v5514, %v5554
    %v5556 = vpop.f32.mrf.mxu0
    %v5557 = vadd.f32 %v5516, %v5556
    %v5558 = vpop.f32.mrf.mxu0
    %v5559 = vpop.f32.mrf.mxu0
    %5560 = vdwg.mxu0
    %5561 = vmatprep.subr.bf16.mxu0 %v5147
    %5562 = vmatpush1.bf16.msra.mxu0 %v5146
    %5563 = vmatprep.subr.bf16.mxu0 %v5143
    %5564 = vmatpush1.bf16.msra.mxu0 %v5142
    %5565 = vmatprep.subr.bf16.mxu0 %v5139
    %5566 = vmatpush1.bf16.msra.mxu0 %v5138
    %5567 = vmatprep.subr.bf16.mxu0 %v5135
    %5568 = vmatpush1.bf16.msra.mxu0 %v5134
    %5569 = vmatprep.subr.bf16.mxu0 %v5131
    %5570 = vmatpush1.bf16.msra.mxu0 %v5130
    %5571 = vmatprep.subr.bf16.mxu0 %v5127
    %5572 = vmatpush1.bf16.msra.mxu0 %v5126
    %5573 = vmatprep.subr.bf16.mxu0 %v5123
    %5574 = vmatpush1.bf16.msra.mxu0 %v5122
    %5575 = vmatprep.subr.bf16.mxu0 %v5119
    %5576 = vmatpush1.bf16.msra.mxu0 %v5118
    %5577 = vmatprep.subr.bf16.mxu0 %v5179
    %5578 = vmatpush2.bf16.msra.mxu0 %v5178
    %5579 = vmatprep.subr.bf16.mxu0 %v5175
    %5580 = vmatpush2.bf16.msra.mxu0 %v5174
    %5581 = vmatprep.subr.bf16.mxu0 %v5171
    %5582 = vmatpush2.bf16.msra.mxu0 %v5170
    %5583 = vmatprep.subr.bf16.mxu0 %v5167
    %5584 = vmatpush2.bf16.msra.mxu0 %v5166
    %5585 = vmatprep.subr.bf16.mxu0 %v5163
    %5586 = vmatpush2.bf16.msra.mxu0 %v5162
    %5587 = vmatprep.subr.bf16.mxu0 %v5159
    %5588 = vmatpush2.bf16.msra.mxu0 %v5158
    %5589 = vmatprep.subr.bf16.mxu0 %v5155
    %5590 = vmatpush2.bf16.msra.mxu0 %v5154
    %5591 = vmatprep.subr.bf16.mxu0 %v5151
    %5592 = vmatpush2.bf16.msra.mxu0 %v5150
    %5593 = vmatprep.mubr.bf16.mxu0 %v3878
    %5594 = vmatmul.mubr.bf16.gmra.mxu0 %v3877
    %v5595 = vpop.f32.mrf.mxu0
    %v5596 = vadd.f32 %v5555, %v5595
    %v5597 = vpop.f32.mrf.mxu0
    %v5598 = vadd.f32 %v5557, %v5597
    %v5599 = vpop.f32.mrf.mxu0
    %v5600 = vpop.f32.mrf.mxu0
    %5601 = vdwg.mxu0
    %5602 = vmatprep.subr.bf16.mxu0 %v4957
    %5603 = vmatpush1.bf16.msra.mxu0 %v4956
    %5604 = vmatprep.subr.bf16.mxu0 %v4953
    %5605 = vmatpush1.bf16.msra.mxu0 %v4952
    %5606 = vmatprep.subr.bf16.mxu0 %v4949
    %5607 = vmatpush1.bf16.msra.mxu0 %v4948
    %5608 = vmatprep.subr.bf16.mxu0 %v4945
    %5609 = vmatpush1.bf16.msra.mxu0 %v4944
    %5610 = vmatprep.subr.bf16.mxu0 %v4941
    %5611 = vmatpush1.bf16.msra.mxu0 %v4940
    %5612 = vmatprep.subr.bf16.mxu0 %v4937
    %5613 = vmatpush1.bf16.msra.mxu0 %v4936
    %5614 = vmatprep.subr.bf16.mxu0 %v4933
    %5615 = vmatpush1.bf16.msra.mxu0 %v4932
    %5616 = vmatprep.subr.bf16.mxu0 %v4929
    %5617 = vmatpush1.bf16.msra.mxu0 %v4928
    %5618 = vmatprep.subr.bf16.mxu0 %v4989
    %5619 = vmatpush2.bf16.msra.mxu0 %v4988
    %5620 = vmatprep.subr.bf16.mxu0 %v4985
    %5621 = vmatpush2.bf16.msra.mxu0 %v4984
    %5622 = vmatprep.subr.bf16.mxu0 %v4981
    %5623 = vmatpush2.bf16.msra.mxu0 %v4980
    %5624 = vmatprep.subr.bf16.mxu0 %v4977
    %5625 = vmatpush2.bf16.msra.mxu0 %v4976
    %5626 = vmatprep.subr.bf16.mxu0 %v4973
    %5627 = vmatpush2.bf16.msra.mxu0 %v4972
    %5628 = vmatprep.subr.bf16.mxu0 %v4969
    %5629 = vmatpush2.bf16.msra.mxu0 %v4968
    %5630 = vmatprep.subr.bf16.mxu0 %v4965
    %5631 = vmatpush2.bf16.msra.mxu0 %v4964
    %5632 = vmatprep.subr.bf16.mxu0 %v4961
    %5633 = vmatpush2.bf16.msra.mxu0 %v4960
    %5634 = vmatprep.mubr.bf16.mxu0 %v3872
    %5635 = vmatmul.mubr.bf16.gmra.mxu0 %v3871
    %v5636 = vpop.f32.mrf.mxu0
    %v5637 = vadd.f32 %v4149, %v5636
    %v5638 = vpop.f32.mrf.mxu0
    %v5639 = vadd.f32 %v4153, %v5638
    %v5640 = vpop.f32.mrf.mxu0
    %v5641 = vpop.f32.mrf.mxu0
    %5642 = vdwg.mxu0
    %5643 = vmatprep.subr.bf16.mxu0 %v5021
    %5644 = vmatpush1.bf16.msra.mxu0 %v5020
    %5645 = vmatprep.subr.bf16.mxu0 %v5017
    %5646 = vmatpush1.bf16.msra.mxu0 %v5016
    %5647 = vmatprep.subr.bf16.mxu0 %v5013
    %5648 = vmatpush1.bf16.msra.mxu0 %v5012
    %5649 = vmatprep.subr.bf16.mxu0 %v5009
    %5650 = vmatpush1.bf16.msra.mxu0 %v5008
    %5651 = vmatprep.subr.bf16.mxu0 %v5005
    %5652 = vmatpush1.bf16.msra.mxu0 %v5004
    %5653 = vmatprep.subr.bf16.mxu0 %v5001
    %5654 = vmatpush1.bf16.msra.mxu0 %v5000
    %5655 = vmatprep.subr.bf16.mxu0 %v4997
    %5656 = vmatpush1.bf16.msra.mxu0 %v4996
    %5657 = vmatprep.subr.bf16.mxu0 %v4993
    %5658 = vmatpush1.bf16.msra.mxu0 %v4992
    %5659 = vmatprep.subr.bf16.mxu0 %v5053
    %5660 = vmatpush2.bf16.msra.mxu0 %v5052
    %5661 = vmatprep.subr.bf16.mxu0 %v5049
    %5662 = vmatpush2.bf16.msra.mxu0 %v5048
    %5663 = vmatprep.subr.bf16.mxu0 %v5045
    %5664 = vmatpush2.bf16.msra.mxu0 %v5044
    %5665 = vmatprep.subr.bf16.mxu0 %v5041
    %5666 = vmatpush2.bf16.msra.mxu0 %v5040
    %5667 = vmatprep.subr.bf16.mxu0 %v5037
    %5668 = vmatpush2.bf16.msra.mxu0 %v5036
    %5669 = vmatprep.subr.bf16.mxu0 %v5033
    %5670 = vmatpush2.bf16.msra.mxu0 %v5032
    %5671 = vmatprep.subr.bf16.mxu0 %v5029
    %5672 = vmatpush2.bf16.msra.mxu0 %v5028
    %5673 = vmatprep.subr.bf16.mxu0 %v5025
    %5674 = vmatpush2.bf16.msra.mxu0 %v5024
    %5675 = vmatprep.mubr.bf16.mxu0 %v3874
    %5676 = vmatmul.mubr.bf16.gmra.mxu0 %v3873
    %v5677 = vpop.f32.mrf.mxu0
    %v5678 = vadd.f32 %v5637, %v5677
    %v5679 = vpop.f32.mrf.mxu0
    %v5680 = vadd.f32 %v5639, %v5679
    %v5681 = vpop.f32.mrf.mxu0
    %v5682 = vpop.f32.mrf.mxu0
    %5683 = vdwg.mxu0
    %5684 = vmatprep.subr.bf16.mxu0 %v5085
    %5685 = vmatpush1.bf16.msra.mxu0 %v5084
    %5686 = vmatprep.subr.bf16.mxu0 %v5081
    %5687 = vmatpush1.bf16.msra.mxu0 %v5080
    %5688 = vmatprep.subr.bf16.mxu0 %v5077
    %5689 = vmatpush1.bf16.msra.mxu0 %v5076
    %5690 = vmatprep.subr.bf16.mxu0 %v5073
    %5691 = vmatpush1.bf16.msra.mxu0 %v5072
    %5692 = vmatprep.subr.bf16.mxu0 %v5069
    %5693 = vmatpush1.bf16.msra.mxu0 %v5068
    %5694 = vmatprep.subr.bf16.mxu0 %v5065
    %5695 = vmatpush1.bf16.msra.mxu0 %v5064
    %5696 = vmatprep.subr.bf16.mxu0 %v5061
    %5697 = vmatpush1.bf16.msra.mxu0 %v5060
    %5698 = vmatprep.subr.bf16.mxu0 %v5057
    %5699 = vmatpush1.bf16.msra.mxu0 %v5056
    %5700 = vmatprep.subr.bf16.mxu0 %v5117
    %5701 = vmatpush2.bf16.msra.mxu0 %v5116
    %5702 = vmatprep.subr.bf16.mxu0 %v5113
    %5703 = vmatpush2.bf16.msra.mxu0 %v5112
    %5704 = vmatprep.subr.bf16.mxu0 %v5109
    %5705 = vmatpush2.bf16.msra.mxu0 %v5108
    %5706 = vmatprep.subr.bf16.mxu0 %v5105
    %5707 = vmatpush2.bf16.msra.mxu0 %v5104
    %5708 = vmatprep.subr.bf16.mxu0 %v5101
    %5709 = vmatpush2.bf16.msra.mxu0 %v5100
    %5710 = vmatprep.subr.bf16.mxu0 %v5097
    %5711 = vmatpush2.bf16.msra.mxu0 %v5096
    %5712 = vmatprep.subr.bf16.mxu0 %v5093
    %5713 = vmatpush2.bf16.msra.mxu0 %v5092
    %5714 = vmatprep.subr.bf16.mxu0 %v5089
    %5715 = vmatpush2.bf16.msra.mxu0 %v5088
    %5716 = vmatprep.mubr.bf16.mxu0 %v3876
    %5717 = vmatmul.mubr.bf16.gmra.mxu0 %v3875
    %v5718 = vpop.f32.mrf.mxu0
    %v5719 = vadd.f32 %v5678, %v5718
    %v5720 = vpop.f32.mrf.mxu0
    %v5721 = vadd.f32 %v5680, %v5720
    %v5722 = vpop.f32.mrf.mxu0
    %v5723 = vpop.f32.mrf.mxu0
    %5724 = vdwg.mxu0
    %5725 = vmatprep.subr.bf16.mxu0 %v5149
    %5726 = vmatpush1.bf16.msra.mxu0 %v5148
    %5727 = vmatprep.subr.bf16.mxu0 %v5145
    %5728 = vmatpush1.bf16.msra.mxu0 %v5144
    %5729 = vmatprep.subr.bf16.mxu0 %v5141
    %5730 = vmatpush1.bf16.msra.mxu0 %v5140
    %5731 = vmatprep.subr.bf16.mxu0 %v5137
    %5732 = vmatpush1.bf16.msra.mxu0 %v5136
    %5733 = vmatprep.subr.bf16.mxu0 %v5133
    %5734 = vmatpush1.bf16.msra.mxu0 %v5132
    %5735 = vmatprep.subr.bf16.mxu0 %v5129
    %5736 = vmatpush1.bf16.msra.mxu0 %v5128
    %5737 = vmatprep.subr.bf16.mxu0 %v5125
    %5738 = vmatpush1.bf16.msra.mxu0 %v5124
    %5739 = vmatprep.subr.bf16.mxu0 %v5121
    %5740 = vmatpush1.bf16.msra.mxu0 %v5120
    %5741 = vmatprep.subr.bf16.mxu0 %v5181
    %5742 = vmatpush2.bf16.msra.mxu0 %v5180
    %5743 = vmatprep.subr.bf16.mxu0 %v5177
    %5744 = vmatpush2.bf16.msra.mxu0 %v5176
    %5745 = vmatprep.subr.bf16.mxu0 %v5173
    %5746 = vmatpush2.bf16.msra.mxu0 %v5172
    %5747 = vmatprep.subr.bf16.mxu0 %v5169
    %5748 = vmatpush2.bf16.msra.mxu0 %v5168
    %5749 = vmatprep.subr.bf16.mxu0 %v5165
    %5750 = vmatpush2.bf16.msra.mxu0 %v5164
    %5751 = vmatprep.subr.bf16.mxu0 %v5161
    %5752 = vmatpush2.bf16.msra.mxu0 %v5160
    %5753 = vmatprep.subr.bf16.mxu0 %v5157
    %5754 = vmatpush2.bf16.msra.mxu0 %v5156
    %5755 = vmatprep.subr.bf16.mxu0 %v5153
    %5756 = vmatpush2.bf16.msra.mxu0 %v5152
    %5757 = vmatprep.mubr.bf16.mxu0 %v3878
    %5758 = vmatmul.mubr.bf16.gmra.mxu0 %v3877
    %v5759 = vpop.f32.mrf.mxu0
    %v5760 = vadd.f32 %v5719, %v5759
    %v5761 = vpop.f32.mrf.mxu0
    %v5762 = vadd.f32 %v5721, %v5761
    %v5763 = vpop.f32.mrf.mxu0
    %v5764 = vpop.f32.mrf.mxu0
    %5765 = vdwg.mxu0
    %vm5766 = vcmp.gt.f32.partialorder %v5596, 0.0
    %vm5767 = vcmp.gt.f32.partialorder %v5598, 0.0
    %vm5768 = vcmp.gt.f32.partialorder %v5760, 0.0
    %vm5769 = vcmp.gt.f32.partialorder %v5762, 0.0
    %v5770 = vmul.f32 %v5596, 0.2
    %v5771 = vmul.f32 %v5598, 0.2
    %v5772 = vmul.f32 %v5760, 0.2
    %v5773 = vmul.f32 %v5762, 0.2
    %v5774 = vsel %vm5766, %v5596, %v5770
    %v5775 = vsel %vm5767, %v5598, %v5771
    %v5776 = vsel %vm5768, %v5760, %v5772
    %v5777 = vsel %vm5769, %v5762, %v5773
    %v5778 = vpack.c.bf16 %v5774, %v5774
    %v5779 = vpack.c.bf16 %v5775, %v5775
    %v5780 = vpack.c.bf16 %v5776, %v5776
    %v5781 = vpack.c.bf16 %v5777, %v5777
    %v5782 = vld [vmem:[%s1 + $0x30] sm:$0xff]
    %v5783 = vld [vmem:[%s1 + $0x70] sm:$0xff]
    %v5784 = vld [vmem:[%s1 + $0xb0] sm:$0xff]
    %v5785 = vld [vmem:[%s1 + $0xf0] sm:$0xff]
    %v5786 = vld [vmem:[%s1 + $0x130] sm:$0xff]
    %v5787 = vld [vmem:[%s1 + $0x170] sm:$0xff]
    %v5788 = vld [vmem:[%s1 + $0x1b0] sm:$0xff]
    %v5789 = vld [vmem:[%s1 + $0x1f0] sm:$0xff]
    %v5790 = vld [vmem:[%s1 + $0x230] sm:$0xff]
    %v5791 = vld [vmem:[%s1 + $0x270] sm:$0xff]
    %v5792 = vld [vmem:[%s1 + $0x2b0] sm:$0xff]
    %v5793 = vld [vmem:[%s1 + $0x2f0] sm:$0xff]
    %v5794 = vld [vmem:[%s1 + $0x330] sm:$0xff]
    %v5795 = vld [vmem:[%s1 + $0x370] sm:$0xff]
    %v5796 = vld [vmem:[%s1 + $0x3b0] sm:$0xff]
    %v5797 = vld [vmem:[%s1 + $0x3f0] sm:$0xff]
    %v5798 = vld [vmem:[%s1 + $0x430] sm:$0xff]
    %v5799 = vld [vmem:[%s1 + $0x470] sm:$0xff]
    %v5800 = vld [vmem:[%s1 + $0x4b0] sm:$0xff]
    %v5801 = vld [vmem:[%s1 + $0x4f0] sm:$0xff]
    %v5802 = vld [vmem:[%s1 + $0x530] sm:$0xff]
    %v5803 = vld [vmem:[%s1 + $0x570] sm:$0xff]
    %v5804 = vld [vmem:[%s1 + $0x5b0] sm:$0xff]
    %v5805 = vld [vmem:[%s1 + $0x5f0] sm:$0xff]
    %v5806 = vld [vmem:[%s1 + $0x630] sm:$0xff]
    %v5807 = vld [vmem:[%s1 + $0x670] sm:$0xff]
    %v5808 = vld [vmem:[%s1 + $0x6b0] sm:$0xff]
    %v5809 = vld [vmem:[%s1 + $0x6f0] sm:$0xff]
    %v5810 = vld [vmem:[%s1 + $0x730] sm:$0xff]
    %v5811 = vld [vmem:[%s1 + $0x770] sm:$0xff]
    %v5812 = vld [vmem:[%s1 + $0x7b0] sm:$0xff]
    %v5813 = vld [vmem:[%s1 + $0x7f0] sm:$0xff]
    %v5814 = vld [vmem:[%s1 + $0x830] sm:$0xff]
    %v5815 = vld [vmem:[%s1 + $0x870] sm:$0xff]
    %v5816 = vld [vmem:[%s1 + $0x8b0] sm:$0xff]
    %v5817 = vld [vmem:[%s1 + $0x8f0] sm:$0xff]
    %v5818 = vld [vmem:[%s1 + $0x930] sm:$0xff]
    %v5819 = vld [vmem:[%s1 + $0x970] sm:$0xff]
    %v5820 = vld [vmem:[%s1 + $0x9b0] sm:$0xff]
    %v5821 = vld [vmem:[%s1 + $0x9f0] sm:$0xff]
    %v5822 = vld [vmem:[%s1 + $0xa30] sm:$0xff]
    %v5823 = vld [vmem:[%s1 + $0xa70] sm:$0xff]
    %v5824 = vld [vmem:[%s1 + $0xab0] sm:$0xff]
    %v5825 = vld [vmem:[%s1 + $0xaf0] sm:$0xff]
    %v5826 = vld [vmem:[%s1 + $0xb30] sm:$0xff]
    %v5827 = vld [vmem:[%s1 + $0xb70] sm:$0xff]
    %v5828 = vld [vmem:[%s1 + $0xbb0] sm:$0xff]
    %v5829 = vld [vmem:[%s1 + $0xbf0] sm:$0xff]
    %v5830 = vld [vmem:[%s1 + $0xc30] sm:$0xff]
    %v5831 = vld [vmem:[%s1 + $0xc70] sm:$0xff]
    %v5832 = vld [vmem:[%s1 + $0xcb0] sm:$0xff]
    %v5833 = vld [vmem:[%s1 + $0xcf0] sm:$0xff]
    %v5834 = vld [vmem:[%s1 + $0xd30] sm:$0xff]
    %v5835 = vld [vmem:[%s1 + $0xd70] sm:$0xff]
    %v5836 = vld [vmem:[%s1 + $0xdb0] sm:$0xff]
    %v5837 = vld [vmem:[%s1 + $0xdf0] sm:$0xff]
    %v5838 = vld [vmem:[%s1 + $0xe30] sm:$0xff]
    %v5839 = vld [vmem:[%s1 + $0xe70] sm:$0xff]
    %v5840 = vld [vmem:[%s1 + $0xeb0] sm:$0xff]
    %v5841 = vld [vmem:[%s1 + $0xef0] sm:$0xff]
    %v5842 = vld [vmem:[%s1 + $0xf30] sm:$0xff]
    %v5843 = vld [vmem:[%s1 + $0xf70] sm:$0xff]
    %v5844 = vld [vmem:[%s1 + $0xfb0] sm:$0xff]
    %v5845 = vld [vmem:[%s1 + $0xff0] sm:$0xff]
    %s5846 = scalar_lea.vmem %s2, 2
    %v5847 = vld [vmem:[%s5846] ss:$8 sm:$0x3]
    %v5849 = vlaneseq
    %v5850 = vshrl.u32 %v5849, 7
    %v5851 = vsub.s32 0, %v5850
    %v5852 = vrot.slane %v5847, %v5851
    %v5853 = vlaneseq
    %v5854 = vshrl.u32 %v5853, 7
    %v5855 = vsub.s32 1, %v5854
    %v5856 = vrot.slane %v5847, %v5855
    %v5923 = vunpack.c.l.b16 %v5782
    %v5924 = vunpack.c.h.b16 %v5782
    %v5925 = vunpack.c.l.b16 %v5783
    %v5926 = vunpack.c.h.b16 %v5783
    %v5927 = vunpack.c.l.b16 %v5784
    %v5928 = vunpack.c.h.b16 %v5784
    %v5929 = vunpack.c.l.b16 %v5785
    %v5930 = vunpack.c.h.b16 %v5785
    %v5931 = vunpack.c.l.b16 %v5786
    %v5932 = vunpack.c.h.b16 %v5786
    %v5933 = vunpack.c.l.b16 %v5787
    %v5934 = vunpack.c.h.b16 %v5787
    %v5935 = vunpack.c.l.b16 %v5788
    %v5936 = vunpack.c.h.b16 %v5788
    %v5937 = vunpack.c.l.b16 %v5789
    %v5938 = vunpack.c.h.b16 %v5789
    %v5939 = vunpack.c.l.b16 %v5790
    %v5940 = vunpack.c.h.b16 %v5790
    %v5941 = vunpack.c.l.b16 %v5791
    %v5942 = vunpack.c.h.b16 %v5791
    %v5943 = vunpack.c.l.b16 %v5792
    %v5944 = vunpack.c.h.b16 %v5792
    %v5945 = vunpack.c.l.b16 %v5793
    %v5946 = vunpack.c.h.b16 %v5793
    %v5947 = vunpack.c.l.b16 %v5794
    %v5948 = vunpack.c.h.b16 %v5794
    %v5949 = vunpack.c.l.b16 %v5795
    %v5950 = vunpack.c.h.b16 %v5795
    %v5951 = vunpack.c.l.b16 %v5796
    %v5952 = vunpack.c.h.b16 %v5796
    %v5953 = vunpack.c.l.b16 %v5797
    %v5954 = vunpack.c.h.b16 %v5797
    %v5955 = vunpack.c.l.b16 %v5798
    %v5956 = vunpack.c.h.b16 %v5798
    %v5957 = vunpack.c.l.b16 %v5799
    %v5958 = vunpack.c.h.b16 %v5799
    %v5959 = vunpack.c.l.b16 %v5800
    %v5960 = vunpack.c.h.b16 %v5800
    %v5961 = vunpack.c.l.b16 %v5801
    %v5962 = vunpack.c.h.b16 %v5801
    %v5963 = vunpack.c.l.b16 %v5802
    %v5964 = vunpack.c.h.b16 %v5802
    %v5965 = vunpack.c.l.b16 %v5803
    %v5966 = vunpack.c.h.b16 %v5803
    %v5967 = vunpack.c.l.b16 %v5804
    %v5968 = vunpack.c.h.b16 %v5804
    %v5969 = vunpack.c.l.b16 %v5805
    %v5970 = vunpack.c.h.b16 %v5805
    %v5971 = vunpack.c.l.b16 %v5806
    %v5972 = vunpack.c.h.b16 %v5806
    %v5973 = vunpack.c.l.b16 %v5807
    %v5974 = vunpack.c.h.b16 %v5807
    %v5975 = vunpack.c.l.b16 %v5808
    %v5976 = vunpack.c.h.b16 %v5808
    %v5977 = vunpack.c.l.b16 %v5809
    %v5978 = vunpack.c.h.b16 %v5809
    %v5979 = vunpack.c.l.b16 %v5810
    %v5980 = vunpack.c.h.b16 %v5810
    %v5981 = vunpack.c.l.b16 %v5811
    %v5982 = vunpack.c.h.b16 %v5811
    %v5983 = vunpack.c.l.b16 %v5812
    %v5984 = vunpack.c.h.b16 %v5812
    %v5985 = vunpack.c.l.b16 %v5813
    %v5986 = vunpack.c.h.b16 %v5813
    %v5987 = vunpack.c.l.b16 %v5814
    %v5988 = vunpack.c.h.b16 %v5814
    %v5989 = vunpack.c.l.b16 %v5815
    %v5990 = vunpack.c.h.b16 %v5815
    %v5991 = vunpack.c.l.b16 %v5816
    %v5992 = vunpack.c.h.b16 %v5816
    %v5993 = vunpack.c.l.b16 %v5817
    %v5994 = vunpack.c.h.b16 %v5817
    %v5995 = vunpack.c.l.b16 %v5818
    %v5996 = vunpack.c.h.b16 %v5818
    %v5997 = vunpack.c.l.b16 %v5819
    %v5998 = vunpack.c.h.b16 %v5819
    %v5999 = vunpack.c.l.b16 %v5820
    %v6000 = vunpack.c.h.b16 %v5820
    %v6001 = vunpack.c.l.b16 %v5821
    %v6002 = vunpack.c.h.b16 %v5821
    %v6003 = vunpack.c.l.b16 %v5822
    %v6004 = vunpack.c.h.b16 %v5822
    %v6005 = vunpack.c.l.b16 %v5823
    %v6006 = vunpack.c.h.b16 %v5823
    %v6007 = vunpack.c.l.b16 %v5824
    %v6008 = vunpack.c.h.b16 %v5824
    %v6009 = vunpack.c.l.b16 %v5825
    %v6010 = vunpack.c.h.b16 %v5825
    %v6011 = vunpack.c.l.b16 %v5826
    %v6012 = vunpack.c.h.b16 %v5826
    %v6013 = vunpack.c.l.b16 %v5827
    %v6014 = vunpack.c.h.b16 %v5827
    %v6015 = vunpack.c.l.b16 %v5828
    %v6016 = vunpack.c.h.b16 %v5828
    %v6017 = vunpack.c.l.b16 %v5829
    %v6018 = vunpack.c.h.b16 %v5829
    %v6019 = vunpack.c.l.b16 %v5830
    %v6020 = vunpack.c.h.b16 %v5830
    %v6021 = vunpack.c.l.b16 %v5831
    %v6022 = vunpack.c.h.b16 %v5831
    %v6023 = vunpack.c.l.b16 %v5832
    %v6024 = vunpack.c.h.b16 %v5832
    %v6025 = vunpack.c.l.b16 %v5833
    %v6026 = vunpack.c.h.b16 %v5833
    %v6027 = vunpack.c.l.b16 %v5834
    %v6028 = vunpack.c.h.b16 %v5834
    %v6029 = vunpack.c.l.b16 %v5835
    %v6030 = vunpack.c.h.b16 %v5835
    %v6031 = vunpack.c.l.b16 %v5836
    %v6032 = vunpack.c.h.b16 %v5836
    %v6033 = vunpack.c.l.b16 %v5837
    %v6034 = vunpack.c.h.b16 %v5837
    %v6035 = vunpack.c.l.b16 %v5838
    %v6036 = vunpack.c.h.b16 %v5838
    %v6037 = vunpack.c.l.b16 %v5839
    %v6038 = vunpack.c.h.b16 %v5839
    %v6039 = vunpack.c.l.b16 %v5840
    %v6040 = vunpack.c.h.b16 %v5840
    %v6041 = vunpack.c.l.b16 %v5841
    %v6042 = vunpack.c.h.b16 %v5841
    %v6043 = vunpack.c.l.b16 %v5842
    %v6044 = vunpack.c.h.b16 %v5842
    %v6045 = vunpack.c.l.b16 %v5843
    %v6046 = vunpack.c.h.b16 %v5843
    %v6047 = vunpack.c.l.b16 %v5844
    %v6048 = vunpack.c.h.b16 %v5844
    %v6049 = vunpack.c.l.b16 %v5845
    %v6050 = vunpack.c.h.b16 %v5845
    %v6051 = vpack.c.b16 %v5925, %v5923
    %v6052 = vpack.c.b16 %v5926, %v5924
    %v6053 = vpack.c.b16 %v5929, %v5927
    %v6054 = vpack.c.b16 %v5930, %v5928
    %v6055 = vpack.c.b16 %v5933, %v5931
    %v6056 = vpack.c.b16 %v5934, %v5932
    %v6057 = vpack.c.b16 %v5937, %v5935
    %v6058 = vpack.c.b16 %v5938, %v5936
    %v6059 = vpack.c.b16 %v5941, %v5939
    %v6060 = vpack.c.b16 %v5942, %v5940
    %v6061 = vpack.c.b16 %v5945, %v5943
    %v6062 = vpack.c.b16 %v5946, %v5944
    %v6063 = vpack.c.b16 %v5949, %v5947
    %v6064 = vpack.c.b16 %v5950, %v5948
    %v6065 = vpack.c.b16 %v5953, %v5951
    %v6066 = vpack.c.b16 %v5954, %v5952
    %v6067 = vpack.c.b16 %v5957, %v5955
    %v6068 = vpack.c.b16 %v5958, %v5956
    %v6069 = vpack.c.b16 %v5961, %v5959
    %v6070 = vpack.c.b16 %v5962, %v5960
    %v6071 = vpack.c.b16 %v5965, %v5963
    %v6072 = vpack.c.b16 %v5966, %v5964
    %v6073 = vpack.c.b16 %v5969, %v5967
    %v6074 = vpack.c.b16 %v5970, %v5968
    %v6075 = vpack.c.b16 %v5973, %v5971
    %v6076 = vpack.c.b16 %v5974, %v5972
    %v6077 = vpack.c.b16 %v5977, %v5975
    %v6078 = vpack.c.b16 %v5978, %v5976
    %v6079 = vpack.c.b16 %v5981, %v5979
    %v6080 = vpack.c.b16 %v5982, %v5980
    %v6081 = vpack.c.b16 %v5985, %v5983
    %v6082 = vpack.c.b16 %v5986, %v5984
    %v6083 = vpack.c.b16 %v5989, %v5987
    %v6084 = vpack.c.b16 %v5990, %v5988
    %v6085 = vpack.c.b16 %v5993, %v5991
    %v6086 = vpack.c.b16 %v5994, %v5992
    %v6087 = vpack.c.b16 %v5997, %v5995
    %v6088 = vpack.c.b16 %v5998, %v5996
    %v6089 = vpack.c.b16 %v6001, %v5999
    %v6090 = vpack.c.b16 %v6002, %v6000
    %v6091 = vpack.c.b16 %v6005, %v6003
    %v6092 = vpack.c.b16 %v6006, %v6004
    %v6093 = vpack.c.b16 %v6009, %v6007
    %v6094 = vpack.c.b16 %v6010, %v6008
    %v6095 = vpack.c.b16 %v6013, %v6011
    %v6096 = vpack.c.b16 %v6014, %v6012
    %v6097 = vpack.c.b16 %v6017, %v6015
    %v6098 = vpack.c.b16 %v6018, %v6016
    %v6099 = vpack.c.b16 %v6021, %v6019
    %v6100 = vpack.c.b16 %v6022, %v6020
    %v6101 = vpack.c.b16 %v6025, %v6023
    %v6102 = vpack.c.b16 %v6026, %v6024
    %v6103 = vpack.c.b16 %v6029, %v6027
    %v6104 = vpack.c.b16 %v6030, %v6028
    %v6105 = vpack.c.b16 %v6033, %v6031
    %v6106 = vpack.c.b16 %v6034, %v6032
    %v6107 = vpack.c.b16 %v6037, %v6035
    %v6108 = vpack.c.b16 %v6038, %v6036
    %v6109 = vpack.c.b16 %v6041, %v6039
    %v6110 = vpack.c.b16 %v6042, %v6040
    %v6111 = vpack.c.b16 %v6045, %v6043
    %v6112 = vpack.c.b16 %v6046, %v6044
    %v6113 = vpack.c.b16 %v6049, %v6047
    %v6114 = vpack.c.b16 %v6050, %v6048
    %6179 = vmatprep.subr.bf16.mxu0 %v6066
    %6180 = vmatpush1.bf16.msra.mxu0 %v6065
    %6181 = vmatprep.subr.bf16.mxu0 %v6064
    %6182 = vmatpush1.bf16.msra.mxu0 %v6063
    %6183 = vmatprep.subr.bf16.mxu0 %v6062
    %6184 = vmatpush1.bf16.msra.mxu0 %v6061
    %6185 = vmatprep.subr.bf16.mxu0 %v6060
    %6186 = vmatpush1.bf16.msra.mxu0 %v6059
    %6187 = vmatprep.subr.bf16.mxu0 %v6058
    %6188 = vmatpush1.bf16.msra.mxu0 %v6057
    %6189 = vmatprep.subr.bf16.mxu0 %v6056
    %6190 = vmatpush1.bf16.msra.mxu0 %v6055
    %6191 = vmatprep.subr.bf16.mxu0 %v6054
    %6192 = vmatpush1.bf16.msra.mxu0 %v6053
    %6193 = vmatprep.subr.bf16.mxu0 %v6052
    %6194 = vmatpush1.bf16.msra.mxu0 %v6051
    %6195 = vmatprep.subr.bf16.mxu0 %v6082
    %6196 = vmatpush2.bf16.msra.mxu0 %v6081
    %6197 = vmatprep.subr.bf16.mxu0 %v6080
    %6198 = vmatpush2.bf16.msra.mxu0 %v6079
    %6199 = vmatprep.subr.bf16.mxu0 %v6078
    %6200 = vmatpush2.bf16.msra.mxu0 %v6077
    %6201 = vmatprep.subr.bf16.mxu0 %v6076
    %6202 = vmatpush2.bf16.msra.mxu0 %v6075
    %6203 = vmatprep.subr.bf16.mxu0 %v6074
    %6204 = vmatpush2.bf16.msra.mxu0 %v6073
    %6205 = vmatprep.subr.bf16.mxu0 %v6072
    %6206 = vmatpush2.bf16.msra.mxu0 %v6071
    %6207 = vmatprep.subr.bf16.mxu0 %v6070
    %6208 = vmatpush2.bf16.msra.mxu0 %v6069
    %6209 = vmatprep.subr.bf16.mxu0 %v6068
    %6210 = vmatpush2.bf16.msra.mxu0 %v6067
    %6211 = vmatprep.mubr.bf16.mxu0 %v5779
    %6212 = vmatmul.mubr.bf16.gmra.mxu0 %v5778
    %v6213 = vpop.f32.mrf.mxu0
    %v6214 = vadd.f32 %v5852, %v6213
    %v6215 = vpop.f32.mrf.mxu0
    %v6216 = vadd.f32 %v5856, %v6215
    %v6217 = vpop.f32.mrf.mxu0
    %v6218 = vpop.f32.mrf.mxu0
    %6219 = vdwg.mxu0
    %6220 = vmatprep.subr.bf16.mxu0 %v6098
    %6221 = vmatpush1.bf16.msra.mxu0 %v6097
    %6222 = vmatprep.subr.bf16.mxu0 %v6096
    %6223 = vmatpush1.bf16.msra.mxu0 %v6095
    %6224 = vmatprep.subr.bf16.mxu0 %v6094
    %6225 = vmatpush1.bf16.msra.mxu0 %v6093
    %6226 = vmatprep.subr.bf16.mxu0 %v6092
    %6227 = vmatpush1.bf16.msra.mxu0 %v6091
    %6228 = vmatprep.subr.bf16.mxu0 %v6090
    %6229 = vmatpush1.bf16.msra.mxu0 %v6089
    %6230 = vmatprep.subr.bf16.mxu0 %v6088
    %6231 = vmatpush1.bf16.msra.mxu0 %v6087
    %6232 = vmatprep.subr.bf16.mxu0 %v6086
    %6233 = vmatpush1.bf16.msra.mxu0 %v6085
    %6234 = vmatprep.subr.bf16.mxu0 %v6084
    %6235 = vmatpush1.bf16.msra.mxu0 %v6083
    %6236 = vmatprep.subr.bf16.mxu0 %v6114
    %6237 = vmatpush2.bf16.msra.mxu0 %v6113
    %6238 = vmatprep.subr.bf16.mxu0 %v6112
    %6239 = vmatpush2.bf16.msra.mxu0 %v6111
    %6240 = vmatprep.subr.bf16.mxu0 %v6110
    %6241 = vmatpush2.bf16.msra.mxu0 %v6109
    %6242 = vmatprep.subr.bf16.mxu0 %v6108
    %6243 = vmatpush2.bf16.msra.mxu0 %v6107
    %6244 = vmatprep.subr.bf16.mxu0 %v6106
    %6245 = vmatpush2.bf16.msra.mxu0 %v6105
    %6246 = vmatprep.subr.bf16.mxu0 %v6104
    %6247 = vmatpush2.bf16.msra.mxu0 %v6103
    %6248 = vmatprep.subr.bf16.mxu0 %v6102
    %6249 = vmatpush2.bf16.msra.mxu0 %v6101
    %6250 = vmatprep.subr.bf16.mxu0 %v6100
    %6251 = vmatpush2.bf16.msra.mxu0 %v6099
    %6252 = vmatprep.mubr.bf16.mxu0 %v5781
    %6253 = vmatmul.mubr.bf16.gmra.mxu0 %v5780
    %v6254 = vpop.f32.mrf.mxu0
    %v6255 = vadd.f32 %v6214, %v6254
    %v6256 = vpop.f32.mrf.mxu0
    %v6257 = vadd.f32 %v6216, %v6256
    %v6258 = vpop.f32.mrf.mxu0
    %v6259 = vpop.f32.mrf.mxu0
    %6260 = vdwg.mxu0
    %vm6261 = vcmp.gt.f32.partialorder %v6255, 0.0
    %vm6262 = vcmp.gt.f32.partialorder %v6257, 0.0
    %v6263 = vmul.f32 %v6255, 0.2
    %v6264 = vmul.f32 %v6257, 0.2
    %v6265 = vsel %vm6261, %v6255, %v6263
    %v6266 = vsel %vm6262, %v6257, %v6264
    %v6267 = vpack.c.bf16 %v6265, %v6265
    %v6268 = vpack.c.bf16 %v6266, %v6266
    %v6269 = vld [vmem:[%s1 + $0x38] sm:$0xf]
    %v6270 = vld [vmem:[%s1 + $0x78] sm:$0xf]
    %v6271 = vld [vmem:[%s1 + $0xb8] sm:$0xf]
    %v6272 = vld [vmem:[%s1 + $0xf8] sm:$0xf]
    %v6273 = vld [vmem:[%s1 + $0x138] sm:$0xf]
    %v6274 = vld [vmem:[%s1 + $0x178] sm:$0xf]
    %v6275 = vld [vmem:[%s1 + $0x1b8] sm:$0xf]
    %v6276 = vld [vmem:[%s1 + $0x1f8] sm:$0xf]
    %v6277 = vld [vmem:[%s1 + $0x238] sm:$0xf]
    %v6278 = vld [vmem:[%s1 + $0x278] sm:$0xf]
    %v6279 = vld [vmem:[%s1 + $0x2b8] sm:$0xf]
    %v6280 = vld [vmem:[%s1 + $0x2f8] sm:$0xf]
    %v6281 = vld [vmem:[%s1 + $0x338] sm:$0xf]
    %v6282 = vld [vmem:[%s1 + $0x378] sm:$0xf]
    %v6283 = vld [vmem:[%s1 + $0x3b8] sm:$0xf]
    %v6284 = vld [vmem:[%s1 + $0x3f8] sm:$0xf]
    %v6285 = vld [vmem:[%s1 + $0x438] sm:$0xf]
    %v6286 = vld [vmem:[%s1 + $0x478] sm:$0xf]
    %v6287 = vld [vmem:[%s1 + $0x4b8] sm:$0xf]
    %v6288 = vld [vmem:[%s1 + $0x4f8] sm:$0xf]
    %v6289 = vld [vmem:[%s1 + $0x538] sm:$0xf]
    %v6290 = vld [vmem:[%s1 + $0x578] sm:$0xf]
    %v6291 = vld [vmem:[%s1 + $0x5b8] sm:$0xf]
    %v6292 = vld [vmem:[%s1 + $0x5f8] sm:$0xf]
    %v6293 = vld [vmem:[%s1 + $0x638] sm:$0xf]
    %v6294 = vld [vmem:[%s1 + $0x678] sm:$0xf]
    %v6295 = vld [vmem:[%s1 + $0x6b8] sm:$0xf]
    %v6296 = vld [vmem:[%s1 + $0x6f8] sm:$0xf]
    %v6297 = vld [vmem:[%s1 + $0x738] sm:$0xf]
    %v6298 = vld [vmem:[%s1 + $0x778] sm:$0xf]
    %v6299 = vld [vmem:[%s1 + $0x7b8] sm:$0xf]
    %v6300 = vld [vmem:[%s1 + $0x7f8] sm:$0xf]
    %v6301 = vld [vmem:[%s2 + $0x3] ss:$0 sm:$0xff]
    %v6334 = vunpack.c.l.b16 %v6269
    %v6335 = vunpack.c.l.b16 %v6270
    %v6336 = vunpack.c.l.b16 %v6271
    %v6337 = vunpack.c.l.b16 %v6272
    %v6338 = vunpack.c.l.b16 %v6273
    %v6339 = vunpack.c.l.b16 %v6274
    %v6340 = vunpack.c.l.b16 %v6275
    %v6341 = vunpack.c.l.b16 %v6276
    %v6342 = vunpack.c.l.b16 %v6277
    %v6343 = vunpack.c.l.b16 %v6278
    %v6344 = vunpack.c.l.b16 %v6279
    %v6345 = vunpack.c.l.b16 %v6280
    %v6346 = vunpack.c.l.b16 %v6281
    %v6347 = vunpack.c.l.b16 %v6282
    %v6348 = vunpack.c.l.b16 %v6283
    %v6349 = vunpack.c.l.b16 %v6284
    %v6350 = vunpack.c.l.b16 %v6285
    %v6351 = vunpack.c.l.b16 %v6286
    %v6352 = vunpack.c.l.b16 %v6287
    %v6353 = vunpack.c.l.b16 %v6288
    %v6354 = vunpack.c.l.b16 %v6289
    %v6355 = vunpack.c.l.b16 %v6290
    %v6356 = vunpack.c.l.b16 %v6291
    %v6357 = vunpack.c.l.b16 %v6292
    %v6358 = vunpack.c.l.b16 %v6293
    %v6359 = vunpack.c.l.b16 %v6294
    %v6360 = vunpack.c.l.b16 %v6295
    %v6361 = vunpack.c.l.b16 %v6296
    %v6362 = vunpack.c.l.b16 %v6297
    %v6363 = vunpack.c.l.b16 %v6298
    %v6364 = vunpack.c.l.b16 %v6299
    %v6365 = vunpack.c.l.b16 %v6300
    %v6366 = vpack.c.b16 %v6335, %v6334
    %v6367 = vpack.c.b16 %v6337, %v6336
    %v6368 = vpack.c.b16 %v6339, %v6338
    %v6369 = vpack.c.b16 %v6341, %v6340
    %v6370 = vpack.c.b16 %v6343, %v6342
    %v6371 = vpack.c.b16 %v6345, %v6344
    %v6372 = vpack.c.b16 %v6347, %v6346
    %v6373 = vpack.c.b16 %v6349, %v6348
    %v6374 = vpack.c.b16 %v6351, %v6350
    %v6375 = vpack.c.b16 %v6353, %v6352
    %v6376 = vpack.c.b16 %v6355, %v6354
    %v6377 = vpack.c.b16 %v6357, %v6356
    %v6378 = vpack.c.b16 %v6359, %v6358
    %v6379 = vpack.c.b16 %v6361, %v6360
    %v6380 = vpack.c.b16 %v6363, %v6362
    %v6381 = vpack.c.b16 %v6365, %v6364
    %6398 = vmatprep.subr.bf16.mxu0 0
    %6399 = vmatpush1.bf16.msra.mxu0 %v6373
    %6400 = vmatprep.subr.bf16.mxu0 0
    %6401 = vmatpush1.bf16.msra.mxu0 %v6372
    %6402 = vmatprep.subr.bf16.mxu0 0
    %6403 = vmatpush1.bf16.msra.mxu0 %v6371
    %6404 = vmatprep.subr.bf16.mxu0 0
    %6405 = vmatpush1.bf16.msra.mxu0 %v6370
    %6406 = vmatprep.subr.bf16.mxu0 0
    %6407 = vmatpush1.bf16.msra.mxu0 %v6369
    %6408 = vmatprep.subr.bf16.mxu0 0
    %6409 = vmatpush1.bf16.msra.mxu0 %v6368
    %6410 = vmatprep.subr.bf16.mxu0 0
    %6411 = vmatpush1.bf16.msra.mxu0 %v6367
    %6412 = vmatprep.subr.bf16.mxu0 0
    %6413 = vmatpush1.bf16.msra.mxu0 %v6366
    %6414 = vmatprep.subr.bf16.mxu0 0
    %6415 = vmatpush2.bf16.msra.mxu0 %v6381
    %6416 = vmatprep.subr.bf16.mxu0 0
    %6417 = vmatpush2.bf16.msra.mxu0 %v6380
    %6418 = vmatprep.subr.bf16.mxu0 0
    %6419 = vmatpush2.bf16.msra.mxu0 %v6379
    %6420 = vmatprep.subr.bf16.mxu0 0
    %6421 = vmatpush2.bf16.msra.mxu0 %v6378
    %6422 = vmatprep.subr.bf16.mxu0 0
    %6423 = vmatpush2.bf16.msra.mxu0 %v6377
    %6424 = vmatprep.subr.bf16.mxu0 0
    %6425 = vmatpush2.bf16.msra.mxu0 %v6376
    %6426 = vmatprep.subr.bf16.mxu0 0
    %6427 = vmatpush2.bf16.msra.mxu0 %v6375
    %6428 = vmatprep.subr.bf16.mxu0 0
    %6429 = vmatpush2.bf16.msra.mxu0 %v6374
    %6430 = vmatprep.mubr.bf16.mxu0 %v6268
    %6431 = vmatmul.mubr.bf16.gmra.mxu0 %v6267
    %v6432 = vpop.f32.mrf.mxu0
    %v6433 = vadd.f32 %v6301, %v6432
    %v6434 = vpop.f32.mrf.mxu0
    %v6435 = vpop.f32.mrf.mxu0
    %v6436 = vpop.f32.mrf.mxu0
    %6437 = vdwg.mxu0
    %vm6438 = vcmp.gt.f32.partialorder %v6433, 0.0
    %v6439 = vmul.f32 %v6433, 0.2
    %v6440 = vsel %vm6438, %v6433, %v6439
    %v6441 = vpack.c.bf16 %v6440, %v6440
    %v6442 = vld [vmem:[%s1 + $0x3c] sm:$0xf]
    %v6443 = vld [vmem:[%s1 + $0x7c] sm:$0xf]
    %v6444 = vld [vmem:[%s1 + $0xbc] sm:$0xf]
    %v6445 = vld [vmem:[%s1 + $0xfc] sm:$0xf]
    %v6446 = vld [vmem:[%s1 + $0x13c] sm:$0xf]
    %v6447 = vld [vmem:[%s1 + $0x17c] sm:$0xf]
    %v6448 = vld [vmem:[%s1 + $0x1bc] sm:$0xf]
    %v6449 = vld [vmem:[%s1 + $0x1fc] sm:$0xf]
    %v6450 = vld [vmem:[%s1 + $0x23c] sm:$0xf]
    %v6451 = vld [vmem:[%s1 + $0x27c] sm:$0xf]
    %v6452 = vld [vmem:[%s1 + $0x2bc] sm:$0xf]
    %v6453 = vld [vmem:[%s1 + $0x2fc] sm:$0xf]
    %v6454 = vld [vmem:[%s1 + $0x33c] sm:$0xf]
    %v6455 = vld [vmem:[%s1 + $0x37c] sm:$0xf]
    %v6456 = vld [vmem:[%s1 + $0x3bc] sm:$0xf]
    %v6457 = vld [vmem:[%s1 + $0x3fc] sm:$0xf]
    %v6458 = vld [vmem:[%s2 + $0x4] ss:$0 sm:$0xff]
    %v6475 = vunpack.c.l.b16 %v6442
    %v6476 = vunpack.c.l.b16 %v6443
    %v6477 = vunpack.c.l.b16 %v6444
    %v6478 = vunpack.c.l.b16 %v6445
    %v6479 = vunpack.c.l.b16 %v6446
    %v6480 = vunpack.c.l.b16 %v6447
    %v6481 = vunpack.c.l.b16 %v6448
    %v6482 = vunpack.c.l.b16 %v6449
    %v6483 = vunpack.c.l.b16 %v6450
    %v6484 = vunpack.c.l.b16 %v6451
    %v6485 = vunpack.c.l.b16 %v6452
    %v6486 = vunpack.c.l.b16 %v6453
    %v6487 = vunpack.c.l.b16 %v6454
    %v6488 = vunpack.c.l.b16 %v6455
    %v6489 = vunpack.c.l.b16 %v6456
    %v6490 = vunpack.c.l.b16 %v6457
    %v6491 = vpack.c.b16 %v6476, %v6475
    %v6492 = vpack.c.b16 %v6478, %v6477
    %v6493 = vpack.c.b16 %v6480, %v6479
    %v6494 = vpack.c.b16 %v6482, %v6481
    %v6495 = vpack.c.b16 %v6484, %v6483
    %v6496 = vpack.c.b16 %v6486, %v6485
    %v6497 = vpack.c.b16 %v6488, %v6487
    %v6498 = vpack.c.b16 %v6490, %v6489
    %6507 = vmatprep.subr.bf16.mxu0 0
    %6508 = vmatpush1.bf16.msra.mxu0 %v6498
    %6509 = vmatprep.subr.bf16.mxu0 0
    %6510 = vmatpush1.bf16.msra.mxu0 %v6497
    %6511 = vmatprep.subr.bf16.mxu0 0
    %6512 = vmatpush1.bf16.msra.mxu0 %v6496
    %6513 = vmatprep.subr.bf16.mxu0 0
    %6514 = vmatpush1.bf16.msra.mxu0 %v6495
    %6515 = vmatprep.subr.bf16.mxu0 0
    %6516 = vmatpush1.bf16.msra.mxu0 %v6494
    %6517 = vmatprep.subr.bf16.mxu0 0
    %6518 = vmatpush1.bf16.msra.mxu0 %v6493
    %6519 = vmatprep.subr.bf16.mxu0 0
    %6520 = vmatpush1.bf16.msra.mxu0 %v6492
    %6521 = vmatprep.subr.bf16.mxu0 0
    %6522 = vmatpush1.bf16.msra.mxu0 %v6491
    %6523 = vmatprep.subr.bf16.mxu0 0
    %6524 = vmatpush2.bf16.msra.mxu0 0
    %6525 = vmatprep.subr.bf16.mxu0 0
    %6526 = vmatpush2.bf16.msra.mxu0 0
    %6527 = vmatprep.subr.bf16.mxu0 0
    %6528 = vmatpush2.bf16.msra.mxu0 0
    %6529 = vmatprep.subr.bf16.mxu0 0
    %6530 = vmatpush2.bf16.msra.mxu0 0
    %6531 = vmatprep.subr.bf16.mxu0 0
    %6532 = vmatpush2.bf16.msra.mxu0 0
    %6533 = vmatprep.subr.bf16.mxu0 0
    %6534 = vmatpush2.bf16.msra.mxu0 0
    %6535 = vmatprep.subr.bf16.mxu0 0
    %6536 = vmatpush2.bf16.msra.mxu0 0
    %6537 = vmatprep.subr.bf16.mxu0 0
    %6538 = vmatpush2.bf16.msra.mxu0 0
    %6539 = vmatprep.mubr.bf16.mxu0 0
    %6540 = vmatmul.mubr.bf16.gmra.mxu0 %v6441
    %v6541 = vpop.f32.mrf.mxu0
    %v6542 = vadd.f32 %v6458, %v6541
    %v6543 = vpop.f32.mrf.mxu0
    %v6544 = vpop.f32.mrf.mxu0
    %v6545 = vpop.f32.mrf.mxu0
    %6546 = vdwg.mxu0
    %6547 = vst [vmem:[#allocation2] sm:$0x3] %v6542
    // Predicated region
    $region14: #{_lambda_.1} parent=1 // pred_check
      _
    $region15: #{_lambda_.1} parent=1 // pred_check_branch
      %6549 = sbr.rel (0) target = $region17
    $region16: #{_lambda_.1} parent=1 // pred_region
      %s6551 = ssub.s32 32, 32
      %6552 = vsyncadd [#allocation3], %s6551
      %s6554 = sshll.u32 [#allocation2], 4
      %s6555 = int_to_ptr.vmem [resolvable:$true] %s6554
      %6557 = dma.vmem_to_hbm [thread:$0]  %s6555, 32, %s3, [#allocation3]
    $region17: #{_lambda_.1} parent=1 // pred_fallthru
      _
    // Predicated region
    $region18: #{_lambda_.1} parent=1 // pred_check
      _
    $region19: #{_lambda_.1} parent=1 // pred_check_branch
      %6559 = sbr.rel (0) target = $region21
    $region20: #{_lambda_.1} parent=1 // pred_region
      %6560 = dma.done [#allocation3], 32
    $region21: #{_lambda_.1} parent=1 // pred_fallthru
      _
    %6561 = vsyncpa [#allocation3], 1

</llo_original>
